<compile_context>
chip_gen: v5e
topology: v5e:2x2
jax: 0.10.0
libtpu: 0.0.40
codegen_flags: <defaults>
</compile_context>

<pallas_src>
import functools

import jax
import jax.numpy as jnp
from jax.experimental import pallas as pl
from jax.experimental.pallas import tpu as pltpu


def _adaptive_conv_kernel(x_ref, w1_ref, b1_ref, w2_ref, b2_ref, wT_ref, bT_ref,
                          o_ref, xpad_ref, col_ref,
                          *, H, W, Hp, Wp, Ho, Wo, K, KH, KW, Cin, Cout,
                          stride, dilation, padding, BB, Npix, Nlane):
    P = KH * KW * Cin

    xs = x_ref[...]                                               # (BB, H, W, Cin) f32

    # ---------------- attention2d, batched over the BB samples of this step ----------------
    pooled = jnp.sum(jnp.sum(xs, axis=1), axis=1) * (1.0 / float(H * W))   # (BB, Cin)
    h = jnp.dot(pooled, w1_ref[...], preferred_element_type=jnp.float32) + b1_ref[...]
    h = jnp.maximum(h, 0.0)                                       # ReLU
    logits = jnp.dot(h, w2_ref[...], preferred_element_type=jnp.float32) + b2_ref[...]
    logits = logits - jnp.max(logits, axis=-1, keepdims=True)
    e = jnp.exp(logits)
    att = e / jnp.sum(e, axis=-1, keepdims=True)                  # (BB, K) softmax, f32

    # ---------------- expert aggregation for all BB samples ----------------
    # Expert weights are read once per grid step; f32 accumulation (v5e VPU has no bf16
    # ALU), single bf16 cast to feed the MXU.
    aggB = att[:, 0:1, None] * wT_ref[0][None]                    # (BB, Cout, P) f32
    for k in range(1, K):
        aggB = aggB + att[:, k:k + 1, None] * wT_ref[k][None]
    aggB = aggB.astype(jnp.bfloat16)

    # bias: (Cout, K) @ att^T -> (Cout, BB), one dot for the whole block of samples.
    biasT = jax.lax.dot_general(bT_ref[...], att, (((1,), (1,)), ((), ())),
                                preferred_element_type=jnp.float32)

    # ---------------- zero the padding border once per grid step ----------------
    # (the interior is fully overwritten per sample below, so the border stays zero)
    if padding > 0:
        xpad_ref[0:padding, :, :] = jnp.zeros((padding, Wp, Cin), jnp.float32)
        xpad_ref[Hp - padding:Hp, :, :] = jnp.zeros((padding, Wp, Cin), jnp.float32)
        xpad_ref[padding:padding + H, 0:padding, :] = jnp.zeros((H, padding, Cin), jnp.float32)
        xpad_ref[padding:padding + H, Wp - padding:Wp, :] = jnp.zeros((H, padding, Cin), jnp.float32)

    # ---------------- per-sample im2col + one MXU matmul each ----------------
    for s in range(BB):
        # in-kernel padding: write this sample's NHWC image into the scratch interior
        xpad_ref[padding:padding + H, padding:padding + W, :] = xs[s]
        xp = xpad_ref[...]                                        # (Hp, Wp, Cin) f32

        # im2col into the bf16 VMEM slab; each tap slice is cast on write.
        for ki in range(KH):
            for kj in range(KW):
                di = ki * dilation
                dj = kj * dilation
                t = ki * KW + kj
                col_ref[:, :, t * Cin:(t + 1) * Cin] = xp[
                    di:di + (Ho - 1) * stride + 1:stride,
                    dj:dj + (Wo - 1) * stride + 1:stride, :].astype(jnp.bfloat16)

        patches = col_ref[...].reshape(Npix, P)                   # (Ho*Wo, P) bf16

        # (Cout, P) x (Npix, P)^T -> (Cout, Npix): lane-dense, already NCHW-flat.
        accT = jax.lax.dot_general(aggB[s], patches, (((1,), (1,)), ((), ())),
                                   preferred_element_type=jnp.float32)
        accT = accT + biasT[:, s:s + 1]
        if Nlane != Npix:                                          # keep the store lane-dense
            accT = jnp.pad(accT, ((0, 0), (0, Nlane - Npix)))
        o_ref[s] = accT.astype(o_ref.dtype)


def adaptive_conv2d(x_nchw, params, *, kernel_size, stride=1, padding=0,
                    dilation=1, groups=1, K=4):
    assert groups == 1  # TODO(synk): grouped adaptive conv not implemented.
    B, Cin, H, W = x_nchw.shape
    w1, b1, w2, b2, weight, bias = (params[k] for k in
                                    ("w1", "b1", "w2", "b2", "weight", "bias"))
    Cout = weight.shape[-1]
    KH = KW = kernel_size
    Ho = (H + 2 * padding - dilation * (KH - 1) - 1) // stride + 1
    Wo = (W + 2 * padding - dilation * (KW - 1) - 1) // stride + 1
    Hp, Wp = H + 2 * padding, W + 2 * padding
    P = KH * KW * Cin
    Npix = Ho * Wo
    Nlane = ((Npix + 127) // 128) * 128            # lane-dense output width (mult. of 128)

    BB = min(B, 4)                                 # batch block per grid step
    Bpad = ((B + BB - 1) // BB) * BB

    # NCHW -> NHWC (glue; an NHWC-native surrounding model would avoid this pass).
    # Zero-padding is done inside the kernel, so only the transpose remains here.
    x = jnp.transpose(x_nchw, (0, 2, 3, 1)).astype(jnp.float32)
    if Bpad != B:
        x = jnp.pad(x, ((0, Bpad - B), (0, 0), (0, 0), (0, 0)))

    # One-time parameter re-layouts (in a real model these live at init, not per call):
    #   expert weights (K, kh, kw, Cin, Cout) -> (K, Cout, kh*kw*Cin), bf16, P ordered (ki,kj,c)
    #   expert bias    (K, Cout)              -> (Cout, K)
    wT = jnp.transpose(weight, (0, 4, 1, 2, 3)).reshape(K, Cout, P).astype(jnp.bfloat16)
    bT = bias.T

    kernel = functools.partial(
        _adaptive_conv_kernel,
        H=H, W=W, Hp=Hp, Wp=Wp, Ho=Ho, Wo=Wo, K=K, KH=KH, KW=KW,
        Cin=Cin, Cout=Cout, stride=stride, dilation=dilation, padding=padding,
        BB=BB, Npix=Npix, Nlane=Nlane)

    out_flat = pl.pallas_call(
        kernel,
        out_shape=jax.ShapeDtypeStruct((Bpad, Cout, Nlane), jnp.float32),
        grid_spec=pltpu.PrefetchScalarGridSpec(
            num_scalar_prefetch=0,
            grid=(Bpad // BB,),
            in_specs=[
                pl.BlockSpec((BB, H, W, Cin), lambda b: (b, 0, 0, 0)),    # NHWC input block
                pl.BlockSpec((Cin, K), lambda b: (0, 0)),                 # fc1 weight^T
                pl.BlockSpec((1, K), lambda b: (0, 0)),                   # fc1 bias
                pl.BlockSpec((K, K), lambda b: (0, 0)),                   # fc2 weight^T
                pl.BlockSpec((1, K), lambda b: (0, 0)),                   # fc2 bias
                pl.BlockSpec((K, Cout, P), lambda b: (0, 0, 0)),          # experts (bf16)
                pl.BlockSpec((Cout, K), lambda b: (0, 0)),                # expert biases^T
            ],
            out_specs=pl.BlockSpec((BB, Cout, Nlane), lambda b: (b, 0, 0)),
            scratch_shapes=[
                pltpu.VMEM((Hp, Wp, Cin), jnp.float32),                   # padded-input scratch
                pltpu.VMEM((Ho, Wo, P), jnp.bfloat16),                    # bf16 im2col slab
            ],
        ),
        compiler_params=pltpu.CompilerParams(
            dimension_semantics=("parallel",),
            # safe on all generations at these block sizes; see TODO for generation-aware limit
            vmem_limit_bytes=32 * 1024 * 1024,
        ),
    )(x, w1, b1, w2, b2, wT, bT)

    # (Bpad, Cout, Nlane) -> crop batch padding and lane padding; already NCHW-flat.
    return out_flat[:B, :, :Npix].reshape(B, Cout, Ho, Wo)


def init_params(key, in_planes, out_planes, kernel_size, K):
    """Deterministic synthetic parameters (shapes match the PyTorch module)."""
    ks = jax.random.split(key, 6)
    s = 0.1
    return dict(
        # attention2d.fc1: Conv2d(in_planes, K, 1)  -> stored transposed (Cin, K)
        w1=s * jax.random.normal(ks[0], (in_planes, K), jnp.float32),
        b1=s * jax.random.normal(ks[1], (1, K), jnp.float32),
        # attention2d.fc2: Conv2d(K, K, 1)          -> stored transposed (K_in, K_out)
        w2=s * jax.random.normal(ks[2], (K, K), jnp.float32),
        b2=s * jax.random.normal(ks[3], (1, K), jnp.float32),
        # expert conv weights, torch shape (K, Cout, Cin, kh, kw) stored as (K, kh, kw, Cin, Cout)
        weight=s * jax.random.normal(ks[4], (K, kernel_size, kernel_size, in_planes, out_planes),
                                     jnp.float32),
        bias=s * jax.random.normal(ks[5], (K, out_planes), jnp.float32),
    )


def reference(x_nchw, params, *, kernel_size, stride, padding, dilation, K):
    """Pure-JAX re-statement of the PyTorch forward, for verification."""
    w1, b1, w2, b2, weight, bias = (params[k] for k in
                                    ("w1", "b1", "w2", "b2", "weight", "bias"))
    B = x_nchw.shape[0]
    pooled = jnp.mean(x_nchw, axis=(2, 3))                      # (B, Cin)
    h = jnp.maximum(pooled @ w1 + b1, 0.0)
    att = jax.nn.softmax(h @ w2 + b2, axis=1)                   # (B, K)
    w_oihw = jnp.transpose(weight, (0, 4, 3, 1, 2))             # (K, Cout, Cin, kh, kw)
    agg_w = jnp.einsum('bk,koihw->boihw', att, w_oihw)          # (B, Cout, Cin, kh, kw)
    agg_b = att @ bias                                          # (B, Cout)
    outs = []
    for b in range(B):
        o = jax.lax.conv_general_dilated(
            x_nchw[b:b + 1], agg_w[b],
            window_strides=(stride, stride),
            padding=[(padding, padding), (padding, padding)],
            rhs_dilation=(dilation, dilation),
            dimension_numbers=('NCHW', 'OIHW', 'NCHW'))
        outs.append(o + agg_b[b][None, :, None, None])
    return jnp.concatenate(outs, axis=0)


if __name__ == "__main__":
    B, Cin, H, W = 2, 4, 16, 16
    Cout, ksize, K = 8, 3, 4
    stride, padding, dilation = 1, 1, 1

    key = jax.random.PRNGKey(0)
    kx, kp = jax.random.split(key)
    x = jax.random.normal(kx, (B, Cin, H, W), jnp.float32)
    params = init_params(kp, Cin, Cout, ksize, K)

    out = adaptive_conv2d(x, params, kernel_size=ksize, stride=stride,
                          padding=padding, dilation=dilation, groups=1, K=K)
    out = jax.block_until_ready(out)

    ref = jax.block_until_ready(
        reference(x, params, kernel_size=ksize, stride=stride,
                  padding=padding, dilation=dilation, K=K))

    assert out.shape == (B, Cout, H, W), out.shape
    max_err = float(jnp.max(jnp.abs(out - ref)))
    assert max_err < 2e-2, f"max abs error {max_err}"
    print("KERNEL_OK")
</pallas_src>

<mosaic_0001>
module attributes {stable_mosaic.version = 11 : i64} {
  func.func @_adaptive_conv_kernel(%arg0: i32, %arg1: memref<2x16x16x4xf32, #tpu.memory_space<vmem>>, %arg2: memref<4x4xf32, #tpu.memory_space<vmem>>, %arg3: memref<1x4xf32, #tpu.memory_space<vmem>>, %arg4: memref<4x4xf32, #tpu.memory_space<vmem>>, %arg5: memref<1x4xf32, #tpu.memory_space<vmem>>, %arg6: memref<4x8x36xbf16, #tpu.memory_space<vmem>>, %arg7: memref<8x4xf32, #tpu.memory_space<vmem>>, %arg8: memref<2x8x256xf32, #tpu.memory_space<vmem>>, %arg9: memref<18x18x4xf32, #tpu.memory_space<vmem>>, %arg10: memref<16x16x36xbf16, #tpu.memory_space<vmem>>) attributes {dimension_semantics = [#tpu.dimension_semantics<parallel>], iteration_bounds = array<i64: 1>, scalar_prefetch = 0 : i64, scratch_operands = 2 : i64, tpu.core_type = #tpu.core_type<tc>, window_params = [{transform_indices = @transform_0, window_bounds = array<i64: 2, 16, 16, 4>}, {pipeline_mode = #tpu.pipeline_mode<synchronous>, transform_indices = @transform_1, window_bounds = array<i64: 4, 4>}, {pipeline_mode = #tpu.pipeline_mode<synchronous>, transform_indices = @transform_2, window_bounds = array<i64: 1, 4>}, {pipeline_mode = #tpu.pipeline_mode<synchronous>, transform_indices = @transform_3, window_bounds = array<i64: 4, 4>}, {pipeline_mode = #tpu.pipeline_mode<synchronous>, transform_indices = @transform_4, window_bounds = array<i64: 1, 4>}, {pipeline_mode = #tpu.pipeline_mode<synchronous>, transform_indices = @transform_5, window_bounds = array<i64: 4, 8, 36>}, {pipeline_mode = #tpu.pipeline_mode<synchronous>, transform_indices = @transform_6, window_bounds = array<i64: 8, 4>}, {transform_indices = @transform_7, window_bounds = array<i64: 2, 8, 256>}]} {
    %c0 = arith.constant 0 : index
    %c0_0 = arith.constant 0 : index
    %c0_1 = arith.constant 0 : index
    %c0_2 = arith.constant 0 : index
    %0 = vector.load %arg1[%c0, %c0_0, %c0_1, %c0_2] : memref<2x16x16x4xf32, #tpu.memory_space<vmem>>, vector<2x16x16x4xf32>
    %cst = arith.constant dense<0.000000e+00> : vector<2x16x4xf32>
    %1 = vector.multi_reduction <add>, %0, %cst [1] : vector<2x16x16x4xf32> to vector<2x16x4xf32>
    %cst_3 = arith.constant dense<0.000000e+00> : vector<2x4xf32>
    %2 = vector.multi_reduction <add>, %1, %cst_3 [1] : vector<2x16x4xf32> to vector<2x4xf32>
    %cst_4 = arith.constant 3.906250e-03 : f32
    %3 = vector.broadcast %cst_4 : f32 to vector<2x4xf32>
    %4 = arith.mulf %2, %3 : vector<2x4xf32>
    %c0_5 = arith.constant 0 : index
    %c0_6 = arith.constant 0 : index
    %5 = vector.load %arg2[%c0_5, %c0_6] : memref<4x4xf32, #tpu.memory_space<vmem>>, vector<4x4xf32>
    %cst_7 = arith.constant dense<0.000000e+00> : vector<2x4xf32>
    %6 = tpu.matmul %4, %5, %cst_7 {dimension_numbers = #tpu.dot_dimension_numbers<[1], [0], [0], [1], [0, 0, 1, 1], [], []>} : vector<2x4xf32>, vector<4x4xf32>, vector<2x4xf32> -> vector<2x4xf32>
    %c0_8 = arith.constant 0 : index
    %c0_9 = arith.constant 0 : index
    %7 = vector.load %arg3[%c0_8, %c0_9] : memref<1x4xf32, #tpu.memory_space<vmem>>, vector<1x4xf32>
    %8 = vector.broadcast %7 : vector<1x4xf32> to vector<2x4xf32>
    %9 = arith.addf %6, %8 : vector<2x4xf32>
    %cst_10 = arith.constant 0.000000e+00 : f32
    %10 = vector.broadcast %cst_10 : f32 to vector<2x4xf32>
    %11 = arith.maximumf %9, %10 : vector<2x4xf32>
    %c0_11 = arith.constant 0 : index
    %c0_12 = arith.constant 0 : index
    %12 = vector.load %arg4[%c0_11, %c0_12] : memref<4x4xf32, #tpu.memory_space<vmem>>, vector<4x4xf32>
    %cst_13 = arith.constant dense<0.000000e+00> : vector<2x4xf32>
    %13 = tpu.matmul %11, %12, %cst_13 {dimension_numbers = #tpu.dot_dimension_numbers<[1], [0], [0], [1], [0, 0, 1, 1], [], []>} : vector<2x4xf32>, vector<4x4xf32>, vector<2x4xf32> -> vector<2x4xf32>
    %c0_14 = arith.constant 0 : index
    %c0_15 = arith.constant 0 : index
    %14 = vector.load %arg5[%c0_14, %c0_15] : memref<1x4xf32, #tpu.memory_space<vmem>>, vector<1x4xf32>
    %15 = vector.broadcast %14 : vector<1x4xf32> to vector<2x4xf32>
    %16 = arith.addf %13, %15 : vector<2x4xf32>
    %cst_16 = arith.constant dense<0xFF800000> : vector<2xf32>
    %17 = vector.multi_reduction <maximumf>, %16, %cst_16 [1] : vector<2x4xf32> to vector<2xf32>
    %18 = vector.shape_cast %17 : vector<2xf32> to vector<2x1xf32>
    %19 = vector.broadcast %18 : vector<2x1xf32> to vector<2x4xf32>
    %20 = arith.subf %16, %19 : vector<2x4xf32>
    %21 = math.exp %20 : vector<2x4xf32>
    %cst_17 = arith.constant dense<0.000000e+00> : vector<2xf32>
    %22 = vector.multi_reduction <add>, %21, %cst_17 [1] : vector<2x4xf32> to vector<2xf32>
    %23 = vector.shape_cast %22 : vector<2xf32> to vector<2x1xf32>
    %24 = vector.broadcast %23 : vector<2x1xf32> to vector<2x4xf32>
    %25 = arith.divf %21, %24 : vector<2x4xf32>
    %26 = vector.extract_strided_slice %25 {offsets = [0, 0], sizes = [2, 1], strides = [1, 1]} : vector<2x4xf32> to vector<2x1xf32>
    %27 = vector.shape_cast %26 : vector<2x1xf32> to vector<2x1x1xf32>
    %c0_18 = arith.constant 0 : index
    %c0_19 = arith.constant 0 : index
    %c0_20 = arith.constant 0 : index
    %28 = vector.load %arg6[%c0_18, %c0_19, %c0_20] : memref<4x8x36xbf16, #tpu.memory_space<vmem>>, vector<1x8x36xbf16>
    %29 = vector.shape_cast %28 : vector<1x8x36xbf16> to vector<8x36xbf16>
    %30 = vector.shape_cast %29 : vector<8x36xbf16> to vector<1x8x36xbf16>
    %31 = arith.extf %30 : vector<1x8x36xbf16> to vector<1x8x36xf32>
    %32 = vector.broadcast %27 : vector<2x1x1xf32> to vector<2x8x36xf32>
    %33 = vector.broadcast %31 : vector<1x8x36xf32> to vector<2x8x36xf32>
    %34 = arith.mulf %32, %33 : vector<2x8x36xf32>
    %35 = vector.extract_strided_slice %25 {offsets = [0, 1], sizes = [2, 1], strides = [1, 1]} : vector<2x4xf32> to vector<2x1xf32>
    %36 = vector.shape_cast %35 : vector<2x1xf32> to vector<2x1x1xf32>
    %c1 = arith.constant 1 : index
    %c0_21 = arith.constant 0 : index
    %c0_22 = arith.constant 0 : index
    %37 = vector.load %arg6[%c1, %c0_21, %c0_22] : memref<4x8x36xbf16, #tpu.memory_space<vmem>>, vector<1x8x36xbf16>
    %38 = vector.shape_cast %37 : vector<1x8x36xbf16> to vector<8x36xbf16>
    %39 = vector.shape_cast %38 : vector<8x36xbf16> to vector<1x8x36xbf16>
    %40 = arith.extf %39 : vector<1x8x36xbf16> to vector<1x8x36xf32>
    %41 = vector.broadcast %36 : vector<2x1x1xf32> to vector<2x8x36xf32>
    %42 = vector.broadcast %40 : vector<1x8x36xf32> to vector<2x8x36xf32>
    %43 = arith.mulf %41, %42 : vector<2x8x36xf32>
    %44 = arith.addf %34, %43 : vector<2x8x36xf32>
    %45 = vector.extract_strided_slice %25 {offsets = [0, 2], sizes = [2, 1], strides = [1, 1]} : vector<2x4xf32> to vector<2x1xf32>
    %46 = vector.shape_cast %45 : vector<2x1xf32> to vector<2x1x1xf32>
    %c2 = arith.constant 2 : index
    %c0_23 = arith.constant 0 : index
    %c0_24 = arith.constant 0 : index
    %47 = vector.load %arg6[%c2, %c0_23, %c0_24] : memref<4x8x36xbf16, #tpu.memory_space<vmem>>, vector<1x8x36xbf16>
    %48 = vector.shape_cast %47 : vector<1x8x36xbf16> to vector<8x36xbf16>
    %49 = vector.shape_cast %48 : vector<8x36xbf16> to vector<1x8x36xbf16>
    %50 = arith.extf %49 : vector<1x8x36xbf16> to vector<1x8x36xf32>
    %51 = vector.broadcast %46 : vector<2x1x1xf32> to vector<2x8x36xf32>
    %52 = vector.broadcast %50 : vector<1x8x36xf32> to vector<2x8x36xf32>
    %53 = arith.mulf %51, %52 : vector<2x8x36xf32>
    %54 = arith.addf %44, %53 : vector<2x8x36xf32>
    %55 = vector.extract_strided_slice %25 {offsets = [0, 3], sizes = [2, 1], strides = [1, 1]} : vector<2x4xf32> to vector<2x1xf32>
    %56 = vector.shape_cast %55 : vector<2x1xf32> to vector<2x1x1xf32>
    %c3 = arith.constant 3 : index
    %c0_25 = arith.constant 0 : index
    %c0_26 = arith.constant 0 : index
    %57 = vector.load %arg6[%c3, %c0_25, %c0_26] : memref<4x8x36xbf16, #tpu.memory_space<vmem>>, vector<1x8x36xbf16>
    %58 = vector.shape_cast %57 : vector<1x8x36xbf16> to vector<8x36xbf16>
    %59 = vector.shape_cast %58 : vector<8x36xbf16> to vector<1x8x36xbf16>
    %60 = arith.extf %59 : vector<1x8x36xbf16> to vector<1x8x36xf32>
    %61 = vector.broadcast %56 : vector<2x1x1xf32> to vector<2x8x36xf32>
    %62 = vector.broadcast %60 : vector<1x8x36xf32> to vector<2x8x36xf32>
    %63 = arith.mulf %61, %62 : vector<2x8x36xf32>
    %64 = arith.addf %54, %63 : vector<2x8x36xf32>
    %65 = arith.truncf %64 : vector<2x8x36xf32> to vector<2x8x36xbf16>
    %c0_27 = arith.constant 0 : index
    %c0_28 = arith.constant 0 : index
    %66 = vector.load %arg7[%c0_27, %c0_28] : memref<8x4xf32, #tpu.memory_space<vmem>>, vector<8x4xf32>
    %cst_29 = arith.constant dense<0.000000e+00> : vector<8x2xf32>
    %67 = tpu.matmul %66, %25, %cst_29 {dimension_numbers = #tpu.dot_dimension_numbers<[1], [1], [0], [0], [0, 0, 1, 0], [], []>} : vector<8x4xf32>, vector<2x4xf32>, vector<8x2xf32> -> vector<8x2xf32>
    %cst_30 = arith.constant 0.000000e+00 : f32
    %68 = vector.broadcast %cst_30 : f32 to vector<1x18x4xf32>
    %c0_31 = arith.constant 0 : index
    %c0_32 = arith.constant 0 : index
    %c0_33 = arith.constant 0 : index
    %69 = vector.load %arg9[%c0_31, %c0_32, %c0_33] : memref<18x18x4xf32, #tpu.memory_space<vmem>>, vector<1x18x4xf32>
    tpu.vector_store %arg9[%c0_31, %c0_32, %c0_33], %68 {strides = array<i32>} : memref<18x18x4xf32, #tpu.memory_space<vmem>>, vector<1x18x4xf32>,
    %cst_34 = arith.constant 0.000000e+00 : f32
    %70 = vector.broadcast %cst_34 : f32 to vector<1x18x4xf32>
    %c17 = arith.constant 17 : index
    %c0_35 = arith.constant 0 : index
    %c0_36 = arith.constant 0 : index
    %71 = vector.load %arg9[%c17, %c0_35, %c0_36] : memref<18x18x4xf32, #tpu.memory_space<vmem>>, vector<1x18x4xf32>
    tpu.vector_store %arg9[%c17, %c0_35, %c0_36], %70 {strides = array<i32>} : memref<18x18x4xf32, #tpu.memory_space<vmem>>, vector<1x18x4xf32>,
    %cst_37 = arith.constant 0.000000e+00 : f32
    %72 = vector.broadcast %cst_37 : f32 to vector<16x1x4xf32>
    %c1_38 = arith.constant 1 : index
    %c0_39 = arith.constant 0 : index
    %c0_40 = arith.constant 0 : index
    %73 = vector.load %arg9[%c1_38, %c0_39, %c0_40] : memref<18x18x4xf32, #tpu.memory_space<vmem>>, vector<16x1x4xf32>
    tpu.vector_store %arg9[%c1_38, %c0_39, %c0_40], %72 {strides = array<i32>} : memref<18x18x4xf32, #tpu.memory_space<vmem>>, vector<16x1x4xf32>,
    %cst_41 = arith.constant 0.000000e+00 : f32
    %74 = vector.broadcast %cst_41 : f32 to vector<16x1x4xf32>
    %c1_42 = arith.constant 1 : index
    %c17_43 = arith.constant 17 : index
    %c0_44 = arith.constant 0 : index
    %75 = vector.load %arg9[%c1_42, %c17_43, %c0_44] : memref<18x18x4xf32, #tpu.memory_space<vmem>>, vector<16x1x4xf32>
    tpu.vector_store %arg9[%c1_42, %c17_43, %c0_44], %74 {strides = array<i32>} : memref<18x18x4xf32, #tpu.memory_space<vmem>>, vector<16x1x4xf32>,
    %76 = vector.extract_strided_slice %0 {offsets = [0, 0, 0, 0], sizes = [1, 16, 16, 4], strides = [1, 1, 1, 1]} : vector<2x16x16x4xf32> to vector<1x16x16x4xf32>
    %77 = vector.shape_cast %76 : vector<1x16x16x4xf32> to vector<16x16x4xf32>
    %c1_45 = arith.constant 1 : index
    %c1_46 = arith.constant 1 : index
    %c0_47 = arith.constant 0 : index
    %78 = vector.load %arg9[%c1_45, %c1_46, %c0_47] : memref<18x18x4xf32, #tpu.memory_space<vmem>>, vector<16x16x4xf32>
    tpu.vector_store %arg9[%c1_45, %c1_46, %c0_47], %77 {strides = array<i32>} : memref<18x18x4xf32, #tpu.memory_space<vmem>>, vector<16x16x4xf32>,
    %c0_48 = arith.constant 0 : index
    %c0_49 = arith.constant 0 : index
    %c0_50 = arith.constant 0 : index
    %79 = vector.load %arg9[%c0_48, %c0_49, %c0_50] : memref<18x18x4xf32, #tpu.memory_space<vmem>>, vector<18x18x4xf32>
    %80 = vector.extract_strided_slice %79 {offsets = [0, 0, 0], sizes = [16, 16, 4], strides = [1, 1, 1]} : vector<18x18x4xf32> to vector<16x16x4xf32>
    %81 = arith.truncf %80 : vector<16x16x4xf32> to vector<16x16x4xbf16>
    %c0_51 = arith.constant 0 : index
    %c0_52 = arith.constant 0 : index
    %c0_53 = arith.constant 0 : index
    %82 = vector.load %arg10[%c0_51, %c0_52, %c0_53] : memref<16x16x36xbf16, #tpu.memory_space<vmem>>, vector<16x16x4xbf16>
    tpu.vector_store %arg10[%c0_51, %c0_52, %c0_53], %81 {strides = array<i32>} : memref<16x16x36xbf16, #tpu.memory_space<vmem>>, vector<16x16x4xbf16>,
    %83 = vector.extract_strided_slice %79 {offsets = [0, 1, 0], sizes = [16, 16, 4], strides = [1, 1, 1]} : vector<18x18x4xf32> to vector<16x16x4xf32>
    %84 = arith.truncf %83 : vector<16x16x4xf32> to vector<16x16x4xbf16>
    %c0_54 = arith.constant 0 : index
    %c0_55 = arith.constant 0 : index
    %c4 = arith.constant 4 : index
    %85 = vector.load %arg10[%c0_54, %c0_55, %c4] : memref<16x16x36xbf16, #tpu.memory_space<vmem>>, vector<16x16x4xbf16>
    tpu.vector_store %arg10[%c0_54, %c0_55, %c4], %84 {strides = array<i32>} : memref<16x16x36xbf16, #tpu.memory_space<vmem>>, vector<16x16x4xbf16>,
    %86 = vector.extract_strided_slice %79 {offsets = [0, 2, 0], sizes = [16, 16, 4], strides = [1, 1, 1]} : vector<18x18x4xf32> to vector<16x16x4xf32>
    %87 = arith.truncf %86 : vector<16x16x4xf32> to vector<16x16x4xbf16>
    %c0_56 = arith.constant 0 : index
    %c0_57 = arith.constant 0 : index
    %c8 = arith.constant 8 : index
    %88 = vector.load %arg10[%c0_56, %c0_57, %c8] : memref<16x16x36xbf16, #tpu.memory_space<vmem>>, vector<16x16x4xbf16>
    tpu.vector_store %arg10[%c0_56, %c0_57, %c8], %87 {strides = array<i32>} : memref<16x16x36xbf16, #tpu.memory_space<vmem>>, vector<16x16x4xbf16>,
    %89 = vector.extract_strided_slice %79 {offsets = [1, 0, 0], sizes = [16, 16, 4], strides = [1, 1, 1]} : vector<18x18x4xf32> to vector<16x16x4xf32>
    %90 = arith.truncf %89 : vector<16x16x4xf32> to vector<16x16x4xbf16>
    %c0_58 = arith.constant 0 : index
    %c0_59 = arith.constant 0 : index
    %c12 = arith.constant 12 : index
    %91 = vector.load %arg10[%c0_58, %c0_59, %c12] : memref<16x16x36xbf16, #tpu.memory_space<vmem>>, vector<16x16x4xbf16>
    tpu.vector_store %arg10[%c0_58, %c0_59, %c12], %90 {strides = array<i32>} : memref<16x16x36xbf16, #tpu.memory_space<vmem>>, vector<16x16x4xbf16>,
    %92 = vector.extract_strided_slice %79 {offsets = [1, 1, 0], sizes = [16, 16, 4], strides = [1, 1, 1]} : vector<18x18x4xf32> to vector<16x16x4xf32>
    %93 = arith.truncf %92 : vector<16x16x4xf32> to vector<16x16x4xbf16>
    %c0_60 = arith.constant 0 : index
    %c0_61 = arith.constant 0 : index
    %c16 = arith.constant 16 : index
    %94 = vector.load %arg10[%c0_60, %c0_61, %c16] : memref<16x16x36xbf16, #tpu.memory_space<vmem>>, vector<16x16x4xbf16>
    tpu.vector_store %arg10[%c0_60, %c0_61, %c16], %93 {strides = array<i32>} : memref<16x16x36xbf16, #tpu.memory_space<vmem>>, vector<16x16x4xbf16>,
    %95 = vector.extract_strided_slice %79 {offsets = [1, 2, 0], sizes = [16, 16, 4], strides = [1, 1, 1]} : vector<18x18x4xf32> to vector<16x16x4xf32>
    %96 = arith.truncf %95 : vector<16x16x4xf32> to vector<16x16x4xbf16>
    %c0_62 = arith.constant 0 : index
    %c0_63 = arith.constant 0 : index
    %c20 = arith.constant 20 : index
    %97 = vector.load %arg10[%c0_62, %c0_63, %c20] : memref<16x16x36xbf16, #tpu.memory_space<vmem>>, vector<16x16x4xbf16>
    tpu.vector_store %arg10[%c0_62, %c0_63, %c20], %96 {strides = array<i32>} : memref<16x16x36xbf16, #tpu.memory_space<vmem>>, vector<16x16x4xbf16>,
    %98 = vector.extract_strided_slice %79 {offsets = [2, 0, 0], sizes = [16, 16, 4], strides = [1, 1, 1]} : vector<18x18x4xf32> to vector<16x16x4xf32>
    %99 = arith.truncf %98 : vector<16x16x4xf32> to vector<16x16x4xbf16>
    %c0_64 = arith.constant 0 : index
    %c0_65 = arith.constant 0 : index
    %c24 = arith.constant 24 : index
    %100 = vector.load %arg10[%c0_64, %c0_65, %c24] : memref<16x16x36xbf16, #tpu.memory_space<vmem>>, vector<16x16x4xbf16>
    tpu.vector_store %arg10[%c0_64, %c0_65, %c24], %99 {strides = array<i32>} : memref<16x16x36xbf16, #tpu.memory_space<vmem>>, vector<16x16x4xbf16>,
    %101 = vector.extract_strided_slice %79 {offsets = [2, 1, 0], sizes = [16, 16, 4], strides = [1, 1, 1]} : vector<18x18x4xf32> to vector<16x16x4xf32>
    %102 = arith.truncf %101 : vector<16x16x4xf32> to vector<16x16x4xbf16>
    %c0_66 = arith.constant 0 : index
    %c0_67 = arith.constant 0 : index
    %c28 = arith.constant 28 : index
    %103 = vector.load %arg10[%c0_66, %c0_67, %c28] : memref<16x16x36xbf16, #tpu.memory_space<vmem>>, vector<16x16x4xbf16>
    tpu.vector_store %arg10[%c0_66, %c0_67, %c28], %102 {strides = array<i32>} : memref<16x16x36xbf16, #tpu.memory_space<vmem>>, vector<16x16x4xbf16>,
    %104 = vector.extract_strided_slice %79 {offsets = [2, 2, 0], sizes = [16, 16, 4], strides = [1, 1, 1]} : vector<18x18x4xf32> to vector<16x16x4xf32>
    %105 = arith.truncf %104 : vector<16x16x4xf32> to vector<16x16x4xbf16>
    %c0_68 = arith.constant 0 : index
    %c0_69 = arith.constant 0 : index
    %c32 = arith.constant 32 : index
    %106 = vector.load %arg10[%c0_68, %c0_69, %c32] : memref<16x16x36xbf16, #tpu.memory_space<vmem>>, vector<16x16x4xbf16>
    tpu.vector_store %arg10[%c0_68, %c0_69, %c32], %105 {strides = array<i32>} : memref<16x16x36xbf16, #tpu.memory_space<vmem>>, vector<16x16x4xbf16>,
    %c0_70 = arith.constant 0 : index
    %c0_71 = arith.constant 0 : index
    %c0_72 = arith.constant 0 : index
    %107 = vector.load %arg10[%c0_70, %c0_71, %c0_72] : memref<16x16x36xbf16, #tpu.memory_space<vmem>>, vector<16x16x36xbf16>
    %108 = vector.shape_cast %107 : vector<16x16x36xbf16> to vector<256x36xbf16>
    %109 = vector.extract_strided_slice %65 {offsets = [0, 0, 0], sizes = [1, 8, 36], strides = [1, 1, 1]} : vector<2x8x36xbf16> to vector<1x8x36xbf16>
    %110 = vector.shape_cast %109 : vector<1x8x36xbf16> to vector<8x36xbf16>
    %cst_73 = arith.constant dense<0.000000e+00> : vector<8x256xf32>
    %111 = tpu.matmul %110, %108, %cst_73 {dimension_numbers = #tpu.dot_dimension_numbers<[1], [1], [0], [0], [0, 0, 1, 0], [], []>} : vector<8x36xbf16>, vector<256x36xbf16>, vector<8x256xf32> -> vector<8x256xf32>
    %112 = vector.extract_strided_slice %67 {offsets = [0, 0], sizes = [8, 1], strides = [1, 1]} : vector<8x2xf32> to vector<8x1xf32>
    %113 = vector.broadcast %112 : vector<8x1xf32> to vector<8x256xf32>
    %114 = arith.addf %111, %113 : vector<8x256xf32>
    %c0_74 = arith.constant 0 : index
    %c0_75 = arith.constant 0 : index
    %c0_76 = arith.constant 0 : index
    %115 = vector.load %arg8[%c0_74, %c0_75, %c0_76] : memref<2x8x256xf32, #tpu.memory_space<vmem>>, vector<1x8x256xf32>
    %116 = vector.shape_cast %115 : vector<1x8x256xf32> to vector<8x256xf32>
    %117 = vector.shape_cast %114 : vector<8x256xf32> to vector<1x8x256xf32>
    tpu.vector_store %arg8[%c0_74, %c0_75, %c0_76], %117 {strides = array<i32>} : memref<2x8x256xf32, #tpu.memory_space<vmem>>, vector<1x8x256xf32>,
    %118 = vector.extract_strided_slice %0 {offsets = [1, 0, 0, 0], sizes = [1, 16, 16, 4], strides = [1, 1, 1, 1]} : vector<2x16x16x4xf32> to vector<1x16x16x4xf32>
    %119 = vector.shape_cast %118 : vector<1x16x16x4xf32> to vector<16x16x4xf32>
    %c1_77 = arith.constant 1 : index
    %c1_78 = arith.constant 1 : index
    %c0_79 = arith.constant 0 : index
    %120 = vector.load %arg9[%c1_77, %c1_78, %c0_79] : memref<18x18x4xf32, #tpu.memory_space<vmem>>, vector<16x16x4xf32>
    tpu.vector_store %arg9[%c1_77, %c1_78, %c0_79], %119 {strides = array<i32>} : memref<18x18x4xf32, #tpu.memory_space<vmem>>, vector<16x16x4xf32>,
    %c0_80 = arith.constant 0 : index
    %c0_81 = arith.constant 0 : index
    %c0_82 = arith.constant 0 : index
    %121 = vector.load %arg9[%c0_80, %c0_81, %c0_82] : memref<18x18x4xf32, #tpu.memory_space<vmem>>, vector<18x18x4xf32>
    %122 = vector.extract_strided_slice %121 {offsets = [0, 0, 0], sizes = [16, 16, 4], strides = [1, 1, 1]} : vector<18x18x4xf32> to vector<16x16x4xf32>
    %123 = arith.truncf %122 : vector<16x16x4xf32> to vector<16x16x4xbf16>
    %c0_83 = arith.constant 0 : index
    %c0_84 = arith.constant 0 : index
    %c0_85 = arith.constant 0 : index
    %124 = vector.load %arg10[%c0_83, %c0_84, %c0_85] : memref<16x16x36xbf16, #tpu.memory_space<vmem>>, vector<16x16x4xbf16>
    tpu.vector_store %arg10[%c0_83, %c0_84, %c0_85], %123 {strides = array<i32>} : memref<16x16x36xbf16, #tpu.memory_space<vmem>>, vector<16x16x4xbf16>,
    %125 = vector.extract_strided_slice %121 {offsets = [0, 1, 0], sizes = [16, 16, 4], strides = [1, 1, 1]} : vector<18x18x4xf32> to vector<16x16x4xf32>
    %126 = arith.truncf %125 : vector<16x16x4xf32> to vector<16x16x4xbf16>
    %c0_86 = arith.constant 0 : index
    %c0_87 = arith.constant 0 : index
    %c4_88 = arith.constant 4 : index
    %127 = vector.load %arg10[%c0_86, %c0_87, %c4_88] : memref<16x16x36xbf16, #tpu.memory_space<vmem>>, vector<16x16x4xbf16>
    tpu.vector_store %arg10[%c0_86, %c0_87, %c4_88], %126 {strides = array<i32>} : memref<16x16x36xbf16, #tpu.memory_space<vmem>>, vector<16x16x4xbf16>,
    %128 = vector.extract_strided_slice %121 {offsets = [0, 2, 0], sizes = [16, 16, 4], strides = [1, 1, 1]} : vector<18x18x4xf32> to vector<16x16x4xf32>
    %129 = arith.truncf %128 : vector<16x16x4xf32> to vector<16x16x4xbf16>
    %c0_89 = arith.constant 0 : index
    %c0_90 = arith.constant 0 : index
    %c8_91 = arith.constant 8 : index
    %130 = vector.load %arg10[%c0_89, %c0_90, %c8_91] : memref<16x16x36xbf16, #tpu.memory_space<vmem>>, vector<16x16x4xbf16>
    tpu.vector_store %arg10[%c0_89, %c0_90, %c8_91], %129 {strides = array<i32>} : memref<16x16x36xbf16, #tpu.memory_space<vmem>>, vector<16x16x4xbf16>,
    %131 = vector.extract_strided_slice %121 {offsets = [1, 0, 0], sizes = [16, 16, 4], strides = [1, 1, 1]} : vector<18x18x4xf32> to vector<16x16x4xf32>
    %132 = arith.truncf %131 : vector<16x16x4xf32> to vector<16x16x4xbf16>
    %c0_92 = arith.constant 0 : index
    %c0_93 = arith.constant 0 : index
    %c12_94 = arith.constant 12 : index
    %133 = vector.load %arg10[%c0_92, %c0_93, %c12_94] : memref<16x16x36xbf16, #tpu.memory_space<vmem>>, vector<16x16x4xbf16>
    tpu.vector_store %arg10[%c0_92, %c0_93, %c12_94], %132 {strides = array<i32>} : memref<16x16x36xbf16, #tpu.memory_space<vmem>>, vector<16x16x4xbf16>,
    %134 = vector.extract_strided_slice %121 {offsets = [1, 1, 0], sizes = [16, 16, 4], strides = [1, 1, 1]} : vector<18x18x4xf32> to vector<16x16x4xf32>
    %135 = arith.truncf %134 : vector<16x16x4xf32> to vector<16x16x4xbf16>
    %c0_95 = arith.constant 0 : index
    %c0_96 = arith.constant 0 : index
    %c16_97 = arith.constant 16 : index
    %136 = vector.load %arg10[%c0_95, %c0_96, %c16_97] : memref<16x16x36xbf16, #tpu.memory_space<vmem>>, vector<16x16x4xbf16>
    tpu.vector_store %arg10[%c0_95, %c0_96, %c16_97], %135 {strides = array<i32>} : memref<16x16x36xbf16, #tpu.memory_space<vmem>>, vector<16x16x4xbf16>,
    %137 = vector.extract_strided_slice %121 {offsets = [1, 2, 0], sizes = [16, 16, 4], strides = [1, 1, 1]} : vector<18x18x4xf32> to vector<16x16x4xf32>
    %138 = arith.truncf %137 : vector<16x16x4xf32> to vector<16x16x4xbf16>
    %c0_98 = arith.constant 0 : index
    %c0_99 = arith.constant 0 : index
    %c20_100 = arith.constant 20 : index
    %139 = vector.load %arg10[%c0_98, %c0_99, %c20_100] : memref<16x16x36xbf16, #tpu.memory_space<vmem>>, vector<16x16x4xbf16>
    tpu.vector_store %arg10[%c0_98, %c0_99, %c20_100], %138 {strides = array<i32>} : memref<16x16x36xbf16, #tpu.memory_space<vmem>>, vector<16x16x4xbf16>,
    %140 = vector.extract_strided_slice %121 {offsets = [2, 0, 0], sizes = [16, 16, 4], strides = [1, 1, 1]} : vector<18x18x4xf32> to vector<16x16x4xf32>
    %141 = arith.truncf %140 : vector<16x16x4xf32> to vector<16x16x4xbf16>
    %c0_101 = arith.constant 0 : index
    %c0_102 = arith.constant 0 : index
    %c24_103 = arith.constant 24 : index
    %142 = vector.load %arg10[%c0_101, %c0_102, %c24_103] : memref<16x16x36xbf16, #tpu.memory_space<vmem>>, vector<16x16x4xbf16>
    tpu.vector_store %arg10[%c0_101, %c0_102, %c24_103], %141 {strides = array<i32>} : memref<16x16x36xbf16, #tpu.memory_space<vmem>>, vector<16x16x4xbf16>,
    %143 = vector.extract_strided_slice %121 {offsets = [2, 1, 0], sizes = [16, 16, 4], strides = [1, 1, 1]} : vector<18x18x4xf32> to vector<16x16x4xf32>
    %144 = arith.truncf %143 : vector<16x16x4xf32> to vector<16x16x4xbf16>
    %c0_104 = arith.constant 0 : index
    %c0_105 = arith.constant 0 : index
    %c28_106 = arith.constant 28 : index
    %145 = vector.load %arg10[%c0_104, %c0_105, %c28_106] : memref<16x16x36xbf16, #tpu.memory_space<vmem>>, vector<16x16x4xbf16>
    tpu.vector_store %arg10[%c0_104, %c0_105, %c28_106], %144 {strides = array<i32>} : memref<16x16x36xbf16, #tpu.memory_space<vmem>>, vector<16x16x4xbf16>,
    %146 = vector.extract_strided_slice %121 {offsets = [2, 2, 0], sizes = [16, 16, 4], strides = [1, 1, 1]} : vector<18x18x4xf32> to vector<16x16x4xf32>
    %147 = arith.truncf %146 : vector<16x16x4xf32> to vector<16x16x4xbf16>
    %c0_107 = arith.constant 0 : index
    %c0_108 = arith.constant 0 : index
    %c32_109 = arith.constant 32 : index
    %148 = vector.load %arg10[%c0_107, %c0_108, %c32_109] : memref<16x16x36xbf16, #tpu.memory_space<vmem>>, vector<16x16x4xbf16>
    tpu.vector_store %arg10[%c0_107, %c0_108, %c32_109], %147 {strides = array<i32>} : memref<16x16x36xbf16, #tpu.memory_space<vmem>>, vector<16x16x4xbf16>,
    %c0_110 = arith.constant 0 : index
    %c0_111 = arith.constant 0 : index
    %c0_112 = arith.constant 0 : index
    %149 = vector.load %arg10[%c0_110, %c0_111, %c0_112] : memref<16x16x36xbf16, #tpu.memory_space<vmem>>, vector<16x16x36xbf16>
    %150 = vector.shape_cast %149 : vector<16x16x36xbf16> to vector<256x36xbf16>
    %151 = vector.extract_strided_slice %65 {offsets = [1, 0, 0], sizes = [1, 8, 36], strides = [1, 1, 1]} : vector<2x8x36xbf16> to vector<1x8x36xbf16>
    %152 = vector.shape_cast %151 : vector<1x8x36xbf16> to vector<8x36xbf16>
    %cst_113 = arith.constant dense<0.000000e+00> : vector<8x256xf32>
    %153 = tpu.matmul %152, %150, %cst_113 {dimension_numbers = #tpu.dot_dimension_numbers<[1], [1], [0], [0], [0, 0, 1, 0], [], []>} : vector<8x36xbf16>, vector<256x36xbf16>, vector<8x256xf32> -> vector<8x256xf32>
    %154 = vector.extract_strided_slice %67 {offsets = [0, 1], sizes = [8, 1], strides = [1, 1]} : vector<8x2xf32> to vector<8x1xf32>
    %155 = vector.broadcast %154 : vector<8x1xf32> to vector<8x256xf32>
    %156 = arith.addf %153, %155 : vector<8x256xf32>
    %c1_114 = arith.constant 1 : index
    %c0_115 = arith.constant 0 : index
    %c0_116 = arith.constant 0 : index
    %157 = vector.load %arg8[%c1_114, %c0_115, %c0_116] : memref<2x8x256xf32, #tpu.memory_space<vmem>>, vector<1x8x256xf32>
    %158 = vector.shape_cast %157 : vector<1x8x256xf32> to vector<8x256xf32>
    %159 = vector.shape_cast %156 : vector<8x256xf32> to vector<1x8x256xf32>
    tpu.vector_store %arg8[%c1_114, %c0_115, %c0_116], %159 {strides = array<i32>} : memref<2x8x256xf32, #tpu.memory_space<vmem>>, vector<1x8x256xf32>,
    return
  }
  func.func @transform_0(%arg0: i32) -> (i32, i32, i32, i32) {
    %c0_i32 = arith.constant 0 : i32
    %c0_i32_0 = arith.constant 0 : i32
    %c0_i32_1 = arith.constant 0 : i32
    %c0_i32_2 = arith.constant 0 : i32
    return %arg0, %c0_i32, %c0_i32_0, %c0_i32_1 : i32, i32, i32, i32
  }
  func.func @transform_1(%arg0: i32) -> (i32, i32) {
    %c0_i32 = arith.constant 0 : i32
    %c0_i32_0 = arith.constant 0 : i32
    %c0_i32_1 = arith.constant 0 : i32
    return %c0_i32, %c0_i32_0 : i32, i32
  }
  func.func @transform_2(%arg0: i32) -> (i32, i32) {
    %c0_i32 = arith.constant 0 : i32
    %c0_i32_0 = arith.constant 0 : i32
    %c0_i32_1 = arith.constant 0 : i32
    return %c0_i32, %c0_i32_0 : i32, i32
  }
  func.func @transform_3(%arg0: i32) -> (i32, i32) {
    %c0_i32 = arith.constant 0 : i32
    %c0_i32_0 = arith.constant 0 : i32
    %c0_i32_1 = arith.constant 0 : i32
    return %c0_i32, %c0_i32_0 : i32, i32
  }
  func.func @transform_4(%arg0: i32) -> (i32, i32) {
    %c0_i32 = arith.constant 0 : i32
    %c0_i32_0 = arith.constant 0 : i32
    %c0_i32_1 = arith.constant 0 : i32
    return %c0_i32, %c0_i32_0 : i32, i32
  }
  func.func @transform_5(%arg0: i32) -> (i32, i32, i32) {
    %c0_i32 = arith.constant 0 : i32
    %c0_i32_0 = arith.constant 0 : i32
    %c0_i32_1 = arith.constant 0 : i32
    %c0_i32_2 = arith.constant 0 : i32
    return %c0_i32, %c0_i32_0, %c0_i32_1 : i32, i32, i32
  }
  func.func @transform_6(%arg0: i32) -> (i32, i32) {
    %c0_i32 = arith.constant 0 : i32
    %c0_i32_0 = arith.constant 0 : i32
    %c0_i32_1 = arith.constant 0 : i32
    return %c0_i32, %c0_i32_0 : i32, i32
  }
  func.func @transform_7(%arg0: i32) -> (i32, i32, i32) {
    %c0_i32 = arith.constant 0 : i32
    %c0_i32_0 = arith.constant 0 : i32
    %c0_i32_1 = arith.constant 0 : i32
    return %arg0, %c0_i32, %c0_i32_0 : i32, i32, i32
  }
}

</mosaic_0001>

<llo_original>
// kernel: tpu_custom_call.1
$region0: #{tpu_custom_call.1}
  #allocation0 [shape = 'u32[]', space=smem, size = 0x4, offset = 0x4, fixed_abs, tag = 'smem constant byte address 0x4 - core index']
  #allocation1 [shape = 'u32[72,128]{1,0:T(1,128)}', space=vmem, size = 0x9000, scoped, tag = 'internal scratch']
  #allocation2 [shape = 'f32[18,18,4]{2,1,0:T(8,128)}', space=vmem, size = 0x36000, scoped, tag = 'scratch operand']
  #allocation3 [shape = 'bf16[16,16,36]{2,1,0:T(8,128)(2,1)}', space=vmem, size = 0x10000, scoped, tag = 'scratch operand']
  %s0 = inlined_call_operand.vmem [shape: f32[2,16,16,4], index: 0, kind: input, shape index: {}]
  %s1 = inlined_call_operand.vmem [shape: f32[4,4], index: 1, kind: input, shape index: {}]
  %s2 = inlined_call_operand.vmem [shape: f32[1,4], index: 2, kind: input, shape index: {}]
  %s3 = inlined_call_operand.vmem [shape: f32[4,4], index: 3, kind: input, shape index: {}]
  %s4 = inlined_call_operand.vmem [shape: f32[1,4], index: 4, kind: input, shape index: {}]
  %s5 = inlined_call_operand.vmem [shape: bf16[4,8,36], index: 5, kind: input, shape index: {}]
  %s6 = inlined_call_operand.vmem [shape: f32[8,4], index: 6, kind: input, shape index: {}]
  %s7 = inlined_call_operand.hbm [shape: f32[2,8,256], index: 7, kind: output, shape index: {}]
  %s8 = sld [smem:[#allocation0]]
  $region38: #{tpu_custom_call.1} parent=0
    _
  %s10 = ssub.s32 1, %s8
  %s11 = scalar_select 0, %s10, %s8
  $region1: #{tpu_custom_call.1} parent=0
    #allocation4 [shape = 'u8[16384]{0}', space=vmem, size = 0x4000, scoped, tag = 'output window, operand 0, single buffered']
    #allocation5 [shape = 's32[1]{0}', space=sflag, size = 0x4, scoped, tag = 'scoped memory for tpu_custom_call.1']
    %12 = vsyncpa [#allocation5], 0
    // Predicated region
    $region2: #{tpu_custom_call.1} parent=1 // pred_check
      _
    $region3: #{tpu_custom_call.1} parent=1 // pred_check_branch
      %14 = sbr.rel (0) target = $region5
    $region4: #{tpu_custom_call.1} parent=1 // pred_region
      _
    $region5: #{tpu_custom_call.1} parent=1 // pred_fallthru
      _
    // Predicated region
    $region6: #{tpu_custom_call.1} parent=1 // pred_check
      _
    $region7: #{tpu_custom_call.1} parent=1 // pred_check_branch
      %16 = sbr.rel (0) target = $region9
    $region8: #{tpu_custom_call.1} parent=1 // pred_region
      _
    $region9: #{tpu_custom_call.1} parent=1 // pred_fallthru
      _
    // Predicated region
    $region10: #{tpu_custom_call.1} parent=1 // pred_check
      _
    $region11: #{tpu_custom_call.1} parent=1 // pred_check_branch
      %18 = sbr.rel (0) target = $region13
    $region12: #{tpu_custom_call.1} parent=1 // pred_region
      _
    $region13: #{tpu_custom_call.1} parent=1 // pred_fallthru
      _
    // Predicated region
    $region14: #{tpu_custom_call.1} parent=1 // pred_check
      _
    $region15: #{tpu_custom_call.1} parent=1 // pred_check_branch
      %20 = sbr.rel (0) target = $region17
    $region16: #{tpu_custom_call.1} parent=1 // pred_region
      _
    $region17: #{tpu_custom_call.1} parent=1 // pred_fallthru
      _
    // Predicated region
    $region18: #{tpu_custom_call.1} parent=1 // pred_check
      _
    $region19: #{tpu_custom_call.1} parent=1 // pred_check_branch
      %22 = sbr.rel (0) target = $region21
    $region20: #{tpu_custom_call.1} parent=1 // pred_region
      _
    $region21: #{tpu_custom_call.1} parent=1 // pred_fallthru
      _
    // Predicated region
    $region22: #{tpu_custom_call.1} parent=1 // pred_check
      _
    $region23: #{tpu_custom_call.1} parent=1 // pred_check_branch
      %24 = sbr.rel (0) target = $region25
    $region24: #{tpu_custom_call.1} parent=1 // pred_region
      _
    $region25: #{tpu_custom_call.1} parent=1 // pred_fallthru
      _
    // Predicated region
    $region26: #{tpu_custom_call.1} parent=1 // pred_check
      _
    $region27: #{tpu_custom_call.1} parent=1 // pred_check_branch
      %26 = sbr.rel (0) target = $region29
    $region28: #{tpu_custom_call.1} parent=1 // pred_region
      _
    $region29: #{tpu_custom_call.1} parent=1 // pred_fallthru
      _
    %v27 = vld [vmem:[%s0] sm:$0xff]
    %v28 = vld [vmem:[%s0 + $0x8] sm:$0xff]
    %v29 = vld [vmem:[%s0 + $0x10] sm:$0xff]
    %v30 = vld [vmem:[%s0 + $0x18] sm:$0xff]
    %v31 = vld [vmem:[%s0 + $0x20] sm:$0xff]
    %v32 = vld [vmem:[%s0 + $0x28] sm:$0xff]
    %v33 = vld [vmem:[%s0 + $0x30] sm:$0xff]
    %v34 = vld [vmem:[%s0 + $0x38] sm:$0xff]
    %v35 = vld [vmem:[%s0 + $0x40] sm:$0xff]
    %v36 = vld [vmem:[%s0 + $0x48] sm:$0xff]
    %v37 = vld [vmem:[%s0 + $0x50] sm:$0xff]
    %v38 = vld [vmem:[%s0 + $0x58] sm:$0xff]
    %v39 = vld [vmem:[%s0 + $0x60] sm:$0xff]
    %v40 = vld [vmem:[%s0 + $0x68] sm:$0xff]
    %v41 = vld [vmem:[%s0 + $0x70] sm:$0xff]
    %v42 = vld [vmem:[%s0 + $0x78] sm:$0xff]
    %v43 = vld [vmem:[%s0 + $0x80] sm:$0xff]
    %v44 = vld [vmem:[%s0 + $0x88] sm:$0xff]
    %v45 = vld [vmem:[%s0 + $0x90] sm:$0xff]
    %v46 = vld [vmem:[%s0 + $0x98] sm:$0xff]
    %v47 = vld [vmem:[%s0 + $0xa0] sm:$0xff]
    %v48 = vld [vmem:[%s0 + $0xa8] sm:$0xff]
    %v49 = vld [vmem:[%s0 + $0xb0] sm:$0xff]
    %v50 = vld [vmem:[%s0 + $0xb8] sm:$0xff]
    %v51 = vld [vmem:[%s0 + $0xc0] sm:$0xff]
    %v52 = vld [vmem:[%s0 + $0xc8] sm:$0xff]
    %v53 = vld [vmem:[%s0 + $0xd0] sm:$0xff]
    %v54 = vld [vmem:[%s0 + $0xd8] sm:$0xff]
    %v55 = vld [vmem:[%s0 + $0xe0] sm:$0xff]
    %v56 = vld [vmem:[%s0 + $0xe8] sm:$0xff]
    %v57 = vld [vmem:[%s0 + $0xf0] sm:$0xff]
    %v58 = vld [vmem:[%s0 + $0xf8] sm:$0xff]
    %v59 = vld [vmem:[%s0 + $0x100] sm:$0xff]
    %v60 = vld [vmem:[%s0 + $0x108] sm:$0xff]
    %v61 = vld [vmem:[%s0 + $0x110] sm:$0xff]
    %v62 = vld [vmem:[%s0 + $0x118] sm:$0xff]
    %v63 = vld [vmem:[%s0 + $0x120] sm:$0xff]
    %v64 = vld [vmem:[%s0 + $0x128] sm:$0xff]
    %v65 = vld [vmem:[%s0 + $0x130] sm:$0xff]
    %v66 = vld [vmem:[%s0 + $0x138] sm:$0xff]
    %v67 = vld [vmem:[%s0 + $0x140] sm:$0xff]
    %v68 = vld [vmem:[%s0 + $0x148] sm:$0xff]
    %v69 = vld [vmem:[%s0 + $0x150] sm:$0xff]
    %v70 = vld [vmem:[%s0 + $0x158] sm:$0xff]
    %v71 = vld [vmem:[%s0 + $0x160] sm:$0xff]
    %v72 = vld [vmem:[%s0 + $0x168] sm:$0xff]
    %v73 = vld [vmem:[%s0 + $0x170] sm:$0xff]
    %v74 = vld [vmem:[%s0 + $0x178] sm:$0xff]
    %v75 = vld [vmem:[%s0 + $0x180] sm:$0xff]
    %v76 = vld [vmem:[%s0 + $0x188] sm:$0xff]
    %v77 = vld [vmem:[%s0 + $0x190] sm:$0xff]
    %v78 = vld [vmem:[%s0 + $0x198] sm:$0xff]
    %v79 = vld [vmem:[%s0 + $0x1a0] sm:$0xff]
    %v80 = vld [vmem:[%s0 + $0x1a8] sm:$0xff]
    %v81 = vld [vmem:[%s0 + $0x1b0] sm:$0xff]
    %v82 = vld [vmem:[%s0 + $0x1b8] sm:$0xff]
    %v83 = vld [vmem:[%s0 + $0x1c0] sm:$0xff]
    %v84 = vld [vmem:[%s0 + $0x1c8] sm:$0xff]
    %v85 = vld [vmem:[%s0 + $0x1d0] sm:$0xff]
    %v86 = vld [vmem:[%s0 + $0x1d8] sm:$0xff]
    %v87 = vld [vmem:[%s0 + $0x1e0] sm:$0xff]
    %v88 = vld [vmem:[%s0 + $0x1e8] sm:$0xff]
    %v89 = vld [vmem:[%s0 + $0x1f0] sm:$0xff]
    %v90 = vld [vmem:[%s0 + $0x1f8] sm:$0xff]
    %vm91 = vcmask 31744
    %v92 = vsel %vm91, %v27, 0.0
    %v93 = vsel %vm91, %v29, 0.0
    %v94 = vadd.f32 %v92, %v93
    %v95 = vsel %vm91, %v31, 0.0
    %v96 = vadd.f32 %v94, %v95
    %v97 = vsel %vm91, %v33, 0.0
    %v98 = vadd.f32 %v96, %v97
    %v99 = vsel %vm91, %v35, 0.0
    %v100 = vadd.f32 %v98, %v99
    %v101 = vsel %vm91, %v37, 0.0
    %v102 = vadd.f32 %v100, %v101
    %v103 = vsel %vm91, %v39, 0.0
    %v104 = vadd.f32 %v102, %v103
    %v105 = vsel %vm91, %v41, 0.0
    %v106 = vadd.f32 %v104, %v105
    %v107 = vsel %vm91, %v43, 0.0
    %v108 = vadd.f32 %v106, %v107
    %v109 = vsel %vm91, %v45, 0.0
    %v110 = vadd.f32 %v108, %v109
    %v111 = vsel %vm91, %v47, 0.0
    %v112 = vadd.f32 %v110, %v111
    %v113 = vsel %vm91, %v49, 0.0
    %v114 = vadd.f32 %v112, %v113
    %v115 = vsel %vm91, %v51, 0.0
    %v116 = vadd.f32 %v114, %v115
    %v117 = vsel %vm91, %v53, 0.0
    %v118 = vadd.f32 %v116, %v117
    %v119 = vsel %vm91, %v55, 0.0
    %v120 = vadd.f32 %v118, %v119
    %v121 = vsel %vm91, %v57, 0.0
    %v122 = vadd.f32 %v120, %v121
    %v123 = vsel %vm91, %v28, 0.0
    %v124 = vsel %vm91, %v30, 0.0
    %v125 = vadd.f32 %v123, %v124
    %v126 = vsel %vm91, %v32, 0.0
    %v127 = vadd.f32 %v125, %v126
    %v128 = vsel %vm91, %v34, 0.0
    %v129 = vadd.f32 %v127, %v128
    %v130 = vsel %vm91, %v36, 0.0
    %v131 = vadd.f32 %v129, %v130
    %v132 = vsel %vm91, %v38, 0.0
    %v133 = vadd.f32 %v131, %v132
    %v134 = vsel %vm91, %v40, 0.0
    %v135 = vadd.f32 %v133, %v134
    %v136 = vsel %vm91, %v42, 0.0
    %v137 = vadd.f32 %v135, %v136
    %v138 = vsel %vm91, %v44, 0.0
    %v139 = vadd.f32 %v137, %v138
    %v140 = vsel %vm91, %v46, 0.0
    %v141 = vadd.f32 %v139, %v140
    %v142 = vsel %vm91, %v48, 0.0
    %v143 = vadd.f32 %v141, %v142
    %v144 = vsel %vm91, %v50, 0.0
    %v145 = vadd.f32 %v143, %v144
    %v146 = vsel %vm91, %v52, 0.0
    %v147 = vadd.f32 %v145, %v146
    %v148 = vsel %vm91, %v54, 0.0
    %v149 = vadd.f32 %v147, %v148
    %v150 = vsel %vm91, %v56, 0.0
    %v151 = vadd.f32 %v149, %v150
    %v152 = vsel %vm91, %v58, 0.0
    %v153 = vadd.f32 %v151, %v152
    %v154 = vsel %vm91, %v59, 0.0
    %v155 = vsel %vm91, %v61, 0.0
    %v156 = vadd.f32 %v154, %v155
    %v157 = vsel %vm91, %v63, 0.0
    %v158 = vadd.f32 %v156, %v157
    %v159 = vsel %vm91, %v65, 0.0
    %v160 = vadd.f32 %v158, %v159
    %v161 = vsel %vm91, %v67, 0.0
    %v162 = vadd.f32 %v160, %v161
    %v163 = vsel %vm91, %v69, 0.0
    %v164 = vadd.f32 %v162, %v163
    %v165 = vsel %vm91, %v71, 0.0
    %v166 = vadd.f32 %v164, %v165
    %v167 = vsel %vm91, %v73, 0.0
    %v168 = vadd.f32 %v166, %v167
    %v169 = vsel %vm91, %v75, 0.0
    %v170 = vadd.f32 %v168, %v169
    %v171 = vsel %vm91, %v77, 0.0
    %v172 = vadd.f32 %v170, %v171
    %v173 = vsel %vm91, %v79, 0.0
    %v174 = vadd.f32 %v172, %v173
    %v175 = vsel %vm91, %v81, 0.0
    %v176 = vadd.f32 %v174, %v175
    %v177 = vsel %vm91, %v83, 0.0
    %v178 = vadd.f32 %v176, %v177
    %v179 = vsel %vm91, %v85, 0.0
    %v180 = vadd.f32 %v178, %v179
    %v181 = vsel %vm91, %v87, 0.0
    %v182 = vadd.f32 %v180, %v181
    %v183 = vsel %vm91, %v89, 0.0
    %v184 = vadd.f32 %v182, %v183
    %v185 = vsel %vm91, %v60, 0.0
    %v186 = vsel %vm91, %v62, 0.0
    %v187 = vadd.f32 %v185, %v186
    %v188 = vsel %vm91, %v64, 0.0
    %v189 = vadd.f32 %v187, %v188
    %v190 = vsel %vm91, %v66, 0.0
    %v191 = vadd.f32 %v189, %v190
    %v192 = vsel %vm91, %v68, 0.0
    %v193 = vadd.f32 %v191, %v192
    %v194 = vsel %vm91, %v70, 0.0
    %v195 = vadd.f32 %v193, %v194
    %v196 = vsel %vm91, %v72, 0.0
    %v197 = vadd.f32 %v195, %v196
    %v198 = vsel %vm91, %v74, 0.0
    %v199 = vadd.f32 %v197, %v198
    %v200 = vsel %vm91, %v76, 0.0
    %v201 = vadd.f32 %v199, %v200
    %v202 = vsel %vm91, %v78, 0.0
    %v203 = vadd.f32 %v201, %v202
    %v204 = vsel %vm91, %v80, 0.0
    %v205 = vadd.f32 %v203, %v204
    %v206 = vsel %vm91, %v82, 0.0
    %v207 = vadd.f32 %v205, %v206
    %v208 = vsel %vm91, %v84, 0.0
    %v209 = vadd.f32 %v207, %v208
    %v210 = vsel %vm91, %v86, 0.0
    %v211 = vadd.f32 %v209, %v210
    %v212 = vsel %vm91, %v88, 0.0
    %v213 = vadd.f32 %v211, %v212
    %v214 = vsel %vm91, %v90, 0.0
    %v215 = vadd.f32 %v213, %v214
    %v216 = vsel %vm91, %v122, 0.0
    %v217 = vsel %vm91, %v153, 0.0
    %v218 = vadd.f32 %v216, %v217
    %v219 = vrot.slane %v218, 4
    %v220 = vadd.f32 %v218, %v219
    %v221 = vrot.slane %v220, 2
    %v222 = vadd.f32 %v220, %v221
    %v223 = vrot.slane %v222, 1
    %v224 = vadd.f32 %v222, %v223
    %v225 = vsel %vm91, %v184, 0.0
    %v226 = vsel %vm91, %v215, 0.0
    %v227 = vadd.f32 %v225, %v226
    %v228 = vrot.slane %v227, 4
    %v229 = vadd.f32 %v227, %v228
    %v230 = vrot.slane %v229, 2
    %v231 = vadd.f32 %v229, %v230
    %v232 = vrot.slane %v231, 1
    %v233 = vadd.f32 %v231, %v232
    %v234 = vmul.f32 %v224, 0.00390625
    %v235 = vmul.f32 %v233, 0.00390625
    %v236 = vld [vmem:[%s1] sm:$0xf]
    %v237 = vld [vmem:[%s2] sm:$0x1]
    %v239 = vperm.slane %v237, 0
    %vm243 = vcmask 1041409
    %v244 = vsel %vm243, %v235, %v234
    %v245 = vsel %vm91, %v244, 0
    %vm247 = vcmask 1043456
    %v249 = vsel %vm247, %v236, 0
    %251 = vmatpush.msra.mxu0 0.0
    %252 = vmatpush.msra.mxu0 0.0
    %253 = vmatpush.msra.mxu0 0.0
    %254 = vmatpush.msra.mxu0 0.0
    %255 = vmatpush.msra.mxu0 0.0
    %256 = vmatpush.msra.mxu0 0.0
    %257 = vmatpush.msra.mxu0 0.0
    %258 = vmatpush.msra.mxu0 0.0
    %259 = vmatpush.msra.mxu0 0.0
    %260 = vmatpush.msra.mxu0 0.0
    %261 = vmatpush.msra.mxu0 0.0
    %262 = vmatpush.msra.mxu0 0.0
    %263 = vmatpush.msra.mxu0 0.0
    %264 = vmatpush.msra.mxu0 0.0
    %265 = vmatpush.msra.mxu0 0.0
    %266 = vmatpush.msra.mxu0 %v249
    %267 = vmatmul.f32.gmra.mxu0 %v245
    %v268 = vpop.f32.mrf.mxu0
    %v269 = vadd.f32 %v239, %v268
    %270 = vdwg.mxu0
    %v271 = vmax.f32 %v269, 0.0
    %v272 = vld [vmem:[%s3] sm:$0xf]
    %v273 = vld [vmem:[%s4] sm:$0x1]
    %v275 = vperm.slane %v273, 0
    %v278 = vsel %vm91, %v271, 0
    %v281 = vsel %vm247, %v272, 0
    %283 = vmatpush.msra.mxu0 0.0
    %284 = vmatpush.msra.mxu0 0.0
    %285 = vmatpush.msra.mxu0 0.0
    %286 = vmatpush.msra.mxu0 0.0
    %287 = vmatpush.msra.mxu0 0.0
    %288 = vmatpush.msra.mxu0 0.0
    %289 = vmatpush.msra.mxu0 0.0
    %290 = vmatpush.msra.mxu0 0.0
    %291 = vmatpush.msra.mxu0 0.0
    %292 = vmatpush.msra.mxu0 0.0
    %293 = vmatpush.msra.mxu0 0.0
    %294 = vmatpush.msra.mxu0 0.0
    %295 = vmatpush.msra.mxu0 0.0
    %296 = vmatpush.msra.mxu0 0.0
    %297 = vmatpush.msra.mxu0 0.0
    %298 = vmatpush.msra.mxu0 %v281
    %299 = vmatmul.f32.gmra.mxu0 %v278
    %v300 = vpop.f32.mrf.mxu0
    %v301 = vadd.f32 %v275, %v300
    %302 = vdwg.mxu0
    %vm303 = vcmask 25600
    %v304 = vsel %vm303, %v301, -inf
    %305 = vmax.xlane.f32.xlu0 %v304
    %v306 = vpop.xlane.xlu0 %305
    %v307 = vsub.f32 %v301, %v306
    %v308 = vmul.f32 %v307, 1.442695
    %v309 = vpow.pop %v308
    %v310 = vsel %vm303, %v309, 0.0
    %311 = vadd.xlane.f32.xlu0 %v310
    %v312 = vpop.xlane.xlu0 %311
    %v313 = vrcp.pop %v312
    %v314 = vmul.f32 %v312, %v313
    %v315 = vsub.f32 1.0, %v314
    %v316 = vmul.f32 %v313, %v315
    %v317 = vadd.f32 %v313, %v316
    %vm318 = vweird.f32 %v312
    %vm319 = vweird.f32 %v313
    %vm320 = vmor %vm318, %vm319
    %v321 = vsel %vm320, %v313, %v317
    %v322 = vand.u32 2147483647, %v312
    %vm323 = vcmp.eq.f32.partialorder %v322, 8.507059e+37
    %v324 = vand.u32 %v312, 2147483648
    %v325 = vor.u32 1.1754944e-38, %v324
    %v326 = vsel %vm323, %v325, %v321
    %v327 = vmul.f32 %v309, %v326
    %v329 = vrot.slane %v327, 1
    %v330 = vld [vmem:[%s5] sm:$0xf]
    %v331 = vunpack.c.l.bf16 %v330
    %v332 = vperm.slane %v327, 0
    %v333 = vperm.slane %v329, 0
    %334 = vset.pattern.permute.xlu0 0
    %335 = vperm.xlu0 %334, %v332
    %v336 = vpop.permute.xlu0 %335
    %338 = vset.pattern.permute.xlu0 0
    %339 = vperm.xlu0 %338, %v333
    %v340 = vpop.permute.xlu0 %339
    %v342 = vmul.f32 %v336, %v331
    %v343 = vmul.f32 %v340, %v331
    %s344 = scalar_lea.vmem %s5, 4
    %v345 = vld [vmem:[%s344] sm:$0xf]
    %v346 = vunpack.c.l.bf16 %v345
    %347 = vset.pattern.permute.xlu0 1
    %348 = vperm.xlu0 %347, %v332
    %v349 = vpop.permute.xlu0 %348
    %351 = vset.pattern.permute.xlu0 1
    %352 = vperm.xlu0 %351, %v333
    %v353 = vpop.permute.xlu0 %352
    %v355 = vmul.f32 %v349, %v346
    %v356 = vmul.f32 %v353, %v346
    %v357 = vadd.f32 %v342, %v355
    %v358 = vadd.f32 %v343, %v356
    %s359 = scalar_lea.vmem %s5, 8
    %v360 = vld [vmem:[%s359] sm:$0xf]
    %v361 = vunpack.c.l.bf16 %v360
    %362 = vset.pattern.permute.xlu0 2
    %363 = vperm.xlu0 %362, %v332
    %v364 = vpop.permute.xlu0 %363
    %366 = vset.pattern.permute.xlu0 2
    %367 = vperm.xlu0 %366, %v333
    %v368 = vpop.permute.xlu0 %367
    %v370 = vmul.f32 %v364, %v361
    %v371 = vmul.f32 %v368, %v361
    %v372 = vadd.f32 %v357, %v370
    %v373 = vadd.f32 %v358, %v371
    %s374 = scalar_lea.vmem %s5, 12
    %v375 = vld [vmem:[%s374] sm:$0xf]
    %v376 = vunpack.c.l.bf16 %v375
    %377 = vset.pattern.permute.xlu0 3
    %378 = vperm.xlu0 %377, %v332
    %v379 = vpop.permute.xlu0 %378
    %381 = vset.pattern.permute.xlu0 3
    %382 = vperm.xlu0 %381, %v333
    %v383 = vpop.permute.xlu0 %382
    %v385 = vmul.f32 %v379, %v376
    %v386 = vmul.f32 %v383, %v376
    %v387 = vadd.f32 %v372, %v385
    %v388 = vadd.f32 %v373, %v386
    %v389 = vpack.c.bf16 %v387, %v387
    %v390 = vpack.c.bf16 %v388, %v388
    %v391 = vld [vmem:[%s6] sm:$0xff]
    %v393 = vsel %vm91, %v391, 0
    %v395 = vsel %vm91, %v327, 0
    %397 = vmatpush.xpose.msra.mxu0 0.0
    %398 = vmatpush.xpose.msra.mxu0 0.0
    %399 = vmatpush.xpose.msra.mxu0 0.0
    %400 = vmatpush.xpose.msra.mxu0 0.0
    %401 = vmatpush.xpose.msra.mxu0 0.0
    %402 = vmatpush.xpose.msra.mxu0 0.0
    %403 = vmatpush.xpose.msra.mxu0 0.0
    %404 = vmatpush.xpose.msra.mxu0 0.0
    %405 = vmatpush.xpose.msra.mxu0 0.0
    %406 = vmatpush.xpose.msra.mxu0 0.0
    %407 = vmatpush.xpose.msra.mxu0 0.0
    %408 = vmatpush.xpose.msra.mxu0 0.0
    %409 = vmatpush.xpose.msra.mxu0 0.0
    %410 = vmatpush.xpose.msra.mxu0 0.0
    %411 = vmatpush.xpose.msra.mxu0 0.0
    %412 = vmatpush.xpose.msra.mxu0 %v395
    %413 = vmatmul.f32.gmra.mxu0 %v393
    %v414 = vpop.f32.mrf.mxu0
    %v415 = vadd.f32 0.0, %v414
    %416 = vdwg.mxu0
    %417 = vst.msk [vmem:[#allocation2] sm:$0xff] %vm91, 0.0
    %418 = vst.msk [vmem:[#allocation2 + $0x8] sm:$0xff] %vm91, 0.0
    %419 = vst.msk [vmem:[#allocation2 + $0x10] sm:$0x3] %vm303, 0.0
    %s420 = scalar_lea.vmem [#allocation2], 408
    %421 = vst.msk [vmem:[%s420] sm:$0xff] %vm91, 0.0
    %422 = vst.msk [vmem:[%s420 + $0x8] sm:$0xff] %vm91, 0.0
    %423 = vst.msk [vmem:[%s420 + $0x10] sm:$0x3] %vm303, 0.0
    %s424 = scalar_lea.vmem [#allocation2], 24
    %vm425 = vcmask 24576
    %426 = vst.msk [vmem:[%s424] sm:$0x1] %vm425, 0.0
    %427 = vst.msk [vmem:[%s424 + $0x18] sm:$0x1] %vm425, 0.0
    %428 = vst.msk [vmem:[%s424 + $0x30] sm:$0x1] %vm425, 0.0
    %429 = vst.msk [vmem:[%s424 + $0x48] sm:$0x1] %vm425, 0.0
    %430 = vst.msk [vmem:[%s424 + $0x60] sm:$0x1] %vm425, 0.0
    %431 = vst.msk [vmem:[%s424 + $0x78] sm:$0x1] %vm425, 0.0
    %432 = vst.msk [vmem:[%s424 + $0x90] sm:$0x1] %vm425, 0.0
    %433 = vst.msk [vmem:[%s424 + $0xa8] sm:$0x1] %vm425, 0.0
    %434 = vst.msk [vmem:[%s424 + $0xc0] sm:$0x1] %vm425, 0.0
    %435 = vst.msk [vmem:[%s424 + $0xd8] sm:$0x1] %vm425, 0.0
    %436 = vst.msk [vmem:[%s424 + $0xf0] sm:$0x1] %vm425, 0.0
    %437 = vst.msk [vmem:[%s424 + $0x108] sm:$0x1] %vm425, 0.0
    %438 = vst.msk [vmem:[%s424 + $0x120] sm:$0x1] %vm425, 0.0
    %439 = vst.msk [vmem:[%s424 + $0x138] sm:$0x1] %vm425, 0.0
    %440 = vst.msk [vmem:[%s424 + $0x150] sm:$0x1] %vm425, 0.0
    %441 = vst.msk [vmem:[%s424 + $0x168] sm:$0x1] %vm425, 0.0
    %442 = vst.msk [vmem:[%s424 + $0x11] sm:$0x1] %vm425, 0.0
    %443 = vst.msk [vmem:[%s424 + $0x29] sm:$0x1] %vm425, 0.0
    %444 = vst.msk [vmem:[%s424 + $0x41] sm:$0x1] %vm425, 0.0
    %445 = vst.msk [vmem:[%s424 + $0x59] sm:$0x1] %vm425, 0.0
    %446 = vst.msk [vmem:[%s424 + $0x71] sm:$0x1] %vm425, 0.0
    %447 = vst.msk [vmem:[%s424 + $0x89] sm:$0x1] %vm425, 0.0
    %448 = vst.msk [vmem:[%s424 + $0xa1] sm:$0x1] %vm425, 0.0
    %449 = vst.msk [vmem:[%s424 + $0xb9] sm:$0x1] %vm425, 0.0
    %450 = vst.msk [vmem:[%s424 + $0xd1] sm:$0x1] %vm425, 0.0
    %451 = vst.msk [vmem:[%s424 + $0xe9] sm:$0x1] %vm425, 0.0
    %452 = vst.msk [vmem:[%s424 + $0x101] sm:$0x1] %vm425, 0.0
    %453 = vst.msk [vmem:[%s424 + $0x119] sm:$0x1] %vm425, 0.0
    %454 = vst.msk [vmem:[%s424 + $0x131] sm:$0x1] %vm425, 0.0
    %455 = vst.msk [vmem:[%s424 + $0x149] sm:$0x1] %vm425, 0.0
    %456 = vst.msk [vmem:[%s424 + $0x161] sm:$0x1] %vm425, 0.0
    %457 = vst.msk [vmem:[%s424 + $0x179] sm:$0x1] %vm425, 0.0
    %458 = vst.msk [vmem:[%s424 + $0x1] sm:$0xff] %vm91, %v27
    %459 = vst.msk [vmem:[%s424 + $0x9] sm:$0xff] %vm91, %v28
    %460 = vst.msk [vmem:[%s424 + $0x19] sm:$0xff] %vm91, %v29
    %461 = vst.msk [vmem:[%s424 + $0x21] sm:$0xff] %vm91, %v30
    %462 = vst.msk [vmem:[%s424 + $0x31] sm:$0xff] %vm91, %v31
    %463 = vst.msk [vmem:[%s424 + $0x39] sm:$0xff] %vm91, %v32
    %464 = vst.msk [vmem:[%s424 + $0x49] sm:$0xff] %vm91, %v33
    %465 = vst.msk [vmem:[%s424 + $0x51] sm:$0xff] %vm91, %v34
    %466 = vst.msk [vmem:[%s424 + $0x61] sm:$0xff] %vm91, %v35
    %467 = vst.msk [vmem:[%s424 + $0x69] sm:$0xff] %vm91, %v36
    %468 = vst.msk [vmem:[%s424 + $0x79] sm:$0xff] %vm91, %v37
    %469 = vst.msk [vmem:[%s424 + $0x81] sm:$0xff] %vm91, %v38
    %470 = vst.msk [vmem:[%s424 + $0x91] sm:$0xff] %vm91, %v39
    %471 = vst.msk [vmem:[%s424 + $0x99] sm:$0xff] %vm91, %v40
    %472 = vst.msk [vmem:[%s424 + $0xa9] sm:$0xff] %vm91, %v41
    %473 = vst.msk [vmem:[%s424 + $0xb1] sm:$0xff] %vm91, %v42
    %474 = vst.msk [vmem:[%s424 + $0xc1] sm:$0xff] %vm91, %v43
    %475 = vst.msk [vmem:[%s424 + $0xc9] sm:$0xff] %vm91, %v44
    %476 = vst.msk [vmem:[%s424 + $0xd9] sm:$0xff] %vm91, %v45
    %477 = vst.msk [vmem:[%s424 + $0xe1] sm:$0xff] %vm91, %v46
    %478 = vst.msk [vmem:[%s424 + $0xf1] sm:$0xff] %vm91, %v47
    %479 = vst.msk [vmem:[%s424 + $0xf9] sm:$0xff] %vm91, %v48
    %480 = vst.msk [vmem:[%s424 + $0x109] sm:$0xff] %vm91, %v49
    %481 = vst.msk [vmem:[%s424 + $0x111] sm:$0xff] %vm91, %v50
    %482 = vst.msk [vmem:[%s424 + $0x121] sm:$0xff] %vm91, %v51
    %483 = vst.msk [vmem:[%s424 + $0x129] sm:$0xff] %vm91, %v52
    %484 = vst.msk [vmem:[%s424 + $0x139] sm:$0xff] %vm91, %v53
    %485 = vst.msk [vmem:[%s424 + $0x141] sm:$0xff] %vm91, %v54
    %486 = vst.msk [vmem:[%s424 + $0x151] sm:$0xff] %vm91, %v55
    %487 = vst.msk [vmem:[%s424 + $0x159] sm:$0xff] %vm91, %v56
    %488 = vst.msk [vmem:[%s424 + $0x169] sm:$0xff] %vm91, %v57
    %489 = vst.msk [vmem:[%s424 + $0x171] sm:$0xff] %vm91, %v58
    %v490 = vld [vmem:[#allocation2] sm:$0xff]
    %v491 = vld [vmem:[#allocation2 + $0x8] sm:$0xff]
    %v492 = vld [vmem:[#allocation2 + $0x10] sm:$0x3]
    %v493 = vld [vmem:[#allocation2 + $0x18] sm:$0xff]
    %v494 = vld [vmem:[#allocation2 + $0x20] sm:$0xff]
    %v495 = vld [vmem:[#allocation2 + $0x28] sm:$0x3]
    %v496 = vld [vmem:[#allocation2 + $0x30] sm:$0xff]
    %v497 = vld [vmem:[#allocation2 + $0x38] sm:$0xff]
    %v498 = vld [vmem:[#allocation2 + $0x40] sm:$0x3]
    %v499 = vld [vmem:[#allocation2 + $0x48] sm:$0xff]
    %v500 = vld [vmem:[#allocation2 + $0x50] sm:$0xff]
    %v501 = vld [vmem:[#allocation2 + $0x58] sm:$0x3]
    %v502 = vld [vmem:[#allocation2 + $0x60] sm:$0xff]
    %v503 = vld [vmem:[#allocation2 + $0x68] sm:$0xff]
    %v504 = vld [vmem:[#allocation2 + $0x70] sm:$0x3]
    %v505 = vld [vmem:[#allocation2 + $0x78] sm:$0xff]
    %v506 = vld [vmem:[#allocation2 + $0x80] sm:$0xff]
    %v507 = vld [vmem:[#allocation2 + $0x88] sm:$0x3]
    %v508 = vld [vmem:[#allocation2 + $0x90] sm:$0xff]
    %v509 = vld [vmem:[#allocation2 + $0x98] sm:$0xff]
    %v510 = vld [vmem:[#allocation2 + $0xa0] sm:$0x3]
    %v511 = vld [vmem:[#allocation2 + $0xa8] sm:$0xff]
    %v512 = vld [vmem:[#allocation2 + $0xb0] sm:$0xff]
    %v513 = vld [vmem:[#allocation2 + $0xb8] sm:$0x3]
    %v514 = vld [vmem:[#allocation2 + $0xc0] sm:$0xff]
    %v515 = vld [vmem:[#allocation2 + $0xc8] sm:$0xff]
    %v516 = vld [vmem:[#allocation2 + $0xd0] sm:$0x3]
    %v517 = vld [vmem:[#allocation2 + $0xd8] sm:$0xff]
    %v518 = vld [vmem:[#allocation2 + $0xe0] sm:$0xff]
    %v519 = vld [vmem:[#allocation2 + $0xe8] sm:$0x3]
    %v520 = vld [vmem:[#allocation2 + $0xf0] sm:$0xff]
    %v521 = vld [vmem:[#allocation2 + $0xf8] sm:$0xff]
    %v522 = vld [vmem:[#allocation2 + $0x100] sm:$0x3]
    %v523 = vld [vmem:[#allocation2 + $0x108] sm:$0xff]
    %v524 = vld [vmem:[#allocation2 + $0x110] sm:$0xff]
    %v525 = vld [vmem:[#allocation2 + $0x118] sm:$0x3]
    %v526 = vld [vmem:[#allocation2 + $0x120] sm:$0xff]
    %v527 = vld [vmem:[#allocation2 + $0x128] sm:$0xff]
    %v528 = vld [vmem:[#allocation2 + $0x130] sm:$0x3]
    %v529 = vld [vmem:[#allocation2 + $0x138] sm:$0xff]
    %v530 = vld [vmem:[#allocation2 + $0x140] sm:$0xff]
    %v531 = vld [vmem:[#allocation2 + $0x148] sm:$0x3]
    %v532 = vld [vmem:[#allocation2 + $0x150] sm:$0xff]
    %v533 = vld [vmem:[#allocation2 + $0x158] sm:$0xff]
    %v534 = vld [vmem:[#allocation2 + $0x160] sm:$0x3]
    %v535 = vld [vmem:[#allocation2 + $0x168] sm:$0xff]
    %v536 = vld [vmem:[#allocation2 + $0x170] sm:$0xff]
    %v537 = vld [vmem:[#allocation2 + $0x178] sm:$0x3]
    %v538 = vld [vmem:[#allocation2 + $0x180] sm:$0xff]
    %v539 = vld [vmem:[#allocation2 + $0x188] sm:$0xff]
    %v540 = vld [vmem:[#allocation2 + $0x190] sm:$0x3]
    %v541 = vld [vmem:[#allocation2 + $0x198] sm:$0xff]
    %v542 = vld [vmem:[#allocation2 + $0x1a0] sm:$0xff]
    %v543 = vld [vmem:[#allocation2 + $0x1a8] sm:$0x3]
    %v544 = vpack.c.bf16 %v490, %v490
    %v545 = vpack.c.bf16 %v491, %v491
    %v546 = vpack.c.bf16 %v493, %v493
    %v547 = vpack.c.bf16 %v494, %v494
    %v548 = vpack.c.bf16 %v496, %v496
    %v549 = vpack.c.bf16 %v497, %v497
    %v550 = vpack.c.bf16 %v499, %v499
    %v551 = vpack.c.bf16 %v500, %v500
    %v552 = vpack.c.bf16 %v502, %v502
    %v553 = vpack.c.bf16 %v503, %v503
    %v554 = vpack.c.bf16 %v505, %v505
    %v555 = vpack.c.bf16 %v506, %v506
    %v556 = vpack.c.bf16 %v508, %v508
    %v557 = vpack.c.bf16 %v509, %v509
    %v558 = vpack.c.bf16 %v511, %v511
    %v559 = vpack.c.bf16 %v512, %v512
    %v560 = vpack.c.bf16 %v514, %v514
    %v561 = vpack.c.bf16 %v515, %v515
    %v562 = vpack.c.bf16 %v517, %v517
    %v563 = vpack.c.bf16 %v518, %v518
    %v564 = vpack.c.bf16 %v520, %v520
    %v565 = vpack.c.bf16 %v521, %v521
    %v566 = vpack.c.bf16 %v523, %v523
    %v567 = vpack.c.bf16 %v524, %v524
    %v568 = vpack.c.bf16 %v526, %v526
    %v569 = vpack.c.bf16 %v527, %v527
    %v570 = vpack.c.bf16 %v529, %v529
    %v571 = vpack.c.bf16 %v530, %v530
    %v572 = vpack.c.bf16 %v532, %v532
    %v573 = vpack.c.bf16 %v533, %v533
    %v574 = vpack.c.bf16 %v535, %v535
    %v575 = vpack.c.bf16 %v536, %v536
    %vm576 = vcmask 27648
    %577 = vst.msk [vmem:[#allocation3] sm:$0xf] %vm576, %v544
    %578 = vst.msk [vmem:[#allocation3 + $0x4] sm:$0xf] %vm576, %v545
    %579 = vst.msk [vmem:[#allocation3 + $0x8] sm:$0xf] %vm576, %v546
    %580 = vst.msk [vmem:[#allocation3 + $0xc] sm:$0xf] %vm576, %v547
    %581 = vst.msk [vmem:[#allocation3 + $0x10] sm:$0xf] %vm576, %v548
    %582 = vst.msk [vmem:[#allocation3 + $0x14] sm:$0xf] %vm576, %v549
    %583 = vst.msk [vmem:[#allocation3 + $0x18] sm:$0xf] %vm576, %v550
    %584 = vst.msk [vmem:[#allocation3 + $0x1c] sm:$0xf] %vm576, %v551
    %585 = vst.msk [vmem:[#allocation3 + $0x20] sm:$0xf] %vm576, %v552
    %586 = vst.msk [vmem:[#allocation3 + $0x24] sm:$0xf] %vm576, %v553
    %587 = vst.msk [vmem:[#allocation3 + $0x28] sm:$0xf] %vm576, %v554
    %588 = vst.msk [vmem:[#allocation3 + $0x2c] sm:$0xf] %vm576, %v555
    %589 = vst.msk [vmem:[#allocation3 + $0x30] sm:$0xf] %vm576, %v556
    %590 = vst.msk [vmem:[#allocation3 + $0x34] sm:$0xf] %vm576, %v557
    %591 = vst.msk [vmem:[#allocation3 + $0x38] sm:$0xf] %vm576, %v558
    %592 = vst.msk [vmem:[#allocation3 + $0x3c] sm:$0xf] %vm576, %v559
    %593 = vst.msk [vmem:[#allocation3 + $0x40] sm:$0xf] %vm576, %v560
    %594 = vst.msk [vmem:[#allocation3 + $0x44] sm:$0xf] %vm576, %v561
    %595 = vst.msk [vmem:[#allocation3 + $0x48] sm:$0xf] %vm576, %v562
    %596 = vst.msk [vmem:[#allocation3 + $0x4c] sm:$0xf] %vm576, %v563
    %597 = vst.msk [vmem:[#allocation3 + $0x50] sm:$0xf] %vm576, %v564
    %598 = vst.msk [vmem:[#allocation3 + $0x54] sm:$0xf] %vm576, %v565
    %599 = vst.msk [vmem:[#allocation3 + $0x58] sm:$0xf] %vm576, %v566
    %600 = vst.msk [vmem:[#allocation3 + $0x5c] sm:$0xf] %vm576, %v567
    %601 = vst.msk [vmem:[#allocation3 + $0x60] sm:$0xf] %vm576, %v568
    %602 = vst.msk [vmem:[#allocation3 + $0x64] sm:$0xf] %vm576, %v569
    %603 = vst.msk [vmem:[#allocation3 + $0x68] sm:$0xf] %vm576, %v570
    %604 = vst.msk [vmem:[#allocation3 + $0x6c] sm:$0xf] %vm576, %v571
    %605 = vst.msk [vmem:[#allocation3 + $0x70] sm:$0xf] %vm576, %v572
    %606 = vst.msk [vmem:[#allocation3 + $0x74] sm:$0xf] %vm576, %v573
    %607 = vst.msk [vmem:[#allocation3 + $0x78] sm:$0xf] %vm576, %v574
    %608 = vst.msk [vmem:[#allocation3 + $0x7c] sm:$0xf] %vm576, %v575
    %v609 = vpack.c.bf16 %v492, %v492
    %v610 = vpack.c.bf16 %v495, %v495
    %v611 = vpack.c.bf16 %v498, %v498
    %v612 = vpack.c.bf16 %v501, %v501
    %v613 = vpack.c.bf16 %v504, %v504
    %v614 = vpack.c.bf16 %v507, %v507
    %v615 = vpack.c.bf16 %v510, %v510
    %v616 = vpack.c.bf16 %v513, %v513
    %v617 = vpack.c.bf16 %v516, %v516
    %v618 = vpack.c.bf16 %v519, %v519
    %v619 = vpack.c.bf16 %v522, %v522
    %v620 = vpack.c.bf16 %v525, %v525
    %v621 = vpack.c.bf16 %v528, %v528
    %v622 = vpack.c.bf16 %v531, %v531
    %v623 = vpack.c.bf16 %v534, %v534
    %v624 = vpack.c.bf16 %v537, %v537
    %vm625 = vsmask.f32 3328
    %vm626 = vsmask.f32 7440
    %vm627 = vmor %vm625, %vm626
    %v629 = vshrl.u32 %v544, 16
    %v631 = vrot.slane %v629, 4
    %v632 = vshll.u32 %v544, 16
    %v634 = vrot.slane %v632, 5
    %v635 = vor.u32 %v631, %v634
    %v636 = vrot.slane %v635, 4
    %v638 = vshll.u32 %v545, 16
    %v640 = vrot.slane %v638, 5
    %v641 = vsel %vm627, %v636, %v640
    %v642 = vshrl.u32 %v545, 16
    %v644 = vrot.slane %v642, 4
    %v645 = vor.u32 %v644, %v640
    %v646 = vrot.slane %v645, 4
    %v648 = vshll.u32 %v609, 16
    %v650 = vrot.slane %v648, 5
    %v651 = vsel %vm627, %v646, %v650
    %v653 = vshrl.u32 %v546, 16
    %v655 = vrot.slane %v653, 4
    %v656 = vshll.u32 %v546, 16
    %v658 = vrot.slane %v656, 5
    %v659 = vor.u32 %v655, %v658
    %v660 = vrot.slane %v659, 4
    %v662 = vshll.u32 %v547, 16
    %v664 = vrot.slane %v662, 5
    %v665 = vsel %vm627, %v660, %v664
    %v666 = vshrl.u32 %v547, 16
    %v668 = vrot.slane %v666, 4
    %v669 = vor.u32 %v668, %v664
    %v670 = vrot.slane %v669, 4
    %v672 = vshll.u32 %v610, 16
    %v674 = vrot.slane %v672, 5
    %v675 = vsel %vm627, %v670, %v674
    %v677 = vshrl.u32 %v548, 16
    %v679 = vrot.slane %v677, 4
    %v680 = vshll.u32 %v548, 16
    %v682 = vrot.slane %v680, 5
    %v683 = vor.u32 %v679, %v682
    %v684 = vrot.slane %v683, 4
    %v686 = vshll.u32 %v549, 16
    %v688 = vrot.slane %v686, 5
    %v689 = vsel %vm627, %v684, %v688
    %v690 = vshrl.u32 %v549, 16
    %v692 = vrot.slane %v690, 4
    %v693 = vor.u32 %v692, %v688
    %v694 = vrot.slane %v693, 4
    %v696 = vshll.u32 %v611, 16
    %v698 = vrot.slane %v696, 5
    %v699 = vsel %vm627, %v694, %v698
    %v701 = vshrl.u32 %v550, 16
    %v703 = vrot.slane %v701, 4
    %v704 = vshll.u32 %v550, 16
    %v706 = vrot.slane %v704, 5
    %v707 = vor.u32 %v703, %v706
    %v708 = vrot.slane %v707, 4
    %v710 = vshll.u32 %v551, 16
    %v712 = vrot.slane %v710, 5
    %v713 = vsel %vm627, %v708, %v712
    %v714 = vshrl.u32 %v551, 16
    %v716 = vrot.slane %v714, 4
    %v717 = vor.u32 %v716, %v712
    %v718 = vrot.slane %v717, 4
    %v720 = vshll.u32 %v612, 16
    %v722 = vrot.slane %v720, 5
    %v723 = vsel %vm627, %v718, %v722
    %v725 = vshrl.u32 %v552, 16
    %v727 = vrot.slane %v725, 4
    %v728 = vshll.u32 %v552, 16
    %v730 = vrot.slane %v728, 5
    %v731 = vor.u32 %v727, %v730
    %v732 = vrot.slane %v731, 4
    %v734 = vshll.u32 %v553, 16
    %v736 = vrot.slane %v734, 5
    %v737 = vsel %vm627, %v732, %v736
    %v738 = vshrl.u32 %v553, 16
    %v740 = vrot.slane %v738, 4
    %v741 = vor.u32 %v740, %v736
    %v742 = vrot.slane %v741, 4
    %v744 = vshll.u32 %v613, 16
    %v746 = vrot.slane %v744, 5
    %v747 = vsel %vm627, %v742, %v746
    %v749 = vshrl.u32 %v554, 16
    %v751 = vrot.slane %v749, 4
    %v752 = vshll.u32 %v554, 16
    %v754 = vrot.slane %v752, 5
    %v755 = vor.u32 %v751, %v754
    %v756 = vrot.slane %v755, 4
    %v758 = vshll.u32 %v555, 16
    %v760 = vrot.slane %v758, 5
    %v761 = vsel %vm627, %v756, %v760
    %v762 = vshrl.u32 %v555, 16
    %v764 = vrot.slane %v762, 4
    %v765 = vor.u32 %v764, %v760
    %v766 = vrot.slane %v765, 4
    %v768 = vshll.u32 %v614, 16
    %v770 = vrot.slane %v768, 5
    %v771 = vsel %vm627, %v766, %v770
    %v773 = vshrl.u32 %v556, 16
    %v775 = vrot.slane %v773, 4
    %v776 = vshll.u32 %v556, 16
    %v778 = vrot.slane %v776, 5
    %v779 = vor.u32 %v775, %v778
    %v780 = vrot.slane %v779, 4
    %v782 = vshll.u32 %v557, 16
    %v784 = vrot.slane %v782, 5
    %v785 = vsel %vm627, %v780, %v784
    %v786 = vshrl.u32 %v557, 16
    %v788 = vrot.slane %v786, 4
    %v789 = vor.u32 %v788, %v784
    %v790 = vrot.slane %v789, 4
    %v792 = vshll.u32 %v615, 16
    %v794 = vrot.slane %v792, 5
    %v795 = vsel %vm627, %v790, %v794
    %v797 = vshrl.u32 %v558, 16
    %v799 = vrot.slane %v797, 4
    %v800 = vshll.u32 %v558, 16
    %v802 = vrot.slane %v800, 5
    %v803 = vor.u32 %v799, %v802
    %v804 = vrot.slane %v803, 4
    %v806 = vshll.u32 %v559, 16
    %v808 = vrot.slane %v806, 5
    %v809 = vsel %vm627, %v804, %v808
    %v810 = vshrl.u32 %v559, 16
    %v812 = vrot.slane %v810, 4
    %v813 = vor.u32 %v812, %v808
    %v814 = vrot.slane %v813, 4
    %v816 = vshll.u32 %v616, 16
    %v818 = vrot.slane %v816, 5
    %v819 = vsel %vm627, %v814, %v818
    %v821 = vshrl.u32 %v560, 16
    %v823 = vrot.slane %v821, 4
    %v824 = vshll.u32 %v560, 16
    %v826 = vrot.slane %v824, 5
    %v827 = vor.u32 %v823, %v826
    %v828 = vrot.slane %v827, 4
    %v830 = vshll.u32 %v561, 16
    %v832 = vrot.slane %v830, 5
    %v833 = vsel %vm627, %v828, %v832
    %v834 = vshrl.u32 %v561, 16
    %v836 = vrot.slane %v834, 4
    %v837 = vor.u32 %v836, %v832
    %v838 = vrot.slane %v837, 4
    %v840 = vshll.u32 %v617, 16
    %v842 = vrot.slane %v840, 5
    %v843 = vsel %vm627, %v838, %v842
    %v845 = vshrl.u32 %v562, 16
    %v847 = vrot.slane %v845, 4
    %v848 = vshll.u32 %v562, 16
    %v850 = vrot.slane %v848, 5
    %v851 = vor.u32 %v847, %v850
    %v852 = vrot.slane %v851, 4
    %v854 = vshll.u32 %v563, 16
    %v856 = vrot.slane %v854, 5
    %v857 = vsel %vm627, %v852, %v856
    %v858 = vshrl.u32 %v563, 16
    %v860 = vrot.slane %v858, 4
    %v861 = vor.u32 %v860, %v856
    %v862 = vrot.slane %v861, 4
    %v864 = vshll.u32 %v618, 16
    %v866 = vrot.slane %v864, 5
    %v867 = vsel %vm627, %v862, %v866
    %v869 = vshrl.u32 %v564, 16
    %v871 = vrot.slane %v869, 4
    %v872 = vshll.u32 %v564, 16
    %v874 = vrot.slane %v872, 5
    %v875 = vor.u32 %v871, %v874
    %v876 = vrot.slane %v875, 4
    %v878 = vshll.u32 %v565, 16
    %v880 = vrot.slane %v878, 5
    %v881 = vsel %vm627, %v876, %v880
    %v882 = vshrl.u32 %v565, 16
    %v884 = vrot.slane %v882, 4
    %v885 = vor.u32 %v884, %v880
    %v886 = vrot.slane %v885, 4
    %v888 = vshll.u32 %v619, 16
    %v890 = vrot.slane %v888, 5
    %v891 = vsel %vm627, %v886, %v890
    %v893 = vshrl.u32 %v566, 16
    %v895 = vrot.slane %v893, 4
    %v896 = vshll.u32 %v566, 16
    %v898 = vrot.slane %v896, 5
    %v899 = vor.u32 %v895, %v898
    %v900 = vrot.slane %v899, 4
    %v902 = vshll.u32 %v567, 16
    %v904 = vrot.slane %v902, 5
    %v905 = vsel %vm627, %v900, %v904
    %v906 = vshrl.u32 %v567, 16
    %v908 = vrot.slane %v906, 4
    %v909 = vor.u32 %v908, %v904
    %v910 = vrot.slane %v909, 4
    %v912 = vshll.u32 %v620, 16
    %v914 = vrot.slane %v912, 5
    %v915 = vsel %vm627, %v910, %v914
    %v917 = vshrl.u32 %v568, 16
    %v919 = vrot.slane %v917, 4
    %v920 = vshll.u32 %v568, 16
    %v922 = vrot.slane %v920, 5
    %v923 = vor.u32 %v919, %v922
    %v924 = vrot.slane %v923, 4
    %v926 = vshll.u32 %v569, 16
    %v928 = vrot.slane %v926, 5
    %v929 = vsel %vm627, %v924, %v928
    %v930 = vshrl.u32 %v569, 16
    %v932 = vrot.slane %v930, 4
    %v933 = vor.u32 %v932, %v928
    %v934 = vrot.slane %v933, 4
    %v936 = vshll.u32 %v621, 16
    %v938 = vrot.slane %v936, 5
    %v939 = vsel %vm627, %v934, %v938
    %v941 = vshrl.u32 %v570, 16
    %v943 = vrot.slane %v941, 4
    %v944 = vshll.u32 %v570, 16
    %v946 = vrot.slane %v944, 5
    %v947 = vor.u32 %v943, %v946
    %v948 = vrot.slane %v947, 4
    %v950 = vshll.u32 %v571, 16
    %v952 = vrot.slane %v950, 5
    %v953 = vsel %vm627, %v948, %v952
    %v954 = vshrl.u32 %v571, 16
    %v956 = vrot.slane %v954, 4
    %v957 = vor.u32 %v956, %v952
    %v958 = vrot.slane %v957, 4
    %v960 = vshll.u32 %v622, 16
    %v962 = vrot.slane %v960, 5
    %v963 = vsel %vm627, %v958, %v962
    %v965 = vshrl.u32 %v572, 16
    %v967 = vrot.slane %v965, 4
    %v968 = vshll.u32 %v572, 16
    %v970 = vrot.slane %v968, 5
    %v971 = vor.u32 %v967, %v970
    %v972 = vrot.slane %v971, 4
    %v974 = vshll.u32 %v573, 16
    %v976 = vrot.slane %v974, 5
    %v977 = vsel %vm627, %v972, %v976
    %v978 = vshrl.u32 %v573, 16
    %v980 = vrot.slane %v978, 4
    %v981 = vor.u32 %v980, %v976
    %v982 = vrot.slane %v981, 4
    %v984 = vshll.u32 %v623, 16
    %v986 = vrot.slane %v984, 5
    %v987 = vsel %vm627, %v982, %v986
    %v989 = vshrl.u32 %v574, 16
    %v991 = vrot.slane %v989, 4
    %v992 = vshll.u32 %v574, 16
    %v994 = vrot.slane %v992, 5
    %v995 = vor.u32 %v991, %v994
    %v996 = vrot.slane %v995, 4
    %v998 = vshll.u32 %v575, 16
    %v1000 = vrot.slane %v998, 5
    %v1001 = vsel %vm627, %v996, %v1000
    %v1002 = vshrl.u32 %v575, 16
    %v1004 = vrot.slane %v1002, 4
    %v1005 = vor.u32 %v1004, %v1000
    %v1006 = vrot.slane %v1005, 4
    %v1008 = vshll.u32 %v624, 16
    %v1010 = vrot.slane %v1008, 5
    %v1011 = vsel %vm627, %v1006, %v1010
    %1012 = vrot.lane.b32.xlu0 %v641, 4
    %v1013 = vpop.permute.xlu0 %1012
    %1014 = vrot.lane.b32.xlu0 %v651, 4
    %v1015 = vpop.permute.xlu0 %1014
    %1016 = vrot.lane.b32.xlu0 %v665, 4
    %v1017 = vpop.permute.xlu0 %1016
    %1018 = vrot.lane.b32.xlu0 %v675, 4
    %v1019 = vpop.permute.xlu0 %1018
    %1020 = vrot.lane.b32.xlu0 %v689, 4
    %v1021 = vpop.permute.xlu0 %1020
    %1022 = vrot.lane.b32.xlu0 %v699, 4
    %v1023 = vpop.permute.xlu0 %1022
    %1024 = vrot.lane.b32.xlu0 %v713, 4
    %v1025 = vpop.permute.xlu0 %1024
    %1026 = vrot.lane.b32.xlu0 %v723, 4
    %v1027 = vpop.permute.xlu0 %1026
    %1028 = vrot.lane.b32.xlu0 %v737, 4
    %v1029 = vpop.permute.xlu0 %1028
    %1030 = vrot.lane.b32.xlu0 %v747, 4
    %v1031 = vpop.permute.xlu0 %1030
    %1032 = vrot.lane.b32.xlu0 %v761, 4
    %v1033 = vpop.permute.xlu0 %1032
    %1034 = vrot.lane.b32.xlu0 %v771, 4
    %v1035 = vpop.permute.xlu0 %1034
    %1036 = vrot.lane.b32.xlu0 %v785, 4
    %v1037 = vpop.permute.xlu0 %1036
    %1038 = vrot.lane.b32.xlu0 %v795, 4
    %v1039 = vpop.permute.xlu0 %1038
    %1040 = vrot.lane.b32.xlu0 %v809, 4
    %v1041 = vpop.permute.xlu0 %1040
    %1042 = vrot.lane.b32.xlu0 %v819, 4
    %v1043 = vpop.permute.xlu0 %1042
    %1044 = vrot.lane.b32.xlu0 %v833, 4
    %v1045 = vpop.permute.xlu0 %1044
    %1046 = vrot.lane.b32.xlu0 %v843, 4
    %v1047 = vpop.permute.xlu0 %1046
    %1048 = vrot.lane.b32.xlu0 %v857, 4
    %v1049 = vpop.permute.xlu0 %1048
    %1050 = vrot.lane.b32.xlu0 %v867, 4
    %v1051 = vpop.permute.xlu0 %1050
    %1052 = vrot.lane.b32.xlu0 %v881, 4
    %v1053 = vpop.permute.xlu0 %1052
    %1054 = vrot.lane.b32.xlu0 %v891, 4
    %v1055 = vpop.permute.xlu0 %1054
    %1056 = vrot.lane.b32.xlu0 %v905, 4
    %v1057 = vpop.permute.xlu0 %1056
    %1058 = vrot.lane.b32.xlu0 %v915, 4
    %v1059 = vpop.permute.xlu0 %1058
    %1060 = vrot.lane.b32.xlu0 %v929, 4
    %v1061 = vpop.permute.xlu0 %1060
    %1062 = vrot.lane.b32.xlu0 %v939, 4
    %v1063 = vpop.permute.xlu0 %1062
    %1064 = vrot.lane.b32.xlu0 %v953, 4
    %v1065 = vpop.permute.xlu0 %1064
    %1066 = vrot.lane.b32.xlu0 %v963, 4
    %v1067 = vpop.permute.xlu0 %1066
    %1068 = vrot.lane.b32.xlu0 %v977, 4
    %v1069 = vpop.permute.xlu0 %1068
    %1070 = vrot.lane.b32.xlu0 %v987, 4
    %v1071 = vpop.permute.xlu0 %1070
    %1072 = vrot.lane.b32.xlu0 %v1001, 4
    %v1073 = vpop.permute.xlu0 %1072
    %1074 = vrot.lane.b32.xlu0 %v1011, 4
    %v1075 = vpop.permute.xlu0 %1074
    %vm1108 = vcmask 60448
    %1109 = vst.msk [vmem:[#allocation3] sm:$0xf] %vm1108, %v1013
    %1110 = vst.msk [vmem:[#allocation3 + $0x4] sm:$0xf] %vm1108, %v1015
    %1111 = vst.msk [vmem:[#allocation3 + $0x8] sm:$0xf] %vm1108, %v1017
    %1112 = vst.msk [vmem:[#allocation3 + $0xc] sm:$0xf] %vm1108, %v1019
    %1113 = vst.msk [vmem:[#allocation3 + $0x10] sm:$0xf] %vm1108, %v1021
    %1114 = vst.msk [vmem:[#allocation3 + $0x14] sm:$0xf] %vm1108, %v1023
    %1115 = vst.msk [vmem:[#allocation3 + $0x18] sm:$0xf] %vm1108, %v1025
    %1116 = vst.msk [vmem:[#allocation3 + $0x1c] sm:$0xf] %vm1108, %v1027
    %1117 = vst.msk [vmem:[#allocation3 + $0x20] sm:$0xf] %vm1108, %v1029
    %1118 = vst.msk [vmem:[#allocation3 + $0x24] sm:$0xf] %vm1108, %v1031
    %1119 = vst.msk [vmem:[#allocation3 + $0x28] sm:$0xf] %vm1108, %v1033
    %1120 = vst.msk [vmem:[#allocation3 + $0x2c] sm:$0xf] %vm1108, %v1035
    %1121 = vst.msk [vmem:[#allocation3 + $0x30] sm:$0xf] %vm1108, %v1037
    %1122 = vst.msk [vmem:[#allocation3 + $0x34] sm:$0xf] %vm1108, %v1039
    %1123 = vst.msk [vmem:[#allocation3 + $0x38] sm:$0xf] %vm1108, %v1041
    %1124 = vst.msk [vmem:[#allocation3 + $0x3c] sm:$0xf] %vm1108, %v1043
    %1125 = vst.msk [vmem:[#allocation3 + $0x40] sm:$0xf] %vm1108, %v1045
    %1126 = vst.msk [vmem:[#allocation3 + $0x44] sm:$0xf] %vm1108, %v1047
    %1127 = vst.msk [vmem:[#allocation3 + $0x48] sm:$0xf] %vm1108, %v1049
    %1128 = vst.msk [vmem:[#allocation3 + $0x4c] sm:$0xf] %vm1108, %v1051
    %1129 = vst.msk [vmem:[#allocation3 + $0x50] sm:$0xf] %vm1108, %v1053
    %1130 = vst.msk [vmem:[#allocation3 + $0x54] sm:$0xf] %vm1108, %v1055
    %1131 = vst.msk [vmem:[#allocation3 + $0x58] sm:$0xf] %vm1108, %v1057
    %1132 = vst.msk [vmem:[#allocation3 + $0x5c] sm:$0xf] %vm1108, %v1059
    %1133 = vst.msk [vmem:[#allocation3 + $0x60] sm:$0xf] %vm1108, %v1061
    %1134 = vst.msk [vmem:[#allocation3 + $0x64] sm:$0xf] %vm1108, %v1063
    %1135 = vst.msk [vmem:[#allocation3 + $0x68] sm:$0xf] %vm1108, %v1065
    %1136 = vst.msk [vmem:[#allocation3 + $0x6c] sm:$0xf] %vm1108, %v1067
    %1137 = vst.msk [vmem:[#allocation3 + $0x70] sm:$0xf] %vm1108, %v1069
    %1138 = vst.msk [vmem:[#allocation3 + $0x74] sm:$0xf] %vm1108, %v1071
    %1139 = vst.msk [vmem:[#allocation3 + $0x78] sm:$0xf] %vm1108, %v1073
    %1140 = vst.msk [vmem:[#allocation3 + $0x7c] sm:$0xf] %vm1108, %v1075
    %vm1189 = vcmask 1042432
    %vm1190 = vcmask 1046532
    %vm1191 = vmor %vm1189, %vm1190
    %v1192 = vrot.slane %v544, 5
    %v1193 = vrot.slane %v1192, 4
    %v1194 = vrot.slane %v545, 5
    %v1195 = vsel %vm1191, %v1193, %v1194
    %v1196 = vrot.slane %v1194, 4
    %v1197 = vrot.slane %v609, 5
    %v1198 = vsel %vm1191, %v1196, %v1197
    %v1199 = vrot.slane %v546, 5
    %v1200 = vrot.slane %v1199, 4
    %v1201 = vrot.slane %v547, 5
    %v1202 = vsel %vm1191, %v1200, %v1201
    %v1203 = vrot.slane %v1201, 4
    %v1204 = vrot.slane %v610, 5
    %v1205 = vsel %vm1191, %v1203, %v1204
    %v1206 = vrot.slane %v548, 5
    %v1207 = vrot.slane %v1206, 4
    %v1208 = vrot.slane %v549, 5
    %v1209 = vsel %vm1191, %v1207, %v1208
    %v1210 = vrot.slane %v1208, 4
    %v1211 = vrot.slane %v611, 5
    %v1212 = vsel %vm1191, %v1210, %v1211
    %v1213 = vrot.slane %v550, 5
    %v1214 = vrot.slane %v1213, 4
    %v1215 = vrot.slane %v551, 5
    %v1216 = vsel %vm1191, %v1214, %v1215
    %v1217 = vrot.slane %v1215, 4
    %v1218 = vrot.slane %v612, 5
    %v1219 = vsel %vm1191, %v1217, %v1218
    %v1220 = vrot.slane %v552, 5
    %v1221 = vrot.slane %v1220, 4
    %v1222 = vrot.slane %v553, 5
    %v1223 = vsel %vm1191, %v1221, %v1222
    %v1224 = vrot.slane %v1222, 4
    %v1225 = vrot.slane %v613, 5
    %v1226 = vsel %vm1191, %v1224, %v1225
    %v1227 = vrot.slane %v554, 5
    %v1228 = vrot.slane %v1227, 4
    %v1229 = vrot.slane %v555, 5
    %v1230 = vsel %vm1191, %v1228, %v1229
    %v1231 = vrot.slane %v1229, 4
    %v1232 = vrot.slane %v614, 5
    %v1233 = vsel %vm1191, %v1231, %v1232
    %v1234 = vrot.slane %v556, 5
    %v1235 = vrot.slane %v1234, 4
    %v1236 = vrot.slane %v557, 5
    %v1237 = vsel %vm1191, %v1235, %v1236
    %v1238 = vrot.slane %v1236, 4
    %v1239 = vrot.slane %v615, 5
    %v1240 = vsel %vm1191, %v1238, %v1239
    %v1241 = vrot.slane %v558, 5
    %v1242 = vrot.slane %v1241, 4
    %v1243 = vrot.slane %v559, 5
    %v1244 = vsel %vm1191, %v1242, %v1243
    %v1245 = vrot.slane %v1243, 4
    %v1246 = vrot.slane %v616, 5
    %v1247 = vsel %vm1191, %v1245, %v1246
    %v1248 = vrot.slane %v560, 5
    %v1249 = vrot.slane %v1248, 4
    %v1250 = vrot.slane %v561, 5
    %v1251 = vsel %vm1191, %v1249, %v1250
    %v1252 = vrot.slane %v1250, 4
    %v1253 = vrot.slane %v617, 5
    %v1254 = vsel %vm1191, %v1252, %v1253
    %v1255 = vrot.slane %v562, 5
    %v1256 = vrot.slane %v1255, 4
    %v1257 = vrot.slane %v563, 5
    %v1258 = vsel %vm1191, %v1256, %v1257
    %v1259 = vrot.slane %v1257, 4
    %v1260 = vrot.slane %v618, 5
    %v1261 = vsel %vm1191, %v1259, %v1260
    %v1262 = vrot.slane %v564, 5
    %v1263 = vrot.slane %v1262, 4
    %v1264 = vrot.slane %v565, 5
    %v1265 = vsel %vm1191, %v1263, %v1264
    %v1266 = vrot.slane %v1264, 4
    %v1267 = vrot.slane %v619, 5
    %v1268 = vsel %vm1191, %v1266, %v1267
    %v1269 = vrot.slane %v566, 5
    %v1270 = vrot.slane %v1269, 4
    %v1271 = vrot.slane %v567, 5
    %v1272 = vsel %vm1191, %v1270, %v1271
    %v1273 = vrot.slane %v1271, 4
    %v1274 = vrot.slane %v620, 5
    %v1275 = vsel %vm1191, %v1273, %v1274
    %v1276 = vrot.slane %v568, 5
    %v1277 = vrot.slane %v1276, 4
    %v1278 = vrot.slane %v569, 5
    %v1279 = vsel %vm1191, %v1277, %v1278
    %v1280 = vrot.slane %v1278, 4
    %v1281 = vrot.slane %v621, 5
    %v1282 = vsel %vm1191, %v1280, %v1281
    %v1283 = vrot.slane %v570, 5
    %v1284 = vrot.slane %v1283, 4
    %v1285 = vrot.slane %v571, 5
    %v1286 = vsel %vm1191, %v1284, %v1285
    %v1287 = vrot.slane %v1285, 4
    %v1288 = vrot.slane %v622, 5
    %v1289 = vsel %vm1191, %v1287, %v1288
    %v1290 = vrot.slane %v572, 5
    %v1291 = vrot.slane %v1290, 4
    %v1292 = vrot.slane %v573, 5
    %v1293 = vsel %vm1191, %v1291, %v1292
    %v1294 = vrot.slane %v1292, 4
    %v1295 = vrot.slane %v623, 5
    %v1296 = vsel %vm1191, %v1294, %v1295
    %v1297 = vrot.slane %v574, 5
    %v1298 = vrot.slane %v1297, 4
    %v1299 = vrot.slane %v575, 5
    %v1300 = vsel %vm1191, %v1298, %v1299
    %v1301 = vrot.slane %v1299, 4
    %v1302 = vrot.slane %v624, 5
    %v1303 = vsel %vm1191, %v1301, %v1302
    %1304 = vrot.lane.b32.xlu0 %v1195, 8
    %v1305 = vpop.permute.xlu0 %1304
    %1306 = vrot.lane.b32.xlu0 %v1198, 8
    %v1307 = vpop.permute.xlu0 %1306
    %1308 = vrot.lane.b32.xlu0 %v1202, 8
    %v1309 = vpop.permute.xlu0 %1308
    %1310 = vrot.lane.b32.xlu0 %v1205, 8
    %v1311 = vpop.permute.xlu0 %1310
    %1312 = vrot.lane.b32.xlu0 %v1209, 8
    %v1313 = vpop.permute.xlu0 %1312
    %1314 = vrot.lane.b32.xlu0 %v1212, 8
    %v1315 = vpop.permute.xlu0 %1314
    %1316 = vrot.lane.b32.xlu0 %v1216, 8
    %v1317 = vpop.permute.xlu0 %1316
    %1318 = vrot.lane.b32.xlu0 %v1219, 8
    %v1319 = vpop.permute.xlu0 %1318
    %1320 = vrot.lane.b32.xlu0 %v1223, 8
    %v1321 = vpop.permute.xlu0 %1320
    %1322 = vrot.lane.b32.xlu0 %v1226, 8
    %v1323 = vpop.permute.xlu0 %1322
    %1324 = vrot.lane.b32.xlu0 %v1230, 8
    %v1325 = vpop.permute.xlu0 %1324
    %1326 = vrot.lane.b32.xlu0 %v1233, 8
    %v1327 = vpop.permute.xlu0 %1326
    %1328 = vrot.lane.b32.xlu0 %v1237, 8
    %v1329 = vpop.permute.xlu0 %1328
    %1330 = vrot.lane.b32.xlu0 %v1240, 8
    %v1331 = vpop.permute.xlu0 %1330
    %1332 = vrot.lane.b32.xlu0 %v1244, 8
    %v1333 = vpop.permute.xlu0 %1332
    %1334 = vrot.lane.b32.xlu0 %v1247, 8
    %v1335 = vpop.permute.xlu0 %1334
    %1336 = vrot.lane.b32.xlu0 %v1251, 8
    %v1337 = vpop.permute.xlu0 %1336
    %1338 = vrot.lane.b32.xlu0 %v1254, 8
    %v1339 = vpop.permute.xlu0 %1338
    %1340 = vrot.lane.b32.xlu0 %v1258, 8
    %v1341 = vpop.permute.xlu0 %1340
    %1342 = vrot.lane.b32.xlu0 %v1261, 8
    %v1343 = vpop.permute.xlu0 %1342
    %1344 = vrot.lane.b32.xlu0 %v1265, 8
    %v1345 = vpop.permute.xlu0 %1344
    %1346 = vrot.lane.b32.xlu0 %v1268, 8
    %v1347 = vpop.permute.xlu0 %1346
    %1348 = vrot.lane.b32.xlu0 %v1272, 8
    %v1349 = vpop.permute.xlu0 %1348
    %1350 = vrot.lane.b32.xlu0 %v1275, 8
    %v1351 = vpop.permute.xlu0 %1350
    %1352 = vrot.lane.b32.xlu0 %v1279, 8
    %v1353 = vpop.permute.xlu0 %1352
    %1354 = vrot.lane.b32.xlu0 %v1282, 8
    %v1355 = vpop.permute.xlu0 %1354
    %1356 = vrot.lane.b32.xlu0 %v1286, 8
    %v1357 = vpop.permute.xlu0 %1356
    %1358 = vrot.lane.b32.xlu0 %v1289, 8
    %v1359 = vpop.permute.xlu0 %1358
    %1360 = vrot.lane.b32.xlu0 %v1293, 8
    %v1361 = vpop.permute.xlu0 %1360
    %1362 = vrot.lane.b32.xlu0 %v1296, 8
    %v1363 = vpop.permute.xlu0 %1362
    %1364 = vrot.lane.b32.xlu0 %v1300, 8
    %v1365 = vpop.permute.xlu0 %1364
    %1366 = vrot.lane.b32.xlu0 %v1303, 8
    %v1367 = vpop.permute.xlu0 %1366
    %vm1400 = vcmask 93248
    %1401 = vst.msk [vmem:[#allocation3] sm:$0xf] %vm1400, %v1305
    %1402 = vst.msk [vmem:[#allocation3 + $0x4] sm:$0xf] %vm1400, %v1307
    %1403 = vst.msk [vmem:[#allocation3 + $0x8] sm:$0xf] %vm1400, %v1309
    %1404 = vst.msk [vmem:[#allocation3 + $0xc] sm:$0xf] %vm1400, %v1311
    %1405 = vst.msk [vmem:[#allocation3 + $0x10] sm:$0xf] %vm1400, %v1313
    %1406 = vst.msk [vmem:[#allocation3 + $0x14] sm:$0xf] %vm1400, %v1315
    %1407 = vst.msk [vmem:[#allocation3 + $0x18] sm:$0xf] %vm1400, %v1317
    %1408 = vst.msk [vmem:[#allocation3 + $0x1c] sm:$0xf] %vm1400, %v1319
    %1409 = vst.msk [vmem:[#allocation3 + $0x20] sm:$0xf] %vm1400, %v1321
    %1410 = vst.msk [vmem:[#allocation3 + $0x24] sm:$0xf] %vm1400, %v1323
    %1411 = vst.msk [vmem:[#allocation3 + $0x28] sm:$0xf] %vm1400, %v1325
    %1412 = vst.msk [vmem:[#allocation3 + $0x2c] sm:$0xf] %vm1400, %v1327
    %1413 = vst.msk [vmem:[#allocation3 + $0x30] sm:$0xf] %vm1400, %v1329
    %1414 = vst.msk [vmem:[#allocation3 + $0x34] sm:$0xf] %vm1400, %v1331
    %1415 = vst.msk [vmem:[#allocation3 + $0x38] sm:$0xf] %vm1400, %v1333
    %1416 = vst.msk [vmem:[#allocation3 + $0x3c] sm:$0xf] %vm1400, %v1335
    %1417 = vst.msk [vmem:[#allocation3 + $0x40] sm:$0xf] %vm1400, %v1337
    %1418 = vst.msk [vmem:[#allocation3 + $0x44] sm:$0xf] %vm1400, %v1339
    %1419 = vst.msk [vmem:[#allocation3 + $0x48] sm:$0xf] %vm1400, %v1341
    %1420 = vst.msk [vmem:[#allocation3 + $0x4c] sm:$0xf] %vm1400, %v1343
    %1421 = vst.msk [vmem:[#allocation3 + $0x50] sm:$0xf] %vm1400, %v1345
    %1422 = vst.msk [vmem:[#allocation3 + $0x54] sm:$0xf] %vm1400, %v1347
    %1423 = vst.msk [vmem:[#allocation3 + $0x58] sm:$0xf] %vm1400, %v1349
    %1424 = vst.msk [vmem:[#allocation3 + $0x5c] sm:$0xf] %vm1400, %v1351
    %1425 = vst.msk [vmem:[#allocation3 + $0x60] sm:$0xf] %vm1400, %v1353
    %1426 = vst.msk [vmem:[#allocation3 + $0x64] sm:$0xf] %vm1400, %v1355
    %1427 = vst.msk [vmem:[#allocation3 + $0x68] sm:$0xf] %vm1400, %v1357
    %1428 = vst.msk [vmem:[#allocation3 + $0x6c] sm:$0xf] %vm1400, %v1359
    %1429 = vst.msk [vmem:[#allocation3 + $0x70] sm:$0xf] %vm1400, %v1361
    %1430 = vst.msk [vmem:[#allocation3 + $0x74] sm:$0xf] %vm1400, %v1363
    %1431 = vst.msk [vmem:[#allocation3 + $0x78] sm:$0xf] %vm1400, %v1365
    %1432 = vst.msk [vmem:[#allocation3 + $0x7c] sm:$0xf] %vm1400, %v1367
    %v1433 = vpack.c.bf16 %v538, %v538
    %v1434 = vpack.c.bf16 %v539, %v539
    %1437 = vrot.lane.b32.xlu0 %v546, 12
    %v1438 = vpop.permute.xlu0 %1437
    %1439 = vrot.lane.b32.xlu0 %v547, 12
    %v1440 = vpop.permute.xlu0 %1439
    %1441 = vrot.lane.b32.xlu0 %v548, 12
    %v1442 = vpop.permute.xlu0 %1441
    %1443 = vrot.lane.b32.xlu0 %v549, 12
    %v1444 = vpop.permute.xlu0 %1443
    %1445 = vrot.lane.b32.xlu0 %v550, 12
    %v1446 = vpop.permute.xlu0 %1445
    %1447 = vrot.lane.b32.xlu0 %v551, 12
    %v1448 = vpop.permute.xlu0 %1447
    %1449 = vrot.lane.b32.xlu0 %v552, 12
    %v1450 = vpop.permute.xlu0 %1449
    %1451 = vrot.lane.b32.xlu0 %v553, 12
    %v1452 = vpop.permute.xlu0 %1451
    %1453 = vrot.lane.b32.xlu0 %v554, 12
    %v1454 = vpop.permute.xlu0 %1453
    %1455 = vrot.lane.b32.xlu0 %v555, 12
    %v1456 = vpop.permute.xlu0 %1455
    %1457 = vrot.lane.b32.xlu0 %v556, 12
    %v1458 = vpop.permute.xlu0 %1457
    %1459 = vrot.lane.b32.xlu0 %v557, 12
    %v1460 = vpop.permute.xlu0 %1459
    %1461 = vrot.lane.b32.xlu0 %v558, 12
    %v1462 = vpop.permute.xlu0 %1461
    %1463 = vrot.lane.b32.xlu0 %v559, 12
    %v1464 = vpop.permute.xlu0 %1463
    %1465 = vrot.lane.b32.xlu0 %v560, 12
    %v1466 = vpop.permute.xlu0 %1465
    %1467 = vrot.lane.b32.xlu0 %v561, 12
    %v1468 = vpop.permute.xlu0 %1467
    %1469 = vrot.lane.b32.xlu0 %v562, 12
    %v1470 = vpop.permute.xlu0 %1469
    %1471 = vrot.lane.b32.xlu0 %v563, 12
    %v1472 = vpop.permute.xlu0 %1471
    %1473 = vrot.lane.b32.xlu0 %v564, 12
    %v1474 = vpop.permute.xlu0 %1473
    %1475 = vrot.lane.b32.xlu0 %v565, 12
    %v1476 = vpop.permute.xlu0 %1475
    %1477 = vrot.lane.b32.xlu0 %v566, 12
    %v1478 = vpop.permute.xlu0 %1477
    %1479 = vrot.lane.b32.xlu0 %v567, 12
    %v1480 = vpop.permute.xlu0 %1479
    %1481 = vrot.lane.b32.xlu0 %v568, 12
    %v1482 = vpop.permute.xlu0 %1481
    %1483 = vrot.lane.b32.xlu0 %v569, 12
    %v1484 = vpop.permute.xlu0 %1483
    %1485 = vrot.lane.b32.xlu0 %v570, 12
    %v1486 = vpop.permute.xlu0 %1485
    %1487 = vrot.lane.b32.xlu0 %v571, 12
    %v1488 = vpop.permute.xlu0 %1487
    %1489 = vrot.lane.b32.xlu0 %v572, 12
    %v1490 = vpop.permute.xlu0 %1489
    %1491 = vrot.lane.b32.xlu0 %v573, 12
    %v1492 = vpop.permute.xlu0 %1491
    %1493 = vrot.lane.b32.xlu0 %v574, 12
    %v1494 = vpop.permute.xlu0 %1493
    %1495 = vrot.lane.b32.xlu0 %v575, 12
    %v1496 = vpop.permute.xlu0 %1495
    %1497 = vrot.lane.b32.xlu0 %v1433, 12
    %v1498 = vpop.permute.xlu0 %1497
    %1499 = vrot.lane.b32.xlu0 %v1434, 12
    %v1500 = vpop.permute.xlu0 %1499
    %vm1533 = vcmask 126048
    %1534 = vst.msk [vmem:[#allocation3] sm:$0xf] %vm1533, %v1438
    %1535 = vst.msk [vmem:[#allocation3 + $0x4] sm:$0xf] %vm1533, %v1440
    %1536 = vst.msk [vmem:[#allocation3 + $0x8] sm:$0xf] %vm1533, %v1442
    %1537 = vst.msk [vmem:[#allocation3 + $0xc] sm:$0xf] %vm1533, %v1444
    %1538 = vst.msk [vmem:[#allocation3 + $0x10] sm:$0xf] %vm1533, %v1446
    %1539 = vst.msk [vmem:[#allocation3 + $0x14] sm:$0xf] %vm1533, %v1448
    %1540 = vst.msk [vmem:[#allocation3 + $0x18] sm:$0xf] %vm1533, %v1450
    %1541 = vst.msk [vmem:[#allocation3 + $0x1c] sm:$0xf] %vm1533, %v1452
    %1542 = vst.msk [vmem:[#allocation3 + $0x20] sm:$0xf] %vm1533, %v1454
    %1543 = vst.msk [vmem:[#allocation3 + $0x24] sm:$0xf] %vm1533, %v1456
    %1544 = vst.msk [vmem:[#allocation3 + $0x28] sm:$0xf] %vm1533, %v1458
    %1545 = vst.msk [vmem:[#allocation3 + $0x2c] sm:$0xf] %vm1533, %v1460
    %1546 = vst.msk [vmem:[#allocation3 + $0x30] sm:$0xf] %vm1533, %v1462
    %1547 = vst.msk [vmem:[#allocation3 + $0x34] sm:$0xf] %vm1533, %v1464
    %1548 = vst.msk [vmem:[#allocation3 + $0x38] sm:$0xf] %vm1533, %v1466
    %1549 = vst.msk [vmem:[#allocation3 + $0x3c] sm:$0xf] %vm1533, %v1468
    %1550 = vst.msk [vmem:[#allocation3 + $0x40] sm:$0xf] %vm1533, %v1470
    %1551 = vst.msk [vmem:[#allocation3 + $0x44] sm:$0xf] %vm1533, %v1472
    %1552 = vst.msk [vmem:[#allocation3 + $0x48] sm:$0xf] %vm1533, %v1474
    %1553 = vst.msk [vmem:[#allocation3 + $0x4c] sm:$0xf] %vm1533, %v1476
    %1554 = vst.msk [vmem:[#allocation3 + $0x50] sm:$0xf] %vm1533, %v1478
    %1555 = vst.msk [vmem:[#allocation3 + $0x54] sm:$0xf] %vm1533, %v1480
    %1556 = vst.msk [vmem:[#allocation3 + $0x58] sm:$0xf] %vm1533, %v1482
    %1557 = vst.msk [vmem:[#allocation3 + $0x5c] sm:$0xf] %vm1533, %v1484
    %1558 = vst.msk [vmem:[#allocation3 + $0x60] sm:$0xf] %vm1533, %v1486
    %1559 = vst.msk [vmem:[#allocation3 + $0x64] sm:$0xf] %vm1533, %v1488
    %1560 = vst.msk [vmem:[#allocation3 + $0x68] sm:$0xf] %vm1533, %v1490
    %1561 = vst.msk [vmem:[#allocation3 + $0x6c] sm:$0xf] %vm1533, %v1492
    %1562 = vst.msk [vmem:[#allocation3 + $0x70] sm:$0xf] %vm1533, %v1494
    %1563 = vst.msk [vmem:[#allocation3 + $0x74] sm:$0xf] %vm1533, %v1496
    %1564 = vst.msk [vmem:[#allocation3 + $0x78] sm:$0xf] %vm1533, %v1498
    %1565 = vst.msk [vmem:[#allocation3 + $0x7c] sm:$0xf] %vm1533, %v1500
    %v1566 = vpack.c.bf16 %v540, %v540
    %v1568 = vshrl.u32 %v1433, 16
    %v1570 = vrot.slane %v1568, 4
    %v1571 = vshll.u32 %v1433, 16
    %v1573 = vrot.slane %v1571, 5
    %v1574 = vor.u32 %v1570, %v1573
    %v1575 = vrot.slane %v1574, 4
    %v1577 = vshll.u32 %v1434, 16
    %v1579 = vrot.slane %v1577, 5
    %v1580 = vsel %vm627, %v1575, %v1579
    %v1581 = vshrl.u32 %v1434, 16
    %v1583 = vrot.slane %v1581, 4
    %v1584 = vor.u32 %v1583, %v1579
    %v1585 = vrot.slane %v1584, 4
    %v1587 = vshll.u32 %v1566, 16
    %v1589 = vrot.slane %v1587, 5
    %v1590 = vsel %vm627, %v1585, %v1589
    %1591 = vrot.lane.b32.xlu0 %v665, 16
    %v1592 = vpop.permute.xlu0 %1591
    %1593 = vrot.lane.b32.xlu0 %v675, 16
    %v1594 = vpop.permute.xlu0 %1593
    %1595 = vrot.lane.b32.xlu0 %v689, 16
    %v1596 = vpop.permute.xlu0 %1595
    %1597 = vrot.lane.b32.xlu0 %v699, 16
    %v1598 = vpop.permute.xlu0 %1597
    %1599 = vrot.lane.b32.xlu0 %v713, 16
    %v1600 = vpop.permute.xlu0 %1599
    %1601 = vrot.lane.b32.xlu0 %v723, 16
    %v1602 = vpop.permute.xlu0 %1601
    %1603 = vrot.lane.b32.xlu0 %v737, 16
    %v1604 = vpop.permute.xlu0 %1603
    %1605 = vrot.lane.b32.xlu0 %v747, 16
    %v1606 = vpop.permute.xlu0 %1605
    %1607 = vrot.lane.b32.xlu0 %v761, 16
    %v1608 = vpop.permute.xlu0 %1607
    %1609 = vrot.lane.b32.xlu0 %v771, 16
    %v1610 = vpop.permute.xlu0 %1609
    %1611 = vrot.lane.b32.xlu0 %v785, 16
    %v1612 = vpop.permute.xlu0 %1611
    %1613 = vrot.lane.b32.xlu0 %v795, 16
    %v1614 = vpop.permute.xlu0 %1613
    %1615 = vrot.lane.b32.xlu0 %v809, 16
    %v1616 = vpop.permute.xlu0 %1615
    %1617 = vrot.lane.b32.xlu0 %v819, 16
    %v1618 = vpop.permute.xlu0 %1617
    %1619 = vrot.lane.b32.xlu0 %v833, 16
    %v1620 = vpop.permute.xlu0 %1619
    %1621 = vrot.lane.b32.xlu0 %v843, 16
    %v1622 = vpop.permute.xlu0 %1621
    %1623 = vrot.lane.b32.xlu0 %v857, 16
    %v1624 = vpop.permute.xlu0 %1623
    %1625 = vrot.lane.b32.xlu0 %v867, 16
    %v1626 = vpop.permute.xlu0 %1625
    %1627 = vrot.lane.b32.xlu0 %v881, 16
    %v1628 = vpop.permute.xlu0 %1627
    %1629 = vrot.lane.b32.xlu0 %v891, 16
    %v1630 = vpop.permute.xlu0 %1629
    %1631 = vrot.lane.b32.xlu0 %v905, 16
    %v1632 = vpop.permute.xlu0 %1631
    %1633 = vrot.lane.b32.xlu0 %v915, 16
    %v1634 = vpop.permute.xlu0 %1633
    %1635 = vrot.lane.b32.xlu0 %v929, 16
    %v1636 = vpop.permute.xlu0 %1635
    %1637 = vrot.lane.b32.xlu0 %v939, 16
    %v1638 = vpop.permute.xlu0 %1637
    %1639 = vrot.lane.b32.xlu0 %v953, 16
    %v1640 = vpop.permute.xlu0 %1639
    %1641 = vrot.lane.b32.xlu0 %v963, 16
    %v1642 = vpop.permute.xlu0 %1641
    %1643 = vrot.lane.b32.xlu0 %v977, 16
    %v1644 = vpop.permute.xlu0 %1643
    %1645 = vrot.lane.b32.xlu0 %v987, 16
    %v1646 = vpop.permute.xlu0 %1645
    %1647 = vrot.lane.b32.xlu0 %v1001, 16
    %v1648 = vpop.permute.xlu0 %1647
    %1649 = vrot.lane.b32.xlu0 %v1011, 16
    %v1650 = vpop.permute.xlu0 %1649
    %1651 = vrot.lane.b32.xlu0 %v1580, 16
    %v1652 = vpop.permute.xlu0 %1651
    %1653 = vrot.lane.b32.xlu0 %v1590, 16
    %v1654 = vpop.permute.xlu0 %1653
    %vm1687 = vcmask 158848
    %1688 = vst.msk [vmem:[#allocation3] sm:$0xf] %vm1687, %v1592
    %1689 = vst.msk [vmem:[#allocation3 + $0x4] sm:$0xf] %vm1687, %v1594
    %1690 = vst.msk [vmem:[#allocation3 + $0x8] sm:$0xf] %vm1687, %v1596
    %1691 = vst.msk [vmem:[#allocation3 + $0xc] sm:$0xf] %vm1687, %v1598
    %1692 = vst.msk [vmem:[#allocation3 + $0x10] sm:$0xf] %vm1687, %v1600
    %1693 = vst.msk [vmem:[#allocation3 + $0x14] sm:$0xf] %vm1687, %v1602
    %1694 = vst.msk [vmem:[#allocation3 + $0x18] sm:$0xf] %vm1687, %v1604
    %1695 = vst.msk [vmem:[#allocation3 + $0x1c] sm:$0xf] %vm1687, %v1606
    %1696 = vst.msk [vmem:[#allocation3 + $0x20] sm:$0xf] %vm1687, %v1608
    %1697 = vst.msk [vmem:[#allocation3 + $0x24] sm:$0xf] %vm1687, %v1610
    %1698 = vst.msk [vmem:[#allocation3 + $0x28] sm:$0xf] %vm1687, %v1612
    %1699 = vst.msk [vmem:[#allocation3 + $0x2c] sm:$0xf] %vm1687, %v1614
    %1700 = vst.msk [vmem:[#allocation3 + $0x30] sm:$0xf] %vm1687, %v1616
    %1701 = vst.msk [vmem:[#allocation3 + $0x34] sm:$0xf] %vm1687, %v1618
    %1702 = vst.msk [vmem:[#allocation3 + $0x38] sm:$0xf] %vm1687, %v1620
    %1703 = vst.msk [vmem:[#allocation3 + $0x3c] sm:$0xf] %vm1687, %v1622
    %1704 = vst.msk [vmem:[#allocation3 + $0x40] sm:$0xf] %vm1687, %v1624
    %1705 = vst.msk [vmem:[#allocation3 + $0x44] sm:$0xf] %vm1687, %v1626
    %1706 = vst.msk [vmem:[#allocation3 + $0x48] sm:$0xf] %vm1687, %v1628
    %1707 = vst.msk [vmem:[#allocation3 + $0x4c] sm:$0xf] %vm1687, %v1630
    %1708 = vst.msk [vmem:[#allocation3 + $0x50] sm:$0xf] %vm1687, %v1632
    %1709 = vst.msk [vmem:[#allocation3 + $0x54] sm:$0xf] %vm1687, %v1634
    %1710 = vst.msk [vmem:[#allocation3 + $0x58] sm:$0xf] %vm1687, %v1636
    %1711 = vst.msk [vmem:[#allocation3 + $0x5c] sm:$0xf] %vm1687, %v1638
    %1712 = vst.msk [vmem:[#allocation3 + $0x60] sm:$0xf] %vm1687, %v1640
    %1713 = vst.msk [vmem:[#allocation3 + $0x64] sm:$0xf] %vm1687, %v1642
    %1714 = vst.msk [vmem:[#allocation3 + $0x68] sm:$0xf] %vm1687, %v1644
    %1715 = vst.msk [vmem:[#allocation3 + $0x6c] sm:$0xf] %vm1687, %v1646
    %1716 = vst.msk [vmem:[#allocation3 + $0x70] sm:$0xf] %vm1687, %v1648
    %1717 = vst.msk [vmem:[#allocation3 + $0x74] sm:$0xf] %vm1687, %v1650
    %1718 = vst.msk [vmem:[#allocation3 + $0x78] sm:$0xf] %vm1687, %v1652
    %1719 = vst.msk [vmem:[#allocation3 + $0x7c] sm:$0xf] %vm1687, %v1654
    %v1721 = vrot.slane %v1433, 5
    %v1722 = vrot.slane %v1721, 4
    %v1723 = vrot.slane %v1434, 5
    %v1724 = vsel %vm1191, %v1722, %v1723
    %v1725 = vrot.slane %v1723, 4
    %v1726 = vrot.slane %v1566, 5
    %v1727 = vsel %vm1191, %v1725, %v1726
    %1728 = vrot.lane.b32.xlu0 %v1202, 20
    %v1729 = vpop.permute.xlu0 %1728
    %1730 = vrot.lane.b32.xlu0 %v1205, 20
    %v1731 = vpop.permute.xlu0 %1730
    %1732 = vrot.lane.b32.xlu0 %v1209, 20
    %v1733 = vpop.permute.xlu0 %1732
    %1734 = vrot.lane.b32.xlu0 %v1212, 20
    %v1735 = vpop.permute.xlu0 %1734
    %1736 = vrot.lane.b32.xlu0 %v1216, 20
    %v1737 = vpop.permute.xlu0 %1736
    %1738 = vrot.lane.b32.xlu0 %v1219, 20
    %v1739 = vpop.permute.xlu0 %1738
    %1740 = vrot.lane.b32.xlu0 %v1223, 20
    %v1741 = vpop.permute.xlu0 %1740
    %1742 = vrot.lane.b32.xlu0 %v1226, 20
    %v1743 = vpop.permute.xlu0 %1742
    %1744 = vrot.lane.b32.xlu0 %v1230, 20
    %v1745 = vpop.permute.xlu0 %1744
    %1746 = vrot.lane.b32.xlu0 %v1233, 20
    %v1747 = vpop.permute.xlu0 %1746
    %1748 = vrot.lane.b32.xlu0 %v1237, 20
    %v1749 = vpop.permute.xlu0 %1748
    %1750 = vrot.lane.b32.xlu0 %v1240, 20
    %v1751 = vpop.permute.xlu0 %1750
    %1752 = vrot.lane.b32.xlu0 %v1244, 20
    %v1753 = vpop.permute.xlu0 %1752
    %1754 = vrot.lane.b32.xlu0 %v1247, 20
    %v1755 = vpop.permute.xlu0 %1754
    %1756 = vrot.lane.b32.xlu0 %v1251, 20
    %v1757 = vpop.permute.xlu0 %1756
    %1758 = vrot.lane.b32.xlu0 %v1254, 20
    %v1759 = vpop.permute.xlu0 %1758
    %1760 = vrot.lane.b32.xlu0 %v1258, 20
    %v1761 = vpop.permute.xlu0 %1760
    %1762 = vrot.lane.b32.xlu0 %v1261, 20
    %v1763 = vpop.permute.xlu0 %1762
    %1764 = vrot.lane.b32.xlu0 %v1265, 20
    %v1765 = vpop.permute.xlu0 %1764
    %1766 = vrot.lane.b32.xlu0 %v1268, 20
    %v1767 = vpop.permute.xlu0 %1766
    %1768 = vrot.lane.b32.xlu0 %v1272, 20
    %v1769 = vpop.permute.xlu0 %1768
    %1770 = vrot.lane.b32.xlu0 %v1275, 20
    %v1771 = vpop.permute.xlu0 %1770
    %1772 = vrot.lane.b32.xlu0 %v1279, 20
    %v1773 = vpop.permute.xlu0 %1772
    %1774 = vrot.lane.b32.xlu0 %v1282, 20
    %v1775 = vpop.permute.xlu0 %1774
    %1776 = vrot.lane.b32.xlu0 %v1286, 20
    %v1777 = vpop.permute.xlu0 %1776
    %1778 = vrot.lane.b32.xlu0 %v1289, 20
    %v1779 = vpop.permute.xlu0 %1778
    %1780 = vrot.lane.b32.xlu0 %v1293, 20
    %v1781 = vpop.permute.xlu0 %1780
    %1782 = vrot.lane.b32.xlu0 %v1296, 20
    %v1783 = vpop.permute.xlu0 %1782
    %1784 = vrot.lane.b32.xlu0 %v1300, 20
    %v1785 = vpop.permute.xlu0 %1784
    %1786 = vrot.lane.b32.xlu0 %v1303, 20
    %v1787 = vpop.permute.xlu0 %1786
    %1788 = vrot.lane.b32.xlu0 %v1724, 20
    %v1789 = vpop.permute.xlu0 %1788
    %1790 = vrot.lane.b32.xlu0 %v1727, 20
    %v1791 = vpop.permute.xlu0 %1790
    %vm1824 = vcmask 191648
    %1825 = vst.msk [vmem:[#allocation3] sm:$0xf] %vm1824, %v1729
    %1826 = vst.msk [vmem:[#allocation3 + $0x4] sm:$0xf] %vm1824, %v1731
    %1827 = vst.msk [vmem:[#allocation3 + $0x8] sm:$0xf] %vm1824, %v1733
    %1828 = vst.msk [vmem:[#allocation3 + $0xc] sm:$0xf] %vm1824, %v1735
    %1829 = vst.msk [vmem:[#allocation3 + $0x10] sm:$0xf] %vm1824, %v1737
    %1830 = vst.msk [vmem:[#allocation3 + $0x14] sm:$0xf] %vm1824, %v1739
    %1831 = vst.msk [vmem:[#allocation3 + $0x18] sm:$0xf] %vm1824, %v1741
    %1832 = vst.msk [vmem:[#allocation3 + $0x1c] sm:$0xf] %vm1824, %v1743
    %1833 = vst.msk [vmem:[#allocation3 + $0x20] sm:$0xf] %vm1824, %v1745
    %1834 = vst.msk [vmem:[#allocation3 + $0x24] sm:$0xf] %vm1824, %v1747
    %1835 = vst.msk [vmem:[#allocation3 + $0x28] sm:$0xf] %vm1824, %v1749
    %1836 = vst.msk [vmem:[#allocation3 + $0x2c] sm:$0xf] %vm1824, %v1751
    %1837 = vst.msk [vmem:[#allocation3 + $0x30] sm:$0xf] %vm1824, %v1753
    %1838 = vst.msk [vmem:[#allocation3 + $0x34] sm:$0xf] %vm1824, %v1755
    %1839 = vst.msk [vmem:[#allocation3 + $0x38] sm:$0xf] %vm1824, %v1757
    %1840 = vst.msk [vmem:[#allocation3 + $0x3c] sm:$0xf] %vm1824, %v1759
    %1841 = vst.msk [vmem:[#allocation3 + $0x40] sm:$0xf] %vm1824, %v1761
    %1842 = vst.msk [vmem:[#allocation3 + $0x44] sm:$0xf] %vm1824, %v1763
    %1843 = vst.msk [vmem:[#allocation3 + $0x48] sm:$0xf] %vm1824, %v1765
    %1844 = vst.msk [vmem:[#allocation3 + $0x4c] sm:$0xf] %vm1824, %v1767
    %1845 = vst.msk [vmem:[#allocation3 + $0x50] sm:$0xf] %vm1824, %v1769
    %1846 = vst.msk [vmem:[#allocation3 + $0x54] sm:$0xf] %vm1824, %v1771
    %1847 = vst.msk [vmem:[#allocation3 + $0x58] sm:$0xf] %vm1824, %v1773
    %1848 = vst.msk [vmem:[#allocation3 + $0x5c] sm:$0xf] %vm1824, %v1775
    %1849 = vst.msk [vmem:[#allocation3 + $0x60] sm:$0xf] %vm1824, %v1777
    %1850 = vst.msk [vmem:[#allocation3 + $0x64] sm:$0xf] %vm1824, %v1779
    %1851 = vst.msk [vmem:[#allocation3 + $0x68] sm:$0xf] %vm1824, %v1781
    %1852 = vst.msk [vmem:[#allocation3 + $0x6c] sm:$0xf] %vm1824, %v1783
    %1853 = vst.msk [vmem:[#allocation3 + $0x70] sm:$0xf] %vm1824, %v1785
    %1854 = vst.msk [vmem:[#allocation3 + $0x74] sm:$0xf] %vm1824, %v1787
    %1855 = vst.msk [vmem:[#allocation3 + $0x78] sm:$0xf] %vm1824, %v1789
    %1856 = vst.msk [vmem:[#allocation3 + $0x7c] sm:$0xf] %vm1824, %v1791
    %v1857 = vpack.c.bf16 %v541, %v541
    %v1858 = vpack.c.bf16 %v542, %v542
    %1861 = vrot.lane.b32.xlu0 %v548, 24
    %v1862 = vpop.permute.xlu0 %1861
    %1863 = vrot.lane.b32.xlu0 %v549, 24
    %v1864 = vpop.permute.xlu0 %1863
    %1865 = vrot.lane.b32.xlu0 %v550, 24
    %v1866 = vpop.permute.xlu0 %1865
    %1867 = vrot.lane.b32.xlu0 %v551, 24
    %v1868 = vpop.permute.xlu0 %1867
    %1869 = vrot.lane.b32.xlu0 %v552, 24
    %v1870 = vpop.permute.xlu0 %1869
    %1871 = vrot.lane.b32.xlu0 %v553, 24
    %v1872 = vpop.permute.xlu0 %1871
    %1873 = vrot.lane.b32.xlu0 %v554, 24
    %v1874 = vpop.permute.xlu0 %1873
    %1875 = vrot.lane.b32.xlu0 %v555, 24
    %v1876 = vpop.permute.xlu0 %1875
    %1877 = vrot.lane.b32.xlu0 %v556, 24
    %v1878 = vpop.permute.xlu0 %1877
    %1879 = vrot.lane.b32.xlu0 %v557, 24
    %v1880 = vpop.permute.xlu0 %1879
    %1881 = vrot.lane.b32.xlu0 %v558, 24
    %v1882 = vpop.permute.xlu0 %1881
    %1883 = vrot.lane.b32.xlu0 %v559, 24
    %v1884 = vpop.permute.xlu0 %1883
    %1885 = vrot.lane.b32.xlu0 %v560, 24
    %v1886 = vpop.permute.xlu0 %1885
    %1887 = vrot.lane.b32.xlu0 %v561, 24
    %v1888 = vpop.permute.xlu0 %1887
    %1889 = vrot.lane.b32.xlu0 %v562, 24
    %v1890 = vpop.permute.xlu0 %1889
    %1891 = vrot.lane.b32.xlu0 %v563, 24
    %v1892 = vpop.permute.xlu0 %1891
    %1893 = vrot.lane.b32.xlu0 %v564, 24
    %v1894 = vpop.permute.xlu0 %1893
    %1895 = vrot.lane.b32.xlu0 %v565, 24
    %v1896 = vpop.permute.xlu0 %1895
    %1897 = vrot.lane.b32.xlu0 %v566, 24
    %v1898 = vpop.permute.xlu0 %1897
    %1899 = vrot.lane.b32.xlu0 %v567, 24
    %v1900 = vpop.permute.xlu0 %1899
    %1901 = vrot.lane.b32.xlu0 %v568, 24
    %v1902 = vpop.permute.xlu0 %1901
    %1903 = vrot.lane.b32.xlu0 %v569, 24
    %v1904 = vpop.permute.xlu0 %1903
    %1905 = vrot.lane.b32.xlu0 %v570, 24
    %v1906 = vpop.permute.xlu0 %1905
    %1907 = vrot.lane.b32.xlu0 %v571, 24
    %v1908 = vpop.permute.xlu0 %1907
    %1909 = vrot.lane.b32.xlu0 %v572, 24
    %v1910 = vpop.permute.xlu0 %1909
    %1911 = vrot.lane.b32.xlu0 %v573, 24
    %v1912 = vpop.permute.xlu0 %1911
    %1913 = vrot.lane.b32.xlu0 %v574, 24
    %v1914 = vpop.permute.xlu0 %1913
    %1915 = vrot.lane.b32.xlu0 %v575, 24
    %v1916 = vpop.permute.xlu0 %1915
    %1917 = vrot.lane.b32.xlu0 %v1433, 24
    %v1918 = vpop.permute.xlu0 %1917
    %1919 = vrot.lane.b32.xlu0 %v1434, 24
    %v1920 = vpop.permute.xlu0 %1919
    %1921 = vrot.lane.b32.xlu0 %v1857, 24
    %v1922 = vpop.permute.xlu0 %1921
    %1923 = vrot.lane.b32.xlu0 %v1858, 24
    %v1924 = vpop.permute.xlu0 %1923
    %vm1957 = vcmask 224448
    %1958 = vst.msk [vmem:[#allocation3] sm:$0xf] %vm1957, %v1862
    %1959 = vst.msk [vmem:[#allocation3 + $0x4] sm:$0xf] %vm1957, %v1864
    %1960 = vst.msk [vmem:[#allocation3 + $0x8] sm:$0xf] %vm1957, %v1866
    %1961 = vst.msk [vmem:[#allocation3 + $0xc] sm:$0xf] %vm1957, %v1868
    %1962 = vst.msk [vmem:[#allocation3 + $0x10] sm:$0xf] %vm1957, %v1870
    %1963 = vst.msk [vmem:[#allocation3 + $0x14] sm:$0xf] %vm1957, %v1872
    %1964 = vst.msk [vmem:[#allocation3 + $0x18] sm:$0xf] %vm1957, %v1874
    %1965 = vst.msk [vmem:[#allocation3 + $0x1c] sm:$0xf] %vm1957, %v1876
    %1966 = vst.msk [vmem:[#allocation3 + $0x20] sm:$0xf] %vm1957, %v1878
    %1967 = vst.msk [vmem:[#allocation3 + $0x24] sm:$0xf] %vm1957, %v1880
    %1968 = vst.msk [vmem:[#allocation3 + $0x28] sm:$0xf] %vm1957, %v1882
    %1969 = vst.msk [vmem:[#allocation3 + $0x2c] sm:$0xf] %vm1957, %v1884
    %1970 = vst.msk [vmem:[#allocation3 + $0x30] sm:$0xf] %vm1957, %v1886
    %1971 = vst.msk [vmem:[#allocation3 + $0x34] sm:$0xf] %vm1957, %v1888
    %1972 = vst.msk [vmem:[#allocation3 + $0x38] sm:$0xf] %vm1957, %v1890
    %1973 = vst.msk [vmem:[#allocation3 + $0x3c] sm:$0xf] %vm1957, %v1892
    %1974 = vst.msk [vmem:[#allocation3 + $0x40] sm:$0xf] %vm1957, %v1894
    %1975 = vst.msk [vmem:[#allocation3 + $0x44] sm:$0xf] %vm1957, %v1896
    %1976 = vst.msk [vmem:[#allocation3 + $0x48] sm:$0xf] %vm1957, %v1898
    %1977 = vst.msk [vmem:[#allocation3 + $0x4c] sm:$0xf] %vm1957, %v1900
    %1978 = vst.msk [vmem:[#allocation3 + $0x50] sm:$0xf] %vm1957, %v1902
    %1979 = vst.msk [vmem:[#allocation3 + $0x54] sm:$0xf] %vm1957, %v1904
    %1980 = vst.msk [vmem:[#allocation3 + $0x58] sm:$0xf] %vm1957, %v1906
    %1981 = vst.msk [vmem:[#allocation3 + $0x5c] sm:$0xf] %vm1957, %v1908
    %1982 = vst.msk [vmem:[#allocation3 + $0x60] sm:$0xf] %vm1957, %v1910
    %1983 = vst.msk [vmem:[#allocation3 + $0x64] sm:$0xf] %vm1957, %v1912
    %1984 = vst.msk [vmem:[#allocation3 + $0x68] sm:$0xf] %vm1957, %v1914
    %1985 = vst.msk [vmem:[#allocation3 + $0x6c] sm:$0xf] %vm1957, %v1916
    %1986 = vst.msk [vmem:[#allocation3 + $0x70] sm:$0xf] %vm1957, %v1918
    %1987 = vst.msk [vmem:[#allocation3 + $0x74] sm:$0xf] %vm1957, %v1920
    %1988 = vst.msk [vmem:[#allocation3 + $0x78] sm:$0xf] %vm1957, %v1922
    %1989 = vst.msk [vmem:[#allocation3 + $0x7c] sm:$0xf] %vm1957, %v1924
    %v1990 = vpack.c.bf16 %v543, %v543
    %v1992 = vshrl.u32 %v1857, 16
    %v1994 = vrot.slane %v1992, 4
    %v1995 = vshll.u32 %v1857, 16
    %v1997 = vrot.slane %v1995, 5
    %v1998 = vor.u32 %v1994, %v1997
    %v1999 = vrot.slane %v1998, 4
    %v2001 = vshll.u32 %v1858, 16
    %v2003 = vrot.slane %v2001, 5
    %v2004 = vsel %vm627, %v1999, %v2003
    %v2005 = vshrl.u32 %v1858, 16
    %v2007 = vrot.slane %v2005, 4
    %v2008 = vor.u32 %v2007, %v2003
    %v2009 = vrot.slane %v2008, 4
    %v2011 = vshll.u32 %v1990, 16
    %v2013 = vrot.slane %v2011, 5
    %v2014 = vsel %vm627, %v2009, %v2013
    %2015 = vrot.lane.b32.xlu0 %v689, 28
    %v2016 = vpop.permute.xlu0 %2015
    %2017 = vrot.lane.b32.xlu0 %v699, 28
    %v2018 = vpop.permute.xlu0 %2017
    %2019 = vrot.lane.b32.xlu0 %v713, 28
    %v2020 = vpop.permute.xlu0 %2019
    %2021 = vrot.lane.b32.xlu0 %v723, 28
    %v2022 = vpop.permute.xlu0 %2021
    %2023 = vrot.lane.b32.xlu0 %v737, 28
    %v2024 = vpop.permute.xlu0 %2023
    %2025 = vrot.lane.b32.xlu0 %v747, 28
    %v2026 = vpop.permute.xlu0 %2025
    %2027 = vrot.lane.b32.xlu0 %v761, 28
    %v2028 = vpop.permute.xlu0 %2027
    %2029 = vrot.lane.b32.xlu0 %v771, 28
    %v2030 = vpop.permute.xlu0 %2029
    %2031 = vrot.lane.b32.xlu0 %v785, 28
    %v2032 = vpop.permute.xlu0 %2031
    %2033 = vrot.lane.b32.xlu0 %v795, 28
    %v2034 = vpop.permute.xlu0 %2033
    %2035 = vrot.lane.b32.xlu0 %v809, 28
    %v2036 = vpop.permute.xlu0 %2035
    %2037 = vrot.lane.b32.xlu0 %v819, 28
    %v2038 = vpop.permute.xlu0 %2037
    %2039 = vrot.lane.b32.xlu0 %v833, 28
    %v2040 = vpop.permute.xlu0 %2039
    %2041 = vrot.lane.b32.xlu0 %v843, 28
    %v2042 = vpop.permute.xlu0 %2041
    %2043 = vrot.lane.b32.xlu0 %v857, 28
    %v2044 = vpop.permute.xlu0 %2043
    %2045 = vrot.lane.b32.xlu0 %v867, 28
    %v2046 = vpop.permute.xlu0 %2045
    %2047 = vrot.lane.b32.xlu0 %v881, 28
    %v2048 = vpop.permute.xlu0 %2047
    %2049 = vrot.lane.b32.xlu0 %v891, 28
    %v2050 = vpop.permute.xlu0 %2049
    %2051 = vrot.lane.b32.xlu0 %v905, 28
    %v2052 = vpop.permute.xlu0 %2051
    %2053 = vrot.lane.b32.xlu0 %v915, 28
    %v2054 = vpop.permute.xlu0 %2053
    %2055 = vrot.lane.b32.xlu0 %v929, 28
    %v2056 = vpop.permute.xlu0 %2055
    %2057 = vrot.lane.b32.xlu0 %v939, 28
    %v2058 = vpop.permute.xlu0 %2057
    %2059 = vrot.lane.b32.xlu0 %v953, 28
    %v2060 = vpop.permute.xlu0 %2059
    %2061 = vrot.lane.b32.xlu0 %v963, 28
    %v2062 = vpop.permute.xlu0 %2061
    %2063 = vrot.lane.b32.xlu0 %v977, 28
    %v2064 = vpop.permute.xlu0 %2063
    %2065 = vrot.lane.b32.xlu0 %v987, 28
    %v2066 = vpop.permute.xlu0 %2065
    %2067 = vrot.lane.b32.xlu0 %v1001, 28
    %v2068 = vpop.permute.xlu0 %2067
    %2069 = vrot.lane.b32.xlu0 %v1011, 28
    %v2070 = vpop.permute.xlu0 %2069
    %2071 = vrot.lane.b32.xlu0 %v1580, 28
    %v2072 = vpop.permute.xlu0 %2071
    %2073 = vrot.lane.b32.xlu0 %v1590, 28
    %v2074 = vpop.permute.xlu0 %2073
    %2075 = vrot.lane.b32.xlu0 %v2004, 28
    %v2076 = vpop.permute.xlu0 %2075
    %2077 = vrot.lane.b32.xlu0 %v2014, 28
    %v2078 = vpop.permute.xlu0 %2077
    %vm2111 = vcmask 257248
    %2112 = vst.msk [vmem:[#allocation3] sm:$0xf] %vm2111, %v2016
    %2113 = vst.msk [vmem:[#allocation3 + $0x4] sm:$0xf] %vm2111, %v2018
    %2114 = vst.msk [vmem:[#allocation3 + $0x8] sm:$0xf] %vm2111, %v2020
    %2115 = vst.msk [vmem:[#allocation3 + $0xc] sm:$0xf] %vm2111, %v2022
    %2116 = vst.msk [vmem:[#allocation3 + $0x10] sm:$0xf] %vm2111, %v2024
    %2117 = vst.msk [vmem:[#allocation3 + $0x14] sm:$0xf] %vm2111, %v2026
    %2118 = vst.msk [vmem:[#allocation3 + $0x18] sm:$0xf] %vm2111, %v2028
    %2119 = vst.msk [vmem:[#allocation3 + $0x1c] sm:$0xf] %vm2111, %v2030
    %2120 = vst.msk [vmem:[#allocation3 + $0x20] sm:$0xf] %vm2111, %v2032
    %2121 = vst.msk [vmem:[#allocation3 + $0x24] sm:$0xf] %vm2111, %v2034
    %2122 = vst.msk [vmem:[#allocation3 + $0x28] sm:$0xf] %vm2111, %v2036
    %2123 = vst.msk [vmem:[#allocation3 + $0x2c] sm:$0xf] %vm2111, %v2038
    %2124 = vst.msk [vmem:[#allocation3 + $0x30] sm:$0xf] %vm2111, %v2040
    %2125 = vst.msk [vmem:[#allocation3 + $0x34] sm:$0xf] %vm2111, %v2042
    %2126 = vst.msk [vmem:[#allocation3 + $0x38] sm:$0xf] %vm2111, %v2044
    %2127 = vst.msk [vmem:[#allocation3 + $0x3c] sm:$0xf] %vm2111, %v2046
    %2128 = vst.msk [vmem:[#allocation3 + $0x40] sm:$0xf] %vm2111, %v2048
    %2129 = vst.msk [vmem:[#allocation3 + $0x44] sm:$0xf] %vm2111, %v2050
    %2130 = vst.msk [vmem:[#allocation3 + $0x48] sm:$0xf] %vm2111, %v2052
    %2131 = vst.msk [vmem:[#allocation3 + $0x4c] sm:$0xf] %vm2111, %v2054
    %2132 = vst.msk [vmem:[#allocation3 + $0x50] sm:$0xf] %vm2111, %v2056
    %2133 = vst.msk [vmem:[#allocation3 + $0x54] sm:$0xf] %vm2111, %v2058
    %2134 = vst.msk [vmem:[#allocation3 + $0x58] sm:$0xf] %vm2111, %v2060
    %2135 = vst.msk [vmem:[#allocation3 + $0x5c] sm:$0xf] %vm2111, %v2062
    %2136 = vst.msk [vmem:[#allocation3 + $0x60] sm:$0xf] %vm2111, %v2064
    %2137 = vst.msk [vmem:[#allocation3 + $0x64] sm:$0xf] %vm2111, %v2066
    %2138 = vst.msk [vmem:[#allocation3 + $0x68] sm:$0xf] %vm2111, %v2068
    %2139 = vst.msk [vmem:[#allocation3 + $0x6c] sm:$0xf] %vm2111, %v2070
    %2140 = vst.msk [vmem:[#allocation3 + $0x70] sm:$0xf] %vm2111, %v2072
    %2141 = vst.msk [vmem:[#allocation3 + $0x74] sm:$0xf] %vm2111, %v2074
    %2142 = vst.msk [vmem:[#allocation3 + $0x78] sm:$0xf] %vm2111, %v2076
    %2143 = vst.msk [vmem:[#allocation3 + $0x7c] sm:$0xf] %vm2111, %v2078
    %v2145 = vrot.slane %v1857, 5
    %v2146 = vrot.slane %v2145, 4
    %v2147 = vrot.slane %v1858, 5
    %v2148 = vsel %vm1191, %v2146, %v2147
    %v2149 = vrot.slane %v2147, 4
    %v2150 = vrot.slane %v1990, 5
    %v2151 = vsel %vm1191, %v2149, %v2150
    %2152 = vrot.lane.b32.xlu0 %v1209, 32
    %v2153 = vpop.permute.xlu0 %2152
    %2154 = vrot.lane.b32.xlu0 %v1212, 32
    %v2155 = vpop.permute.xlu0 %2154
    %2156 = vrot.lane.b32.xlu0 %v1216, 32
    %v2157 = vpop.permute.xlu0 %2156
    %2158 = vrot.lane.b32.xlu0 %v1219, 32
    %v2159 = vpop.permute.xlu0 %2158
    %2160 = vrot.lane.b32.xlu0 %v1223, 32
    %v2161 = vpop.permute.xlu0 %2160
    %2162 = vrot.lane.b32.xlu0 %v1226, 32
    %v2163 = vpop.permute.xlu0 %2162
    %2164 = vrot.lane.b32.xlu0 %v1230, 32
    %v2165 = vpop.permute.xlu0 %2164
    %2166 = vrot.lane.b32.xlu0 %v1233, 32
    %v2167 = vpop.permute.xlu0 %2166
    %2168 = vrot.lane.b32.xlu0 %v1237, 32
    %v2169 = vpop.permute.xlu0 %2168
    %2170 = vrot.lane.b32.xlu0 %v1240, 32
    %v2171 = vpop.permute.xlu0 %2170
    %2172 = vrot.lane.b32.xlu0 %v1244, 32
    %v2173 = vpop.permute.xlu0 %2172
    %2174 = vrot.lane.b32.xlu0 %v1247, 32
    %v2175 = vpop.permute.xlu0 %2174
    %2176 = vrot.lane.b32.xlu0 %v1251, 32
    %v2177 = vpop.permute.xlu0 %2176
    %2178 = vrot.lane.b32.xlu0 %v1254, 32
    %v2179 = vpop.permute.xlu0 %2178
    %2180 = vrot.lane.b32.xlu0 %v1258, 32
    %v2181 = vpop.permute.xlu0 %2180
    %2182 = vrot.lane.b32.xlu0 %v1261, 32
    %v2183 = vpop.permute.xlu0 %2182
    %2184 = vrot.lane.b32.xlu0 %v1265, 32
    %v2185 = vpop.permute.xlu0 %2184
    %2186 = vrot.lane.b32.xlu0 %v1268, 32
    %v2187 = vpop.permute.xlu0 %2186
    %2188 = vrot.lane.b32.xlu0 %v1272, 32
    %v2189 = vpop.permute.xlu0 %2188
    %2190 = vrot.lane.b32.xlu0 %v1275, 32
    %v2191 = vpop.permute.xlu0 %2190
    %2192 = vrot.lane.b32.xlu0 %v1279, 32
    %v2193 = vpop.permute.xlu0 %2192
    %2194 = vrot.lane.b32.xlu0 %v1282, 32
    %v2195 = vpop.permute.xlu0 %2194
    %2196 = vrot.lane.b32.xlu0 %v1286, 32
    %v2197 = vpop.permute.xlu0 %2196
    %2198 = vrot.lane.b32.xlu0 %v1289, 32
    %v2199 = vpop.permute.xlu0 %2198
    %2200 = vrot.lane.b32.xlu0 %v1293, 32
    %v2201 = vpop.permute.xlu0 %2200
    %2202 = vrot.lane.b32.xlu0 %v1296, 32
    %v2203 = vpop.permute.xlu0 %2202
    %2204 = vrot.lane.b32.xlu0 %v1300, 32
    %v2205 = vpop.permute.xlu0 %2204
    %2206 = vrot.lane.b32.xlu0 %v1303, 32
    %v2207 = vpop.permute.xlu0 %2206
    %2208 = vrot.lane.b32.xlu0 %v1724, 32
    %v2209 = vpop.permute.xlu0 %2208
    %2210 = vrot.lane.b32.xlu0 %v1727, 32
    %v2211 = vpop.permute.xlu0 %2210
    %2212 = vrot.lane.b32.xlu0 %v2148, 32
    %v2213 = vpop.permute.xlu0 %2212
    %2214 = vrot.lane.b32.xlu0 %v2151, 32
    %v2215 = vpop.permute.xlu0 %2214
    %vm2248 = vcmask 290048
    %2249 = vst.msk [vmem:[#allocation3] sm:$0xf] %vm2248, %v2153
    %2250 = vst.msk [vmem:[#allocation3 + $0x4] sm:$0xf] %vm2248, %v2155
    %2251 = vst.msk [vmem:[#allocation3 + $0x8] sm:$0xf] %vm2248, %v2157
    %2252 = vst.msk [vmem:[#allocation3 + $0xc] sm:$0xf] %vm2248, %v2159
    %2253 = vst.msk [vmem:[#allocation3 + $0x10] sm:$0xf] %vm2248, %v2161
    %2254 = vst.msk [vmem:[#allocation3 + $0x14] sm:$0xf] %vm2248, %v2163
    %2255 = vst.msk [vmem:[#allocation3 + $0x18] sm:$0xf] %vm2248, %v2165
    %2256 = vst.msk [vmem:[#allocation3 + $0x1c] sm:$0xf] %vm2248, %v2167
    %2257 = vst.msk [vmem:[#allocation3 + $0x20] sm:$0xf] %vm2248, %v2169
    %2258 = vst.msk [vmem:[#allocation3 + $0x24] sm:$0xf] %vm2248, %v2171
    %2259 = vst.msk [vmem:[#allocation3 + $0x28] sm:$0xf] %vm2248, %v2173
    %2260 = vst.msk [vmem:[#allocation3 + $0x2c] sm:$0xf] %vm2248, %v2175
    %2261 = vst.msk [vmem:[#allocation3 + $0x30] sm:$0xf] %vm2248, %v2177
    %2262 = vst.msk [vmem:[#allocation3 + $0x34] sm:$0xf] %vm2248, %v2179
    %2263 = vst.msk [vmem:[#allocation3 + $0x38] sm:$0xf] %vm2248, %v2181
    %2264 = vst.msk [vmem:[#allocation3 + $0x3c] sm:$0xf] %vm2248, %v2183
    %2265 = vst.msk [vmem:[#allocation3 + $0x40] sm:$0xf] %vm2248, %v2185
    %2266 = vst.msk [vmem:[#allocation3 + $0x44] sm:$0xf] %vm2248, %v2187
    %2267 = vst.msk [vmem:[#allocation3 + $0x48] sm:$0xf] %vm2248, %v2189
    %2268 = vst.msk [vmem:[#allocation3 + $0x4c] sm:$0xf] %vm2248, %v2191
    %2269 = vst.msk [vmem:[#allocation3 + $0x50] sm:$0xf] %vm2248, %v2193
    %2270 = vst.msk [vmem:[#allocation3 + $0x54] sm:$0xf] %vm2248, %v2195
    %2271 = vst.msk [vmem:[#allocation3 + $0x58] sm:$0xf] %vm2248, %v2197
    %2272 = vst.msk [vmem:[#allocation3 + $0x5c] sm:$0xf] %vm2248, %v2199
    %2273 = vst.msk [vmem:[#allocation3 + $0x60] sm:$0xf] %vm2248, %v2201
    %2274 = vst.msk [vmem:[#allocation3 + $0x64] sm:$0xf] %vm2248, %v2203
    %2275 = vst.msk [vmem:[#allocation3 + $0x68] sm:$0xf] %vm2248, %v2205
    %2276 = vst.msk [vmem:[#allocation3 + $0x6c] sm:$0xf] %vm2248, %v2207
    %2277 = vst.msk [vmem:[#allocation3 + $0x70] sm:$0xf] %vm2248, %v2209
    %2278 = vst.msk [vmem:[#allocation3 + $0x74] sm:$0xf] %vm2248, %v2211
    %2279 = vst.msk [vmem:[#allocation3 + $0x78] sm:$0xf] %vm2248, %v2213
    %2280 = vst.msk [vmem:[#allocation3 + $0x7c] sm:$0xf] %vm2248, %v2215
    %v2281 = vld [vmem:[#allocation3] sm:$0xf]
    %v2282 = vld [vmem:[#allocation3 + $0x4] sm:$0xf]
    %v2283 = vld [vmem:[#allocation3 + $0x8] sm:$0xf]
    %v2284 = vld [vmem:[#allocation3 + $0xc] sm:$0xf]
    %v2285 = vld [vmem:[#allocation3 + $0x10] sm:$0xf]
    %v2286 = vld [vmem:[#allocation3 + $0x14] sm:$0xf]
    %v2287 = vld [vmem:[#allocation3 + $0x18] sm:$0xf]
    %v2288 = vld [vmem:[#allocation3 + $0x1c] sm:$0xf]
    %v2289 = vld [vmem:[#allocation3 + $0x20] sm:$0xf]
    %v2290 = vld [vmem:[#allocation3 + $0x24] sm:$0xf]
    %v2291 = vld [vmem:[#allocation3 + $0x28] sm:$0xf]
    %v2292 = vld [vmem:[#allocation3 + $0x2c] sm:$0xf]
    %v2293 = vld [vmem:[#allocation3 + $0x30] sm:$0xf]
    %v2294 = vld [vmem:[#allocation3 + $0x34] sm:$0xf]
    %v2295 = vld [vmem:[#allocation3 + $0x38] sm:$0xf]
    %v2296 = vld [vmem:[#allocation3 + $0x3c] sm:$0xf]
    %v2297 = vld [vmem:[#allocation3 + $0x40] sm:$0xf]
    %v2298 = vld [vmem:[#allocation3 + $0x44] sm:$0xf]
    %v2299 = vld [vmem:[#allocation3 + $0x48] sm:$0xf]
    %v2300 = vld [vmem:[#allocation3 + $0x4c] sm:$0xf]
    %v2301 = vld [vmem:[#allocation3 + $0x50] sm:$0xf]
    %v2302 = vld [vmem:[#allocation3 + $0x54] sm:$0xf]
    %v2303 = vld [vmem:[#allocation3 + $0x58] sm:$0xf]
    %v2304 = vld [vmem:[#allocation3 + $0x5c] sm:$0xf]
    %v2305 = vld [vmem:[#allocation3 + $0x60] sm:$0xf]
    %v2306 = vld [vmem:[#allocation3 + $0x64] sm:$0xf]
    %v2307 = vld [vmem:[#allocation3 + $0x68] sm:$0xf]
    %v2308 = vld [vmem:[#allocation3 + $0x6c] sm:$0xf]
    %v2309 = vld [vmem:[#allocation3 + $0x70] sm:$0xf]
    %v2310 = vld [vmem:[#allocation3 + $0x74] sm:$0xf]
    %v2311 = vld [vmem:[#allocation3 + $0x78] sm:$0xf]
    %v2312 = vld [vmem:[#allocation3 + $0x7c] sm:$0xf]
    %2314 = vset.pattern.permute.xlu0 0
    %2315 = vperm.xlu0 %2314, %v415
    %v2316 = vpop.permute.xlu0 %2315
    %v2350 = vunpack.c.l.b16 %v2281
    %v2351 = vunpack.c.l.b16 %v2282
    %v2352 = vunpack.c.l.b16 %v2283
    %v2353 = vunpack.c.l.b16 %v2284
    %v2354 = vunpack.c.l.b16 %v2285
    %v2355 = vunpack.c.l.b16 %v2286
    %v2356 = vunpack.c.l.b16 %v2287
    %v2357 = vunpack.c.l.b16 %v2288
    %v2358 = vunpack.c.l.b16 %v2289
    %v2359 = vunpack.c.l.b16 %v2290
    %v2360 = vunpack.c.l.b16 %v2291
    %v2361 = vunpack.c.l.b16 %v2292
    %v2362 = vunpack.c.l.b16 %v2293
    %v2363 = vunpack.c.l.b16 %v2294
    %v2364 = vunpack.c.l.b16 %v2295
    %v2365 = vunpack.c.l.b16 %v2296
    %v2366 = vunpack.c.l.b16 %v2297
    %v2367 = vunpack.c.l.b16 %v2298
    %v2368 = vunpack.c.l.b16 %v2299
    %v2369 = vunpack.c.l.b16 %v2300
    %v2370 = vunpack.c.l.b16 %v2301
    %v2371 = vunpack.c.l.b16 %v2302
    %v2372 = vunpack.c.l.b16 %v2303
    %v2373 = vunpack.c.l.b16 %v2304
    %v2374 = vunpack.c.l.b16 %v2305
    %v2375 = vunpack.c.l.b16 %v2306
    %v2376 = vunpack.c.l.b16 %v2307
    %v2377 = vunpack.c.l.b16 %v2308
    %v2378 = vunpack.c.l.b16 %v2309
    %v2379 = vunpack.c.l.b16 %v2310
    %v2380 = vunpack.c.l.b16 %v2311
    %v2381 = vunpack.c.l.b16 %v2312
    %v2382 = vpack.c.b16 %v2351, %v2350
    %v2383 = vpack.c.b16 %v2353, %v2352
    %v2384 = vpack.c.b16 %v2355, %v2354
    %v2385 = vpack.c.b16 %v2357, %v2356
    %v2386 = vpack.c.b16 %v2359, %v2358
    %v2387 = vpack.c.b16 %v2361, %v2360
    %v2388 = vpack.c.b16 %v2363, %v2362
    %v2389 = vpack.c.b16 %v2365, %v2364
    %v2390 = vpack.c.b16 %v2367, %v2366
    %v2391 = vpack.c.b16 %v2369, %v2368
    %v2392 = vpack.c.b16 %v2371, %v2370
    %v2393 = vpack.c.b16 %v2373, %v2372
    %v2394 = vpack.c.b16 %v2375, %v2374
    %v2395 = vpack.c.b16 %v2377, %v2376
    %v2396 = vpack.c.b16 %v2379, %v2378
    %v2397 = vpack.c.b16 %v2381, %v2380
    %vm2398 = vcmask 293888
    %v2400 = vsel %vm2398, %v389, 0
    %v2403 = vsel %vm2398, %v2382, 0
    %v2406 = vsel %vm2398, %v2383, 0
    %v2409 = vsel %vm2398, %v2384, 0
    %v2412 = vsel %vm2398, %v2385, 0
    %v2415 = vsel %vm2398, %v2386, 0
    %v2418 = vsel %vm2398, %v2387, 0
    %v2421 = vsel %vm2398, %v2388, 0
    %v2424 = vsel %vm2398, %v2389, 0
    %v2427 = vsel %vm2398, %v2390, 0
    %v2430 = vsel %vm2398, %v2391, 0
    %v2433 = vsel %vm2398, %v2392, 0
    %v2436 = vsel %vm2398, %v2393, 0
    %v2439 = vsel %vm2398, %v2394, 0
    %v2442 = vsel %vm2398, %v2395, 0
    %v2445 = vsel %vm2398, %v2396, 0
    %v2448 = vsel %vm2398, %v2397, 0
    %2450 = vmatpush.bf16.xpose.msra.mxu0 %v2424
    %2451 = vmatpush.bf16.xpose.msra.mxu0 %v2421
    %2452 = vmatpush.bf16.xpose.msra.mxu0 %v2418
    %2453 = vmatpush.bf16.xpose.msra.mxu0 %v2415
    %2454 = vmatpush.bf16.xpose.msra.mxu0 %v2412
    %2455 = vmatpush.bf16.xpose.msra.mxu0 %v2409
    %2456 = vmatpush.bf16.xpose.msra.mxu0 %v2406
    %2457 = vmatpush.bf16.xpose.msra.mxu0 %v2403
    %2458 = vmatmul.bf16.gmra.mxu0 %v2400
    %v2459 = vpop.f32.mrf.mxu0
    %v2460 = vadd.f32 %v2316, %v2459
    %v2461 = vpop.f32.mrf.mxu0
    %2462 = vdwg.mxu0
    %2463 = vmatpush.bf16.xpose.msra.mxu0 %v2448
    %2464 = vmatpush.bf16.xpose.msra.mxu0 %v2445
    %2465 = vmatpush.bf16.xpose.msra.mxu0 %v2442
    %2466 = vmatpush.bf16.xpose.msra.mxu0 %v2439
    %2467 = vmatpush.bf16.xpose.msra.mxu0 %v2436
    %2468 = vmatpush.bf16.xpose.msra.mxu0 %v2433
    %2469 = vmatpush.bf16.xpose.msra.mxu0 %v2430
    %2470 = vmatpush.bf16.xpose.msra.mxu0 %v2427
    %2471 = vmatmul.bf16.gmra.mxu0 %v2400
    %v2472 = vpop.f32.mrf.mxu0
    %v2473 = vadd.f32 %v2316, %v2472
    %v2474 = vpop.f32.mrf.mxu0
    %2475 = vdwg.mxu0
    %2476 = vst [vmem:[#allocation4] sm:$0xff] %v2460
    %2477 = vst [vmem:[#allocation4 + $0x8] sm:$0xff] %v2473
    %2478 = vst.msk [vmem:[%s424 + $0x1] sm:$0xff] %vm91, %v59
    %2479 = vst.msk [vmem:[%s424 + $0x9] sm:$0xff] %vm91, %v60
    %2480 = vst.msk [vmem:[%s424 + $0x19] sm:$0xff] %vm91, %v61
    %2481 = vst.msk [vmem:[%s424 + $0x21] sm:$0xff] %vm91, %v62
    %2482 = vst.msk [vmem:[%s424 + $0x31] sm:$0xff] %vm91, %v63
    %2483 = vst.msk [vmem:[%s424 + $0x39] sm:$0xff] %vm91, %v64
    %2484 = vst.msk [vmem:[%s424 + $0x49] sm:$0xff] %vm91, %v65
    %2485 = vst.msk [vmem:[%s424 + $0x51] sm:$0xff] %vm91, %v66
    %2486 = vst.msk [vmem:[%s424 + $0x61] sm:$0xff] %vm91, %v67
    %2487 = vst.msk [vmem:[%s424 + $0x69] sm:$0xff] %vm91, %v68
    %2488 = vst.msk [vmem:[%s424 + $0x79] sm:$0xff] %vm91, %v69
    %2489 = vst.msk [vmem:[%s424 + $0x81] sm:$0xff] %vm91, %v70
    %2490 = vst.msk [vmem:[%s424 + $0x91] sm:$0xff] %vm91, %v71
    %2491 = vst.msk [vmem:[%s424 + $0x99] sm:$0xff] %vm91, %v72
    %2492 = vst.msk [vmem:[%s424 + $0xa9] sm:$0xff] %vm91, %v73
    %2493 = vst.msk [vmem:[%s424 + $0xb1] sm:$0xff] %vm91, %v74
    %2494 = vst.msk [vmem:[%s424 + $0xc1] sm:$0xff] %vm91, %v75
    %2495 = vst.msk [vmem:[%s424 + $0xc9] sm:$0xff] %vm91, %v76
    %2496 = vst.msk [vmem:[%s424 + $0xd9] sm:$0xff] %vm91, %v77
    %2497 = vst.msk [vmem:[%s424 + $0xe1] sm:$0xff] %vm91, %v78
    %2498 = vst.msk [vmem:[%s424 + $0xf1] sm:$0xff] %vm91, %v79
    %2499 = vst.msk [vmem:[%s424 + $0xf9] sm:$0xff] %vm91, %v80
    %2500 = vst.msk [vmem:[%s424 + $0x109] sm:$0xff] %vm91, %v81
    %2501 = vst.msk [vmem:[%s424 + $0x111] sm:$0xff] %vm91, %v82
    %2502 = vst.msk [vmem:[%s424 + $0x121] sm:$0xff] %vm91, %v83
    %2503 = vst.msk [vmem:[%s424 + $0x129] sm:$0xff] %vm91, %v84
    %2504 = vst.msk [vmem:[%s424 + $0x139] sm:$0xff] %vm91, %v85
    %2505 = vst.msk [vmem:[%s424 + $0x141] sm:$0xff] %vm91, %v86
    %2506 = vst.msk [vmem:[%s424 + $0x151] sm:$0xff] %vm91, %v87
    %2507 = vst.msk [vmem:[%s424 + $0x159] sm:$0xff] %vm91, %v88
    %2508 = vst.msk [vmem:[%s424 + $0x169] sm:$0xff] %vm91, %v89
    %2509 = vst.msk [vmem:[%s424 + $0x171] sm:$0xff] %vm91, %v90
    %v2510 = vld [vmem:[#allocation2] sm:$0xff]
    %v2511 = vld [vmem:[#allocation2 + $0x8] sm:$0xff]
    %v2512 = vld [vmem:[#allocation2 + $0x10] sm:$0x3]
    %v2513 = vld [vmem:[#allocation2 + $0x18] sm:$0xff]
    %v2514 = vld [vmem:[#allocation2 + $0x20] sm:$0xff]
    %v2515 = vld [vmem:[#allocation2 + $0x28] sm:$0x3]
    %v2516 = vld [vmem:[#allocation2 + $0x30] sm:$0xff]
    %v2517 = vld [vmem:[#allocation2 + $0x38] sm:$0xff]
    %v2518 = vld [vmem:[#allocation2 + $0x40] sm:$0x3]
    %v2519 = vld [vmem:[#allocation2 + $0x48] sm:$0xff]
    %v2520 = vld [vmem:[#allocation2 + $0x50] sm:$0xff]
    %v2521 = vld [vmem:[#allocation2 + $0x58] sm:$0x3]
    %v2522 = vld [vmem:[#allocation2 + $0x60] sm:$0xff]
    %v2523 = vld [vmem:[#allocation2 + $0x68] sm:$0xff]
    %v2524 = vld [vmem:[#allocation2 + $0x70] sm:$0x3]
    %v2525 = vld [vmem:[#allocation2 + $0x78] sm:$0xff]
    %v2526 = vld [vmem:[#allocation2 + $0x80] sm:$0xff]
    %v2527 = vld [vmem:[#allocation2 + $0x88] sm:$0x3]
    %v2528 = vld [vmem:[#allocation2 + $0x90] sm:$0xff]
    %v2529 = vld [vmem:[#allocation2 + $0x98] sm:$0xff]
    %v2530 = vld [vmem:[#allocation2 + $0xa0] sm:$0x3]
    %v2531 = vld [vmem:[#allocation2 + $0xa8] sm:$0xff]
    %v2532 = vld [vmem:[#allocation2 + $0xb0] sm:$0xff]
    %v2533 = vld [vmem:[#allocation2 + $0xb8] sm:$0x3]
    %v2534 = vld [vmem:[#allocation2 + $0xc0] sm:$0xff]
    %v2535 = vld [vmem:[#allocation2 + $0xc8] sm:$0xff]
    %v2536 = vld [vmem:[#allocation2 + $0xd0] sm:$0x3]
    %v2537 = vld [vmem:[#allocation2 + $0xd8] sm:$0xff]
    %v2538 = vld [vmem:[#allocation2 + $0xe0] sm:$0xff]
    %v2539 = vld [vmem:[#allocation2 + $0xe8] sm:$0x3]
    %v2540 = vld [vmem:[#allocation2 + $0xf0] sm:$0xff]
    %v2541 = vld [vmem:[#allocation2 + $0xf8] sm:$0xff]
    %v2542 = vld [vmem:[#allocation2 + $0x100] sm:$0x3]
    %v2543 = vld [vmem:[#allocation2 + $0x108] sm:$0xff]
    %v2544 = vld [vmem:[#allocation2 + $0x110] sm:$0xff]
    %v2545 = vld [vmem:[#allocation2 + $0x118] sm:$0x3]
    %v2546 = vld [vmem:[#allocation2 + $0x120] sm:$0xff]
    %v2547 = vld [vmem:[#allocation2 + $0x128] sm:$0xff]
    %v2548 = vld [vmem:[#allocation2 + $0x130] sm:$0x3]
    %v2549 = vld [vmem:[#allocation2 + $0x138] sm:$0xff]
    %v2550 = vld [vmem:[#allocation2 + $0x140] sm:$0xff]
    %v2551 = vld [vmem:[#allocation2 + $0x148] sm:$0x3]
    %v2552 = vld [vmem:[#allocation2 + $0x150] sm:$0xff]
    %v2553 = vld [vmem:[#allocation2 + $0x158] sm:$0xff]
    %v2554 = vld [vmem:[#allocation2 + $0x160] sm:$0x3]
    %v2555 = vld [vmem:[#allocation2 + $0x168] sm:$0xff]
    %v2556 = vld [vmem:[#allocation2 + $0x170] sm:$0xff]
    %v2557 = vld [vmem:[#allocation2 + $0x178] sm:$0x3]
    %v2558 = vld [vmem:[#allocation2 + $0x180] sm:$0xff]
    %v2559 = vld [vmem:[#allocation2 + $0x188] sm:$0xff]
    %v2560 = vld [vmem:[#allocation2 + $0x190] sm:$0x3]
    %v2561 = vld [vmem:[#allocation2 + $0x198] sm:$0xff]
    %v2562 = vld [vmem:[#allocation2 + $0x1a0] sm:$0xff]
    %v2563 = vld [vmem:[#allocation2 + $0x1a8] sm:$0x3]
    %v2564 = vpack.c.bf16 %v2510, %v2510
    %v2565 = vpack.c.bf16 %v2511, %v2511
    %v2566 = vpack.c.bf16 %v2513, %v2513
    %v2567 = vpack.c.bf16 %v2514, %v2514
    %v2568 = vpack.c.bf16 %v2516, %v2516
    %v2569 = vpack.c.bf16 %v2517, %v2517
    %v2570 = vpack.c.bf16 %v2519, %v2519
    %v2571 = vpack.c.bf16 %v2520, %v2520
    %v2572 = vpack.c.bf16 %v2522, %v2522
    %v2573 = vpack.c.bf16 %v2523, %v2523
    %v2574 = vpack.c.bf16 %v2525, %v2525
    %v2575 = vpack.c.bf16 %v2526, %v2526
    %v2576 = vpack.c.bf16 %v2528, %v2528
    %v2577 = vpack.c.bf16 %v2529, %v2529
    %v2578 = vpack.c.bf16 %v2531, %v2531
    %v2579 = vpack.c.bf16 %v2532, %v2532
    %v2580 = vpack.c.bf16 %v2534, %v2534
    %v2581 = vpack.c.bf16 %v2535, %v2535
    %v2582 = vpack.c.bf16 %v2537, %v2537
    %v2583 = vpack.c.bf16 %v2538, %v2538
    %v2584 = vpack.c.bf16 %v2540, %v2540
    %v2585 = vpack.c.bf16 %v2541, %v2541
    %v2586 = vpack.c.bf16 %v2543, %v2543
    %v2587 = vpack.c.bf16 %v2544, %v2544
    %v2588 = vpack.c.bf16 %v2546, %v2546
    %v2589 = vpack.c.bf16 %v2547, %v2547
    %v2590 = vpack.c.bf16 %v2549, %v2549
    %v2591 = vpack.c.bf16 %v2550, %v2550
    %v2592 = vpack.c.bf16 %v2552, %v2552
    %v2593 = vpack.c.bf16 %v2553, %v2553
    %v2594 = vpack.c.bf16 %v2555, %v2555
    %v2595 = vpack.c.bf16 %v2556, %v2556
    %2596 = vst.msk [vmem:[#allocation3] sm:$0xf] %vm576, %v2564
    %2597 = vst.msk [vmem:[#allocation3 + $0x4] sm:$0xf] %vm576, %v2565
    %2598 = vst.msk [vmem:[#allocation3 + $0x8] sm:$0xf] %vm576, %v2566
    %2599 = vst.msk [vmem:[#allocation3 + $0xc] sm:$0xf] %vm576, %v2567
    %2600 = vst.msk [vmem:[#allocation3 + $0x10] sm:$0xf] %vm576, %v2568
    %2601 = vst.msk [vmem:[#allocation3 + $0x14] sm:$0xf] %vm576, %v2569
    %2602 = vst.msk [vmem:[#allocation3 + $0x18] sm:$0xf] %vm576, %v2570
    %2603 = vst.msk [vmem:[#allocation3 + $0x1c] sm:$0xf] %vm576, %v2571
    %2604 = vst.msk [vmem:[#allocation3 + $0x20] sm:$0xf] %vm576, %v2572
    %2605 = vst.msk [vmem:[#allocation3 + $0x24] sm:$0xf] %vm576, %v2573
    %2606 = vst.msk [vmem:[#allocation3 + $0x28] sm:$0xf] %vm576, %v2574
    %2607 = vst.msk [vmem:[#allocation3 + $0x2c] sm:$0xf] %vm576, %v2575
    %2608 = vst.msk [vmem:[#allocation3 + $0x30] sm:$0xf] %vm576, %v2576
    %2609 = vst.msk [vmem:[#allocation3 + $0x34] sm:$0xf] %vm576, %v2577
    %2610 = vst.msk [vmem:[#allocation3 + $0x38] sm:$0xf] %vm576, %v2578
    %2611 = vst.msk [vmem:[#allocation3 + $0x3c] sm:$0xf] %vm576, %v2579
    %2612 = vst.msk [vmem:[#allocation3 + $0x40] sm:$0xf] %vm576, %v2580
    %2613 = vst.msk [vmem:[#allocation3 + $0x44] sm:$0xf] %vm576, %v2581
    %2614 = vst.msk [vmem:[#allocation3 + $0x48] sm:$0xf] %vm576, %v2582
    %2615 = vst.msk [vmem:[#allocation3 + $0x4c] sm:$0xf] %vm576, %v2583
    %2616 = vst.msk [vmem:[#allocation3 + $0x50] sm:$0xf] %vm576, %v2584
    %2617 = vst.msk [vmem:[#allocation3 + $0x54] sm:$0xf] %vm576, %v2585
    %2618 = vst.msk [vmem:[#allocation3 + $0x58] sm:$0xf] %vm576, %v2586
    %2619 = vst.msk [vmem:[#allocation3 + $0x5c] sm:$0xf] %vm576, %v2587
    %2620 = vst.msk [vmem:[#allocation3 + $0x60] sm:$0xf] %vm576, %v2588
    %2621 = vst.msk [vmem:[#allocation3 + $0x64] sm:$0xf] %vm576, %v2589
    %2622 = vst.msk [vmem:[#allocation3 + $0x68] sm:$0xf] %vm576, %v2590
    %2623 = vst.msk [vmem:[#allocation3 + $0x6c] sm:$0xf] %vm576, %v2591
    %2624 = vst.msk [vmem:[#allocation3 + $0x70] sm:$0xf] %vm576, %v2592
    %2625 = vst.msk [vmem:[#allocation3 + $0x74] sm:$0xf] %vm576, %v2593
    %2626 = vst.msk [vmem:[#allocation3 + $0x78] sm:$0xf] %vm576, %v2594
    %2627 = vst.msk [vmem:[#allocation3 + $0x7c] sm:$0xf] %vm576, %v2595
    %v2628 = vpack.c.bf16 %v2512, %v2512
    %v2629 = vpack.c.bf16 %v2515, %v2515
    %v2630 = vpack.c.bf16 %v2518, %v2518
    %v2631 = vpack.c.bf16 %v2521, %v2521
    %v2632 = vpack.c.bf16 %v2524, %v2524
    %v2633 = vpack.c.bf16 %v2527, %v2527
    %v2634 = vpack.c.bf16 %v2530, %v2530
    %v2635 = vpack.c.bf16 %v2533, %v2533
    %v2636 = vpack.c.bf16 %v2536, %v2536
    %v2637 = vpack.c.bf16 %v2539, %v2539
    %v2638 = vpack.c.bf16 %v2542, %v2542
    %v2639 = vpack.c.bf16 %v2545, %v2545
    %v2640 = vpack.c.bf16 %v2548, %v2548
    %v2641 = vpack.c.bf16 %v2551, %v2551
    %v2642 = vpack.c.bf16 %v2554, %v2554
    %v2643 = vpack.c.bf16 %v2557, %v2557
    %v2645 = vshrl.u32 %v2564, 16
    %v2647 = vrot.slane %v2645, 4
    %v2648 = vshll.u32 %v2564, 16
    %v2650 = vrot.slane %v2648, 5
    %v2651 = vor.u32 %v2647, %v2650
    %v2652 = vrot.slane %v2651, 4
    %v2654 = vshll.u32 %v2565, 16
    %v2656 = vrot.slane %v2654, 5
    %v2657 = vsel %vm627, %v2652, %v2656
    %v2658 = vshrl.u32 %v2565, 16
    %v2660 = vrot.slane %v2658, 4
    %v2661 = vor.u32 %v2660, %v2656
    %v2662 = vrot.slane %v2661, 4
    %v2664 = vshll.u32 %v2628, 16
    %v2666 = vrot.slane %v2664, 5
    %v2667 = vsel %vm627, %v2662, %v2666
    %v2669 = vshrl.u32 %v2566, 16
    %v2671 = vrot.slane %v2669, 4
    %v2672 = vshll.u32 %v2566, 16
    %v2674 = vrot.slane %v2672, 5
    %v2675 = vor.u32 %v2671, %v2674
    %v2676 = vrot.slane %v2675, 4
    %v2678 = vshll.u32 %v2567, 16
    %v2680 = vrot.slane %v2678, 5
    %v2681 = vsel %vm627, %v2676, %v2680
    %v2682 = vshrl.u32 %v2567, 16
    %v2684 = vrot.slane %v2682, 4
    %v2685 = vor.u32 %v2684, %v2680
    %v2686 = vrot.slane %v2685, 4
    %v2688 = vshll.u32 %v2629, 16
    %v2690 = vrot.slane %v2688, 5
    %v2691 = vsel %vm627, %v2686, %v2690
    %v2693 = vshrl.u32 %v2568, 16
    %v2695 = vrot.slane %v2693, 4
    %v2696 = vshll.u32 %v2568, 16
    %v2698 = vrot.slane %v2696, 5
    %v2699 = vor.u32 %v2695, %v2698
    %v2700 = vrot.slane %v2699, 4
    %v2702 = vshll.u32 %v2569, 16
    %v2704 = vrot.slane %v2702, 5
    %v2705 = vsel %vm627, %v2700, %v2704
    %v2706 = vshrl.u32 %v2569, 16
    %v2708 = vrot.slane %v2706, 4
    %v2709 = vor.u32 %v2708, %v2704
    %v2710 = vrot.slane %v2709, 4
    %v2712 = vshll.u32 %v2630, 16
    %v2714 = vrot.slane %v2712, 5
    %v2715 = vsel %vm627, %v2710, %v2714
    %v2717 = vshrl.u32 %v2570, 16
    %v2719 = vrot.slane %v2717, 4
    %v2720 = vshll.u32 %v2570, 16
    %v2722 = vrot.slane %v2720, 5
    %v2723 = vor.u32 %v2719, %v2722
    %v2724 = vrot.slane %v2723, 4
    %v2726 = vshll.u32 %v2571, 16
    %v2728 = vrot.slane %v2726, 5
    %v2729 = vsel %vm627, %v2724, %v2728
    %v2730 = vshrl.u32 %v2571, 16
    %v2732 = vrot.slane %v2730, 4
    %v2733 = vor.u32 %v2732, %v2728
    %v2734 = vrot.slane %v2733, 4
    %v2736 = vshll.u32 %v2631, 16
    %v2738 = vrot.slane %v2736, 5
    %v2739 = vsel %vm627, %v2734, %v2738
    %v2741 = vshrl.u32 %v2572, 16
    %v2743 = vrot.slane %v2741, 4
    %v2744 = vshll.u32 %v2572, 16
    %v2746 = vrot.slane %v2744, 5
    %v2747 = vor.u32 %v2743, %v2746
    %v2748 = vrot.slane %v2747, 4
    %v2750 = vshll.u32 %v2573, 16
    %v2752 = vrot.slane %v2750, 5
    %v2753 = vsel %vm627, %v2748, %v2752
    %v2754 = vshrl.u32 %v2573, 16
    %v2756 = vrot.slane %v2754, 4
    %v2757 = vor.u32 %v2756, %v2752
    %v2758 = vrot.slane %v2757, 4
    %v2760 = vshll.u32 %v2632, 16
    %v2762 = vrot.slane %v2760, 5
    %v2763 = vsel %vm627, %v2758, %v2762
    %v2765 = vshrl.u32 %v2574, 16
    %v2767 = vrot.slane %v2765, 4
    %v2768 = vshll.u32 %v2574, 16
    %v2770 = vrot.slane %v2768, 5
    %v2771 = vor.u32 %v2767, %v2770
    %v2772 = vrot.slane %v2771, 4
    %v2774 = vshll.u32 %v2575, 16
    %v2776 = vrot.slane %v2774, 5
    %v2777 = vsel %vm627, %v2772, %v2776
    %v2778 = vshrl.u32 %v2575, 16
    %v2780 = vrot.slane %v2778, 4
    %v2781 = vor.u32 %v2780, %v2776
    %v2782 = vrot.slane %v2781, 4
    %v2784 = vshll.u32 %v2633, 16
    %v2786 = vrot.slane %v2784, 5
    %v2787 = vsel %vm627, %v2782, %v2786
    %v2789 = vshrl.u32 %v2576, 16
    %v2791 = vrot.slane %v2789, 4
    %v2792 = vshll.u32 %v2576, 16
    %v2794 = vrot.slane %v2792, 5
    %v2795 = vor.u32 %v2791, %v2794
    %v2796 = vrot.slane %v2795, 4
    %v2798 = vshll.u32 %v2577, 16
    %v2800 = vrot.slane %v2798, 5
    %v2801 = vsel %vm627, %v2796, %v2800
    %v2802 = vshrl.u32 %v2577, 16
    %v2804 = vrot.slane %v2802, 4
    %v2805 = vor.u32 %v2804, %v2800
    %v2806 = vrot.slane %v2805, 4
    %v2808 = vshll.u32 %v2634, 16
    %v2810 = vrot.slane %v2808, 5
    %v2811 = vsel %vm627, %v2806, %v2810
    %v2813 = vshrl.u32 %v2578, 16
    %v2815 = vrot.slane %v2813, 4
    %v2816 = vshll.u32 %v2578, 16
    %v2818 = vrot.slane %v2816, 5
    %v2819 = vor.u32 %v2815, %v2818
    %v2820 = vrot.slane %v2819, 4
    %v2822 = vshll.u32 %v2579, 16
    %v2824 = vrot.slane %v2822, 5
    %v2825 = vsel %vm627, %v2820, %v2824
    %v2826 = vshrl.u32 %v2579, 16
    %v2828 = vrot.slane %v2826, 4
    %v2829 = vor.u32 %v2828, %v2824
    %v2830 = vrot.slane %v2829, 4
    %v2832 = vshll.u32 %v2635, 16
    %v2834 = vrot.slane %v2832, 5
    %v2835 = vsel %vm627, %v2830, %v2834
    %v2837 = vshrl.u32 %v2580, 16
    %v2839 = vrot.slane %v2837, 4
    %v2840 = vshll.u32 %v2580, 16
    %v2842 = vrot.slane %v2840, 5
    %v2843 = vor.u32 %v2839, %v2842
    %v2844 = vrot.slane %v2843, 4
    %v2846 = vshll.u32 %v2581, 16
    %v2848 = vrot.slane %v2846, 5
    %v2849 = vsel %vm627, %v2844, %v2848
    %v2850 = vshrl.u32 %v2581, 16
    %v2852 = vrot.slane %v2850, 4
    %v2853 = vor.u32 %v2852, %v2848
    %v2854 = vrot.slane %v2853, 4
    %v2856 = vshll.u32 %v2636, 16
    %v2858 = vrot.slane %v2856, 5
    %v2859 = vsel %vm627, %v2854, %v2858
    %v2861 = vshrl.u32 %v2582, 16
    %v2863 = vrot.slane %v2861, 4
    %v2864 = vshll.u32 %v2582, 16
    %v2866 = vrot.slane %v2864, 5
    %v2867 = vor.u32 %v2863, %v2866
    %v2868 = vrot.slane %v2867, 4
    %v2870 = vshll.u32 %v2583, 16
    %v2872 = vrot.slane %v2870, 5
    %v2873 = vsel %vm627, %v2868, %v2872
    %v2874 = vshrl.u32 %v2583, 16
    %v2876 = vrot.slane %v2874, 4
    %v2877 = vor.u32 %v2876, %v2872
    %v2878 = vrot.slane %v2877, 4
    %v2880 = vshll.u32 %v2637, 16
    %v2882 = vrot.slane %v2880, 5
    %v2883 = vsel %vm627, %v2878, %v2882
    %v2885 = vshrl.u32 %v2584, 16
    %v2887 = vrot.slane %v2885, 4
    %v2888 = vshll.u32 %v2584, 16
    %v2890 = vrot.slane %v2888, 5
    %v2891 = vor.u32 %v2887, %v2890
    %v2892 = vrot.slane %v2891, 4
    %v2894 = vshll.u32 %v2585, 16
    %v2896 = vrot.slane %v2894, 5
    %v2897 = vsel %vm627, %v2892, %v2896
    %v2898 = vshrl.u32 %v2585, 16
    %v2900 = vrot.slane %v2898, 4
    %v2901 = vor.u32 %v2900, %v2896
    %v2902 = vrot.slane %v2901, 4
    %v2904 = vshll.u32 %v2638, 16
    %v2906 = vrot.slane %v2904, 5
    %v2907 = vsel %vm627, %v2902, %v2906
    %v2909 = vshrl.u32 %v2586, 16
    %v2911 = vrot.slane %v2909, 4
    %v2912 = vshll.u32 %v2586, 16
    %v2914 = vrot.slane %v2912, 5
    %v2915 = vor.u32 %v2911, %v2914
    %v2916 = vrot.slane %v2915, 4
    %v2918 = vshll.u32 %v2587, 16
    %v2920 = vrot.slane %v2918, 5
    %v2921 = vsel %vm627, %v2916, %v2920
    %v2922 = vshrl.u32 %v2587, 16
    %v2924 = vrot.slane %v2922, 4
    %v2925 = vor.u32 %v2924, %v2920
    %v2926 = vrot.slane %v2925, 4
    %v2928 = vshll.u32 %v2639, 16
    %v2930 = vrot.slane %v2928, 5
    %v2931 = vsel %vm627, %v2926, %v2930
    %v2933 = vshrl.u32 %v2588, 16
    %v2935 = vrot.slane %v2933, 4
    %v2936 = vshll.u32 %v2588, 16
    %v2938 = vrot.slane %v2936, 5
    %v2939 = vor.u32 %v2935, %v2938
    %v2940 = vrot.slane %v2939, 4
    %v2942 = vshll.u32 %v2589, 16
    %v2944 = vrot.slane %v2942, 5
    %v2945 = vsel %vm627, %v2940, %v2944
    %v2946 = vshrl.u32 %v2589, 16
    %v2948 = vrot.slane %v2946, 4
    %v2949 = vor.u32 %v2948, %v2944
    %v2950 = vrot.slane %v2949, 4
    %v2952 = vshll.u32 %v2640, 16
    %v2954 = vrot.slane %v2952, 5
    %v2955 = vsel %vm627, %v2950, %v2954
    %v2957 = vshrl.u32 %v2590, 16
    %v2959 = vrot.slane %v2957, 4
    %v2960 = vshll.u32 %v2590, 16
    %v2962 = vrot.slane %v2960, 5
    %v2963 = vor.u32 %v2959, %v2962
    %v2964 = vrot.slane %v2963, 4
    %v2966 = vshll.u32 %v2591, 16
    %v2968 = vrot.slane %v2966, 5
    %v2969 = vsel %vm627, %v2964, %v2968
    %v2970 = vshrl.u32 %v2591, 16
    %v2972 = vrot.slane %v2970, 4
    %v2973 = vor.u32 %v2972, %v2968
    %v2974 = vrot.slane %v2973, 4
    %v2976 = vshll.u32 %v2641, 16
    %v2978 = vrot.slane %v2976, 5
    %v2979 = vsel %vm627, %v2974, %v2978
    %v2981 = vshrl.u32 %v2592, 16
    %v2983 = vrot.slane %v2981, 4
    %v2984 = vshll.u32 %v2592, 16
    %v2986 = vrot.slane %v2984, 5
    %v2987 = vor.u32 %v2983, %v2986
    %v2988 = vrot.slane %v2987, 4
    %v2990 = vshll.u32 %v2593, 16
    %v2992 = vrot.slane %v2990, 5
    %v2993 = vsel %vm627, %v2988, %v2992
    %v2994 = vshrl.u32 %v2593, 16
    %v2996 = vrot.slane %v2994, 4
    %v2997 = vor.u32 %v2996, %v2992
    %v2998 = vrot.slane %v2997, 4
    %v3000 = vshll.u32 %v2642, 16
    %v3002 = vrot.slane %v3000, 5
    %v3003 = vsel %vm627, %v2998, %v3002
    %v3005 = vshrl.u32 %v2594, 16
    %v3007 = vrot.slane %v3005, 4
    %v3008 = vshll.u32 %v2594, 16
    %v3010 = vrot.slane %v3008, 5
    %v3011 = vor.u32 %v3007, %v3010
    %v3012 = vrot.slane %v3011, 4
    %v3014 = vshll.u32 %v2595, 16
    %v3016 = vrot.slane %v3014, 5
    %v3017 = vsel %vm627, %v3012, %v3016
    %v3018 = vshrl.u32 %v2595, 16
    %v3020 = vrot.slane %v3018, 4
    %v3021 = vor.u32 %v3020, %v3016
    %v3022 = vrot.slane %v3021, 4
    %v3024 = vshll.u32 %v2643, 16
    %v3026 = vrot.slane %v3024, 5
    %v3027 = vsel %vm627, %v3022, %v3026
    %3028 = vrot.lane.b32.xlu0 %v2657, 4
    %v3029 = vpop.permute.xlu0 %3028
    %3030 = vrot.lane.b32.xlu0 %v2667, 4
    %v3031 = vpop.permute.xlu0 %3030
    %3032 = vrot.lane.b32.xlu0 %v2681, 4
    %v3033 = vpop.permute.xlu0 %3032
    %3034 = vrot.lane.b32.xlu0 %v2691, 4
    %v3035 = vpop.permute.xlu0 %3034
    %3036 = vrot.lane.b32.xlu0 %v2705, 4
    %v3037 = vpop.permute.xlu0 %3036
    %3038 = vrot.lane.b32.xlu0 %v2715, 4
    %v3039 = vpop.permute.xlu0 %3038
    %3040 = vrot.lane.b32.xlu0 %v2729, 4
    %v3041 = vpop.permute.xlu0 %3040
    %3042 = vrot.lane.b32.xlu0 %v2739, 4
    %v3043 = vpop.permute.xlu0 %3042
    %3044 = vrot.lane.b32.xlu0 %v2753, 4
    %v3045 = vpop.permute.xlu0 %3044
    %3046 = vrot.lane.b32.xlu0 %v2763, 4
    %v3047 = vpop.permute.xlu0 %3046
    %3048 = vrot.lane.b32.xlu0 %v2777, 4
    %v3049 = vpop.permute.xlu0 %3048
    %3050 = vrot.lane.b32.xlu0 %v2787, 4
    %v3051 = vpop.permute.xlu0 %3050
    %3052 = vrot.lane.b32.xlu0 %v2801, 4
    %v3053 = vpop.permute.xlu0 %3052
    %3054 = vrot.lane.b32.xlu0 %v2811, 4
    %v3055 = vpop.permute.xlu0 %3054
    %3056 = vrot.lane.b32.xlu0 %v2825, 4
    %v3057 = vpop.permute.xlu0 %3056
    %3058 = vrot.lane.b32.xlu0 %v2835, 4
    %v3059 = vpop.permute.xlu0 %3058
    %3060 = vrot.lane.b32.xlu0 %v2849, 4
    %v3061 = vpop.permute.xlu0 %3060
    %3062 = vrot.lane.b32.xlu0 %v2859, 4
    %v3063 = vpop.permute.xlu0 %3062
    %3064 = vrot.lane.b32.xlu0 %v2873, 4
    %v3065 = vpop.permute.xlu0 %3064
    %3066 = vrot.lane.b32.xlu0 %v2883, 4
    %v3067 = vpop.permute.xlu0 %3066
    %3068 = vrot.lane.b32.xlu0 %v2897, 4
    %v3069 = vpop.permute.xlu0 %3068
    %3070 = vrot.lane.b32.xlu0 %v2907, 4
    %v3071 = vpop.permute.xlu0 %3070
    %3072 = vrot.lane.b32.xlu0 %v2921, 4
    %v3073 = vpop.permute.xlu0 %3072
    %3074 = vrot.lane.b32.xlu0 %v2931, 4
    %v3075 = vpop.permute.xlu0 %3074
    %3076 = vrot.lane.b32.xlu0 %v2945, 4
    %v3077 = vpop.permute.xlu0 %3076
    %3078 = vrot.lane.b32.xlu0 %v2955, 4
    %v3079 = vpop.permute.xlu0 %3078
    %3080 = vrot.lane.b32.xlu0 %v2969, 4
    %v3081 = vpop.permute.xlu0 %3080
    %3082 = vrot.lane.b32.xlu0 %v2979, 4
    %v3083 = vpop.permute.xlu0 %3082
    %3084 = vrot.lane.b32.xlu0 %v2993, 4
    %v3085 = vpop.permute.xlu0 %3084
    %3086 = vrot.lane.b32.xlu0 %v3003, 4
    %v3087 = vpop.permute.xlu0 %3086
    %3088 = vrot.lane.b32.xlu0 %v3017, 4
    %v3089 = vpop.permute.xlu0 %3088
    %3090 = vrot.lane.b32.xlu0 %v3027, 4
    %v3091 = vpop.permute.xlu0 %3090
    %3124 = vst.msk [vmem:[#allocation3] sm:$0xf] %vm1108, %v3029
    %3125 = vst.msk [vmem:[#allocation3 + $0x4] sm:$0xf] %vm1108, %v3031
    %3126 = vst.msk [vmem:[#allocation3 + $0x8] sm:$0xf] %vm1108, %v3033
    %3127 = vst.msk [vmem:[#allocation3 + $0xc] sm:$0xf] %vm1108, %v3035
    %3128 = vst.msk [vmem:[#allocation3 + $0x10] sm:$0xf] %vm1108, %v3037
    %3129 = vst.msk [vmem:[#allocation3 + $0x14] sm:$0xf] %vm1108, %v3039
    %3130 = vst.msk [vmem:[#allocation3 + $0x18] sm:$0xf] %vm1108, %v3041
    %3131 = vst.msk [vmem:[#allocation3 + $0x1c] sm:$0xf] %vm1108, %v3043
    %3132 = vst.msk [vmem:[#allocation3 + $0x20] sm:$0xf] %vm1108, %v3045
    %3133 = vst.msk [vmem:[#allocation3 + $0x24] sm:$0xf] %vm1108, %v3047
    %3134 = vst.msk [vmem:[#allocation3 + $0x28] sm:$0xf] %vm1108, %v3049
    %3135 = vst.msk [vmem:[#allocation3 + $0x2c] sm:$0xf] %vm1108, %v3051
    %3136 = vst.msk [vmem:[#allocation3 + $0x30] sm:$0xf] %vm1108, %v3053
    %3137 = vst.msk [vmem:[#allocation3 + $0x34] sm:$0xf] %vm1108, %v3055
    %3138 = vst.msk [vmem:[#allocation3 + $0x38] sm:$0xf] %vm1108, %v3057
    %3139 = vst.msk [vmem:[#allocation3 + $0x3c] sm:$0xf] %vm1108, %v3059
    %3140 = vst.msk [vmem:[#allocation3 + $0x40] sm:$0xf] %vm1108, %v3061
    %3141 = vst.msk [vmem:[#allocation3 + $0x44] sm:$0xf] %vm1108, %v3063
    %3142 = vst.msk [vmem:[#allocation3 + $0x48] sm:$0xf] %vm1108, %v3065
    %3143 = vst.msk [vmem:[#allocation3 + $0x4c] sm:$0xf] %vm1108, %v3067
    %3144 = vst.msk [vmem:[#allocation3 + $0x50] sm:$0xf] %vm1108, %v3069
    %3145 = vst.msk [vmem:[#allocation3 + $0x54] sm:$0xf] %vm1108, %v3071
    %3146 = vst.msk [vmem:[#allocation3 + $0x58] sm:$0xf] %vm1108, %v3073
    %3147 = vst.msk [vmem:[#allocation3 + $0x5c] sm:$0xf] %vm1108, %v3075
    %3148 = vst.msk [vmem:[#allocation3 + $0x60] sm:$0xf] %vm1108, %v3077
    %3149 = vst.msk [vmem:[#allocation3 + $0x64] sm:$0xf] %vm1108, %v3079
    %3150 = vst.msk [vmem:[#allocation3 + $0x68] sm:$0xf] %vm1108, %v3081
    %3151 = vst.msk [vmem:[#allocation3 + $0x6c] sm:$0xf] %vm1108, %v3083
    %3152 = vst.msk [vmem:[#allocation3 + $0x70] sm:$0xf] %vm1108, %v3085
    %3153 = vst.msk [vmem:[#allocation3 + $0x74] sm:$0xf] %vm1108, %v3087
    %3154 = vst.msk [vmem:[#allocation3 + $0x78] sm:$0xf] %vm1108, %v3089
    %3155 = vst.msk [vmem:[#allocation3 + $0x7c] sm:$0xf] %vm1108, %v3091
    %v3204 = vrot.slane %v2564, 5
    %v3205 = vrot.slane %v3204, 4
    %v3206 = vrot.slane %v2565, 5
    %v3207 = vsel %vm1191, %v3205, %v3206
    %v3208 = vrot.slane %v3206, 4
    %v3209 = vrot.slane %v2628, 5
    %v3210 = vsel %vm1191, %v3208, %v3209
    %v3211 = vrot.slane %v2566, 5
    %v3212 = vrot.slane %v3211, 4
    %v3213 = vrot.slane %v2567, 5
    %v3214 = vsel %vm1191, %v3212, %v3213
    %v3215 = vrot.slane %v3213, 4
    %v3216 = vrot.slane %v2629, 5
    %v3217 = vsel %vm1191, %v3215, %v3216
    %v3218 = vrot.slane %v2568, 5
    %v3219 = vrot.slane %v3218, 4
    %v3220 = vrot.slane %v2569, 5
    %v3221 = vsel %vm1191, %v3219, %v3220
    %v3222 = vrot.slane %v3220, 4
    %v3223 = vrot.slane %v2630, 5
    %v3224 = vsel %vm1191, %v3222, %v3223
    %v3225 = vrot.slane %v2570, 5
    %v3226 = vrot.slane %v3225, 4
    %v3227 = vrot.slane %v2571, 5
    %v3228 = vsel %vm1191, %v3226, %v3227
    %v3229 = vrot.slane %v3227, 4
    %v3230 = vrot.slane %v2631, 5
    %v3231 = vsel %vm1191, %v3229, %v3230
    %v3232 = vrot.slane %v2572, 5
    %v3233 = vrot.slane %v3232, 4
    %v3234 = vrot.slane %v2573, 5
    %v3235 = vsel %vm1191, %v3233, %v3234
    %v3236 = vrot.slane %v3234, 4
    %v3237 = vrot.slane %v2632, 5
    %v3238 = vsel %vm1191, %v3236, %v3237
    %v3239 = vrot.slane %v2574, 5
    %v3240 = vrot.slane %v3239, 4
    %v3241 = vrot.slane %v2575, 5
    %v3242 = vsel %vm1191, %v3240, %v3241
    %v3243 = vrot.slane %v3241, 4
    %v3244 = vrot.slane %v2633, 5
    %v3245 = vsel %vm1191, %v3243, %v3244
    %v3246 = vrot.slane %v2576, 5
    %v3247 = vrot.slane %v3246, 4
    %v3248 = vrot.slane %v2577, 5
    %v3249 = vsel %vm1191, %v3247, %v3248
    %v3250 = vrot.slane %v3248, 4
    %v3251 = vrot.slane %v2634, 5
    %v3252 = vsel %vm1191, %v3250, %v3251
    %v3253 = vrot.slane %v2578, 5
    %v3254 = vrot.slane %v3253, 4
    %v3255 = vrot.slane %v2579, 5
    %v3256 = vsel %vm1191, %v3254, %v3255
    %v3257 = vrot.slane %v3255, 4
    %v3258 = vrot.slane %v2635, 5
    %v3259 = vsel %vm1191, %v3257, %v3258
    %v3260 = vrot.slane %v2580, 5
    %v3261 = vrot.slane %v3260, 4
    %v3262 = vrot.slane %v2581, 5
    %v3263 = vsel %vm1191, %v3261, %v3262
    %v3264 = vrot.slane %v3262, 4
    %v3265 = vrot.slane %v2636, 5
    %v3266 = vsel %vm1191, %v3264, %v3265
    %v3267 = vrot.slane %v2582, 5
    %v3268 = vrot.slane %v3267, 4
    %v3269 = vrot.slane %v2583, 5
    %v3270 = vsel %vm1191, %v3268, %v3269
    %v3271 = vrot.slane %v3269, 4
    %v3272 = vrot.slane %v2637, 5
    %v3273 = vsel %vm1191, %v3271, %v3272
    %v3274 = vrot.slane %v2584, 5
    %v3275 = vrot.slane %v3274, 4
    %v3276 = vrot.slane %v2585, 5
    %v3277 = vsel %vm1191, %v3275, %v3276
    %v3278 = vrot.slane %v3276, 4
    %v3279 = vrot.slane %v2638, 5
    %v3280 = vsel %vm1191, %v3278, %v3279
    %v3281 = vrot.slane %v2586, 5
    %v3282 = vrot.slane %v3281, 4
    %v3283 = vrot.slane %v2587, 5
    %v3284 = vsel %vm1191, %v3282, %v3283
    %v3285 = vrot.slane %v3283, 4
    %v3286 = vrot.slane %v2639, 5
    %v3287 = vsel %vm1191, %v3285, %v3286
    %v3288 = vrot.slane %v2588, 5
    %v3289 = vrot.slane %v3288, 4
    %v3290 = vrot.slane %v2589, 5
    %v3291 = vsel %vm1191, %v3289, %v3290
    %v3292 = vrot.slane %v3290, 4
    %v3293 = vrot.slane %v2640, 5
    %v3294 = vsel %vm1191, %v3292, %v3293
    %v3295 = vrot.slane %v2590, 5
    %v3296 = vrot.slane %v3295, 4
    %v3297 = vrot.slane %v2591, 5
    %v3298 = vsel %vm1191, %v3296, %v3297
    %v3299 = vrot.slane %v3297, 4
    %v3300 = vrot.slane %v2641, 5
    %v3301 = vsel %vm1191, %v3299, %v3300
    %v3302 = vrot.slane %v2592, 5
    %v3303 = vrot.slane %v3302, 4
    %v3304 = vrot.slane %v2593, 5
    %v3305 = vsel %vm1191, %v3303, %v3304
    %v3306 = vrot.slane %v3304, 4
    %v3307 = vrot.slane %v2642, 5
    %v3308 = vsel %vm1191, %v3306, %v3307
    %v3309 = vrot.slane %v2594, 5
    %v3310 = vrot.slane %v3309, 4
    %v3311 = vrot.slane %v2595, 5
    %v3312 = vsel %vm1191, %v3310, %v3311
    %v3313 = vrot.slane %v3311, 4
    %v3314 = vrot.slane %v2643, 5
    %v3315 = vsel %vm1191, %v3313, %v3314
    %3316 = vrot.lane.b32.xlu0 %v3207, 8
    %v3317 = vpop.permute.xlu0 %3316
    %3318 = vrot.lane.b32.xlu0 %v3210, 8
    %v3319 = vpop.permute.xlu0 %3318
    %3320 = vrot.lane.b32.xlu0 %v3214, 8
    %v3321 = vpop.permute.xlu0 %3320
    %3322 = vrot.lane.b32.xlu0 %v3217, 8
    %v3323 = vpop.permute.xlu0 %3322
    %3324 = vrot.lane.b32.xlu0 %v3221, 8
    %v3325 = vpop.permute.xlu0 %3324
    %3326 = vrot.lane.b32.xlu0 %v3224, 8
    %v3327 = vpop.permute.xlu0 %3326
    %3328 = vrot.lane.b32.xlu0 %v3228, 8
    %v3329 = vpop.permute.xlu0 %3328
    %3330 = vrot.lane.b32.xlu0 %v3231, 8
    %v3331 = vpop.permute.xlu0 %3330
    %3332 = vrot.lane.b32.xlu0 %v3235, 8
    %v3333 = vpop.permute.xlu0 %3332
    %3334 = vrot.lane.b32.xlu0 %v3238, 8
    %v3335 = vpop.permute.xlu0 %3334
    %3336 = vrot.lane.b32.xlu0 %v3242, 8
    %v3337 = vpop.permute.xlu0 %3336
    %3338 = vrot.lane.b32.xlu0 %v3245, 8
    %v3339 = vpop.permute.xlu0 %3338
    %3340 = vrot.lane.b32.xlu0 %v3249, 8
    %v3341 = vpop.permute.xlu0 %3340
    %3342 = vrot.lane.b32.xlu0 %v3252, 8
    %v3343 = vpop.permute.xlu0 %3342
    %3344 = vrot.lane.b32.xlu0 %v3256, 8
    %v3345 = vpop.permute.xlu0 %3344
    %3346 = vrot.lane.b32.xlu0 %v3259, 8
    %v3347 = vpop.permute.xlu0 %3346
    %3348 = vrot.lane.b32.xlu0 %v3263, 8
    %v3349 = vpop.permute.xlu0 %3348
    %3350 = vrot.lane.b32.xlu0 %v3266, 8
    %v3351 = vpop.permute.xlu0 %3350
    %3352 = vrot.lane.b32.xlu0 %v3270, 8
    %v3353 = vpop.permute.xlu0 %3352
    %3354 = vrot.lane.b32.xlu0 %v3273, 8
    %v3355 = vpop.permute.xlu0 %3354
    %3356 = vrot.lane.b32.xlu0 %v3277, 8
    %v3357 = vpop.permute.xlu0 %3356
    %3358 = vrot.lane.b32.xlu0 %v3280, 8
    %v3359 = vpop.permute.xlu0 %3358
    %3360 = vrot.lane.b32.xlu0 %v3284, 8
    %v3361 = vpop.permute.xlu0 %3360
    %3362 = vrot.lane.b32.xlu0 %v3287, 8
    %v3363 = vpop.permute.xlu0 %3362
    %3364 = vrot.lane.b32.xlu0 %v3291, 8
    %v3365 = vpop.permute.xlu0 %3364
    %3366 = vrot.lane.b32.xlu0 %v3294, 8
    %v3367 = vpop.permute.xlu0 %3366
    %3368 = vrot.lane.b32.xlu0 %v3298, 8
    %v3369 = vpop.permute.xlu0 %3368
    %3370 = vrot.lane.b32.xlu0 %v3301, 8
    %v3371 = vpop.permute.xlu0 %3370
    %3372 = vrot.lane.b32.xlu0 %v3305, 8
    %v3373 = vpop.permute.xlu0 %3372
    %3374 = vrot.lane.b32.xlu0 %v3308, 8
    %v3375 = vpop.permute.xlu0 %3374
    %3376 = vrot.lane.b32.xlu0 %v3312, 8
    %v3377 = vpop.permute.xlu0 %3376
    %3378 = vrot.lane.b32.xlu0 %v3315, 8
    %v3379 = vpop.permute.xlu0 %3378
    %3412 = vst.msk [vmem:[#allocation3] sm:$0xf] %vm1400, %v3317
    %3413 = vst.msk [vmem:[#allocation3 + $0x4] sm:$0xf] %vm1400, %v3319
    %3414 = vst.msk [vmem:[#allocation3 + $0x8] sm:$0xf] %vm1400, %v3321
    %3415 = vst.msk [vmem:[#allocation3 + $0xc] sm:$0xf] %vm1400, %v3323
    %3416 = vst.msk [vmem:[#allocation3 + $0x10] sm:$0xf] %vm1400, %v3325
    %3417 = vst.msk [vmem:[#allocation3 + $0x14] sm:$0xf] %vm1400, %v3327
    %3418 = vst.msk [vmem:[#allocation3 + $0x18] sm:$0xf] %vm1400, %v3329
    %3419 = vst.msk [vmem:[#allocation3 + $0x1c] sm:$0xf] %vm1400, %v3331
    %3420 = vst.msk [vmem:[#allocation3 + $0x20] sm:$0xf] %vm1400, %v3333
    %3421 = vst.msk [vmem:[#allocation3 + $0x24] sm:$0xf] %vm1400, %v3335
    %3422 = vst.msk [vmem:[#allocation3 + $0x28] sm:$0xf] %vm1400, %v3337
    %3423 = vst.msk [vmem:[#allocation3 + $0x2c] sm:$0xf] %vm1400, %v3339
    %3424 = vst.msk [vmem:[#allocation3 + $0x30] sm:$0xf] %vm1400, %v3341
    %3425 = vst.msk [vmem:[#allocation3 + $0x34] sm:$0xf] %vm1400, %v3343
    %3426 = vst.msk [vmem:[#allocation3 + $0x38] sm:$0xf] %vm1400, %v3345
    %3427 = vst.msk [vmem:[#allocation3 + $0x3c] sm:$0xf] %vm1400, %v3347
    %3428 = vst.msk [vmem:[#allocation3 + $0x40] sm:$0xf] %vm1400, %v3349
    %3429 = vst.msk [vmem:[#allocation3 + $0x44] sm:$0xf] %vm1400, %v3351
    %3430 = vst.msk [vmem:[#allocation3 + $0x48] sm:$0xf] %vm1400, %v3353
    %3431 = vst.msk [vmem:[#allocation3 + $0x4c] sm:$0xf] %vm1400, %v3355
    %3432 = vst.msk [vmem:[#allocation3 + $0x50] sm:$0xf] %vm1400, %v3357
    %3433 = vst.msk [vmem:[#allocation3 + $0x54] sm:$0xf] %vm1400, %v3359
    %3434 = vst.msk [vmem:[#allocation3 + $0x58] sm:$0xf] %vm1400, %v3361
    %3435 = vst.msk [vmem:[#allocation3 + $0x5c] sm:$0xf] %vm1400, %v3363
    %3436 = vst.msk [vmem:[#allocation3 + $0x60] sm:$0xf] %vm1400, %v3365
    %3437 = vst.msk [vmem:[#allocation3 + $0x64] sm:$0xf] %vm1400, %v3367
    %3438 = vst.msk [vmem:[#allocation3 + $0x68] sm:$0xf] %vm1400, %v3369
    %3439 = vst.msk [vmem:[#allocation3 + $0x6c] sm:$0xf] %vm1400, %v3371
    %3440 = vst.msk [vmem:[#allocation3 + $0x70] sm:$0xf] %vm1400, %v3373
    %3441 = vst.msk [vmem:[#allocation3 + $0x74] sm:$0xf] %vm1400, %v3375
    %3442 = vst.msk [vmem:[#allocation3 + $0x78] sm:$0xf] %vm1400, %v3377
    %3443 = vst.msk [vmem:[#allocation3 + $0x7c] sm:$0xf] %vm1400, %v3379
    %v3444 = vpack.c.bf16 %v2558, %v2558
    %v3445 = vpack.c.bf16 %v2559, %v2559
    %3448 = vrot.lane.b32.xlu0 %v2566, 12
    %v3449 = vpop.permute.xlu0 %3448
    %3450 = vrot.lane.b32.xlu0 %v2567, 12
    %v3451 = vpop.permute.xlu0 %3450
    %3452 = vrot.lane.b32.xlu0 %v2568, 12
    %v3453 = vpop.permute.xlu0 %3452
    %3454 = vrot.lane.b32.xlu0 %v2569, 12
    %v3455 = vpop.permute.xlu0 %3454
    %3456 = vrot.lane.b32.xlu0 %v2570, 12
    %v3457 = vpop.permute.xlu0 %3456
    %3458 = vrot.lane.b32.xlu0 %v2571, 12
    %v3459 = vpop.permute.xlu0 %3458
    %3460 = vrot.lane.b32.xlu0 %v2572, 12
    %v3461 = vpop.permute.xlu0 %3460
    %3462 = vrot.lane.b32.xlu0 %v2573, 12
    %v3463 = vpop.permute.xlu0 %3462
    %3464 = vrot.lane.b32.xlu0 %v2574, 12
    %v3465 = vpop.permute.xlu0 %3464
    %3466 = vrot.lane.b32.xlu0 %v2575, 12
    %v3467 = vpop.permute.xlu0 %3466
    %3468 = vrot.lane.b32.xlu0 %v2576, 12
    %v3469 = vpop.permute.xlu0 %3468
    %3470 = vrot.lane.b32.xlu0 %v2577, 12
    %v3471 = vpop.permute.xlu0 %3470
    %3472 = vrot.lane.b32.xlu0 %v2578, 12
    %v3473 = vpop.permute.xlu0 %3472
    %3474 = vrot.lane.b32.xlu0 %v2579, 12
    %v3475 = vpop.permute.xlu0 %3474
    %3476 = vrot.lane.b32.xlu0 %v2580, 12
    %v3477 = vpop.permute.xlu0 %3476
    %3478 = vrot.lane.b32.xlu0 %v2581, 12
    %v3479 = vpop.permute.xlu0 %3478
    %3480 = vrot.lane.b32.xlu0 %v2582, 12
    %v3481 = vpop.permute.xlu0 %3480
    %3482 = vrot.lane.b32.xlu0 %v2583, 12
    %v3483 = vpop.permute.xlu0 %3482
    %3484 = vrot.lane.b32.xlu0 %v2584, 12
    %v3485 = vpop.permute.xlu0 %3484
    %3486 = vrot.lane.b32.xlu0 %v2585, 12
    %v3487 = vpop.permute.xlu0 %3486
    %3488 = vrot.lane.b32.xlu0 %v2586, 12
    %v3489 = vpop.permute.xlu0 %3488
    %3490 = vrot.lane.b32.xlu0 %v2587, 12
    %v3491 = vpop.permute.xlu0 %3490
    %3492 = vrot.lane.b32.xlu0 %v2588, 12
    %v3493 = vpop.permute.xlu0 %3492
    %3494 = vrot.lane.b32.xlu0 %v2589, 12
    %v3495 = vpop.permute.xlu0 %3494
    %3496 = vrot.lane.b32.xlu0 %v2590, 12
    %v3497 = vpop.permute.xlu0 %3496
    %3498 = vrot.lane.b32.xlu0 %v2591, 12
    %v3499 = vpop.permute.xlu0 %3498
    %3500 = vrot.lane.b32.xlu0 %v2592, 12
    %v3501 = vpop.permute.xlu0 %3500
    %3502 = vrot.lane.b32.xlu0 %v2593, 12
    %v3503 = vpop.permute.xlu0 %3502
    %3504 = vrot.lane.b32.xlu0 %v2594, 12
    %v3505 = vpop.permute.xlu0 %3504
    %3506 = vrot.lane.b32.xlu0 %v2595, 12
    %v3507 = vpop.permute.xlu0 %3506
    %3508 = vrot.lane.b32.xlu0 %v3444, 12
    %v3509 = vpop.permute.xlu0 %3508
    %3510 = vrot.lane.b32.xlu0 %v3445, 12
    %v3511 = vpop.permute.xlu0 %3510
    %3544 = vst.msk [vmem:[#allocation3] sm:$0xf] %vm1533, %v3449
    %3545 = vst.msk [vmem:[#allocation3 + $0x4] sm:$0xf] %vm1533, %v3451
    %3546 = vst.msk [vmem:[#allocation3 + $0x8] sm:$0xf] %vm1533, %v3453
    %3547 = vst.msk [vmem:[#allocation3 + $0xc] sm:$0xf] %vm1533, %v3455
    %3548 = vst.msk [vmem:[#allocation3 + $0x10] sm:$0xf] %vm1533, %v3457
    %3549 = vst.msk [vmem:[#allocation3 + $0x14] sm:$0xf] %vm1533, %v3459
    %3550 = vst.msk [vmem:[#allocation3 + $0x18] sm:$0xf] %vm1533, %v3461
    %3551 = vst.msk [vmem:[#allocation3 + $0x1c] sm:$0xf] %vm1533, %v3463
    %3552 = vst.msk [vmem:[#allocation3 + $0x20] sm:$0xf] %vm1533, %v3465
    %3553 = vst.msk [vmem:[#allocation3 + $0x24] sm:$0xf] %vm1533, %v3467
    %3554 = vst.msk [vmem:[#allocation3 + $0x28] sm:$0xf] %vm1533, %v3469
    %3555 = vst.msk [vmem:[#allocation3 + $0x2c] sm:$0xf] %vm1533, %v3471
    %3556 = vst.msk [vmem:[#allocation3 + $0x30] sm:$0xf] %vm1533, %v3473
    %3557 = vst.msk [vmem:[#allocation3 + $0x34] sm:$0xf] %vm1533, %v3475
    %3558 = vst.msk [vmem:[#allocation3 + $0x38] sm:$0xf] %vm1533, %v3477
    %3559 = vst.msk [vmem:[#allocation3 + $0x3c] sm:$0xf] %vm1533, %v3479
    %3560 = vst.msk [vmem:[#allocation3 + $0x40] sm:$0xf] %vm1533, %v3481
    %3561 = vst.msk [vmem:[#allocation3 + $0x44] sm:$0xf] %vm1533, %v3483
    %3562 = vst.msk [vmem:[#allocation3 + $0x48] sm:$0xf] %vm1533, %v3485
    %3563 = vst.msk [vmem:[#allocation3 + $0x4c] sm:$0xf] %vm1533, %v3487
    %3564 = vst.msk [vmem:[#allocation3 + $0x50] sm:$0xf] %vm1533, %v3489
    %3565 = vst.msk [vmem:[#allocation3 + $0x54] sm:$0xf] %vm1533, %v3491
    %3566 = vst.msk [vmem:[#allocation3 + $0x58] sm:$0xf] %vm1533, %v3493
    %3567 = vst.msk [vmem:[#allocation3 + $0x5c] sm:$0xf] %vm1533, %v3495
    %3568 = vst.msk [vmem:[#allocation3 + $0x60] sm:$0xf] %vm1533, %v3497
    %3569 = vst.msk [vmem:[#allocation3 + $0x64] sm:$0xf] %vm1533, %v3499
    %3570 = vst.msk [vmem:[#allocation3 + $0x68] sm:$0xf] %vm1533, %v3501
    %3571 = vst.msk [vmem:[#allocation3 + $0x6c] sm:$0xf] %vm1533, %v3503
    %3572 = vst.msk [vmem:[#allocation3 + $0x70] sm:$0xf] %vm1533, %v3505
    %3573 = vst.msk [vmem:[#allocation3 + $0x74] sm:$0xf] %vm1533, %v3507
    %3574 = vst.msk [vmem:[#allocation3 + $0x78] sm:$0xf] %vm1533, %v3509
    %3575 = vst.msk [vmem:[#allocation3 + $0x7c] sm:$0xf] %vm1533, %v3511
    %v3576 = vpack.c.bf16 %v2560, %v2560
    %v3578 = vshrl.u32 %v3444, 16
    %v3580 = vrot.slane %v3578, 4
    %v3581 = vshll.u32 %v3444, 16
    %v3583 = vrot.slane %v3581, 5
    %v3584 = vor.u32 %v3580, %v3583
    %v3585 = vrot.slane %v3584, 4
    %v3587 = vshll.u32 %v3445, 16
    %v3589 = vrot.slane %v3587, 5
    %v3590 = vsel %vm627, %v3585, %v3589
    %v3591 = vshrl.u32 %v3445, 16
    %v3593 = vrot.slane %v3591, 4
    %v3594 = vor.u32 %v3593, %v3589
    %v3595 = vrot.slane %v3594, 4
    %v3597 = vshll.u32 %v3576, 16
    %v3599 = vrot.slane %v3597, 5
    %v3600 = vsel %vm627, %v3595, %v3599
    %3601 = vrot.lane.b32.xlu0 %v2681, 16
    %v3602 = vpop.permute.xlu0 %3601
    %3603 = vrot.lane.b32.xlu0 %v2691, 16
    %v3604 = vpop.permute.xlu0 %3603
    %3605 = vrot.lane.b32.xlu0 %v2705, 16
    %v3606 = vpop.permute.xlu0 %3605
    %3607 = vrot.lane.b32.xlu0 %v2715, 16
    %v3608 = vpop.permute.xlu0 %3607
    %3609 = vrot.lane.b32.xlu0 %v2729, 16
    %v3610 = vpop.permute.xlu0 %3609
    %3611 = vrot.lane.b32.xlu0 %v2739, 16
    %v3612 = vpop.permute.xlu0 %3611
    %3613 = vrot.lane.b32.xlu0 %v2753, 16
    %v3614 = vpop.permute.xlu0 %3613
    %3615 = vrot.lane.b32.xlu0 %v2763, 16
    %v3616 = vpop.permute.xlu0 %3615
    %3617 = vrot.lane.b32.xlu0 %v2777, 16
    %v3618 = vpop.permute.xlu0 %3617
    %3619 = vrot.lane.b32.xlu0 %v2787, 16
    %v3620 = vpop.permute.xlu0 %3619
    %3621 = vrot.lane.b32.xlu0 %v2801, 16
    %v3622 = vpop.permute.xlu0 %3621
    %3623 = vrot.lane.b32.xlu0 %v2811, 16
    %v3624 = vpop.permute.xlu0 %3623
    %3625 = vrot.lane.b32.xlu0 %v2825, 16
    %v3626 = vpop.permute.xlu0 %3625
    %3627 = vrot.lane.b32.xlu0 %v2835, 16
    %v3628 = vpop.permute.xlu0 %3627
    %3629 = vrot.lane.b32.xlu0 %v2849, 16
    %v3630 = vpop.permute.xlu0 %3629
    %3631 = vrot.lane.b32.xlu0 %v2859, 16
    %v3632 = vpop.permute.xlu0 %3631
    %3633 = vrot.lane.b32.xlu0 %v2873, 16
    %v3634 = vpop.permute.xlu0 %3633
    %3635 = vrot.lane.b32.xlu0 %v2883, 16
    %v3636 = vpop.permute.xlu0 %3635
    %3637 = vrot.lane.b32.xlu0 %v2897, 16
    %v3638 = vpop.permute.xlu0 %3637
    %3639 = vrot.lane.b32.xlu0 %v2907, 16
    %v3640 = vpop.permute.xlu0 %3639
    %3641 = vrot.lane.b32.xlu0 %v2921, 16
    %v3642 = vpop.permute.xlu0 %3641
    %3643 = vrot.lane.b32.xlu0 %v2931, 16
    %v3644 = vpop.permute.xlu0 %3643
    %3645 = vrot.lane.b32.xlu0 %v2945, 16
    %v3646 = vpop.permute.xlu0 %3645
    %3647 = vrot.lane.b32.xlu0 %v2955, 16
    %v3648 = vpop.permute.xlu0 %3647
    %3649 = vrot.lane.b32.xlu0 %v2969, 16
    %v3650 = vpop.permute.xlu0 %3649
    %3651 = vrot.lane.b32.xlu0 %v2979, 16
    %v3652 = vpop.permute.xlu0 %3651
    %3653 = vrot.lane.b32.xlu0 %v2993, 16
    %v3654 = vpop.permute.xlu0 %3653
    %3655 = vrot.lane.b32.xlu0 %v3003, 16
    %v3656 = vpop.permute.xlu0 %3655
    %3657 = vrot.lane.b32.xlu0 %v3017, 16
    %v3658 = vpop.permute.xlu0 %3657
    %3659 = vrot.lane.b32.xlu0 %v3027, 16
    %v3660 = vpop.permute.xlu0 %3659
    %3661 = vrot.lane.b32.xlu0 %v3590, 16
    %v3662 = vpop.permute.xlu0 %3661
    %3663 = vrot.lane.b32.xlu0 %v3600, 16
    %v3664 = vpop.permute.xlu0 %3663
    %3697 = vst.msk [vmem:[#allocation3] sm:$0xf] %vm1687, %v3602
    %3698 = vst.msk [vmem:[#allocation3 + $0x4] sm:$0xf] %vm1687, %v3604
    %3699 = vst.msk [vmem:[#allocation3 + $0x8] sm:$0xf] %vm1687, %v3606
    %3700 = vst.msk [vmem:[#allocation3 + $0xc] sm:$0xf] %vm1687, %v3608
    %3701 = vst.msk [vmem:[#allocation3 + $0x10] sm:$0xf] %vm1687, %v3610
    %3702 = vst.msk [vmem:[#allocation3 + $0x14] sm:$0xf] %vm1687, %v3612
    %3703 = vst.msk [vmem:[#allocation3 + $0x18] sm:$0xf] %vm1687, %v3614
    %3704 = vst.msk [vmem:[#allocation3 + $0x1c] sm:$0xf] %vm1687, %v3616
    %3705 = vst.msk [vmem:[#allocation3 + $0x20] sm:$0xf] %vm1687, %v3618
    %3706 = vst.msk [vmem:[#allocation3 + $0x24] sm:$0xf] %vm1687, %v3620
    %3707 = vst.msk [vmem:[#allocation3 + $0x28] sm:$0xf] %vm1687, %v3622
    %3708 = vst.msk [vmem:[#allocation3 + $0x2c] sm:$0xf] %vm1687, %v3624
    %3709 = vst.msk [vmem:[#allocation3 + $0x30] sm:$0xf] %vm1687, %v3626
    %3710 = vst.msk [vmem:[#allocation3 + $0x34] sm:$0xf] %vm1687, %v3628
    %3711 = vst.msk [vmem:[#allocation3 + $0x38] sm:$0xf] %vm1687, %v3630
    %3712 = vst.msk [vmem:[#allocation3 + $0x3c] sm:$0xf] %vm1687, %v3632
    %3713 = vst.msk [vmem:[#allocation3 + $0x40] sm:$0xf] %vm1687, %v3634
    %3714 = vst.msk [vmem:[#allocation3 + $0x44] sm:$0xf] %vm1687, %v3636
    %3715 = vst.msk [vmem:[#allocation3 + $0x48] sm:$0xf] %vm1687, %v3638
    %3716 = vst.msk [vmem:[#allocation3 + $0x4c] sm:$0xf] %vm1687, %v3640
    %3717 = vst.msk [vmem:[#allocation3 + $0x50] sm:$0xf] %vm1687, %v3642
    %3718 = vst.msk [vmem:[#allocation3 + $0x54] sm:$0xf] %vm1687, %v3644
    %3719 = vst.msk [vmem:[#allocation3 + $0x58] sm:$0xf] %vm1687, %v3646
    %3720 = vst.msk [vmem:[#allocation3 + $0x5c] sm:$0xf] %vm1687, %v3648
    %3721 = vst.msk [vmem:[#allocation3 + $0x60] sm:$0xf] %vm1687, %v3650
    %3722 = vst.msk [vmem:[#allocation3 + $0x64] sm:$0xf] %vm1687, %v3652
    %3723 = vst.msk [vmem:[#allocation3 + $0x68] sm:$0xf] %vm1687, %v3654
    %3724 = vst.msk [vmem:[#allocation3 + $0x6c] sm:$0xf] %vm1687, %v3656
    %3725 = vst.msk [vmem:[#allocation3 + $0x70] sm:$0xf] %vm1687, %v3658
    %3726 = vst.msk [vmem:[#allocation3 + $0x74] sm:$0xf] %vm1687, %v3660
    %3727 = vst.msk [vmem:[#allocation3 + $0x78] sm:$0xf] %vm1687, %v3662
    %3728 = vst.msk [vmem:[#allocation3 + $0x7c] sm:$0xf] %vm1687, %v3664
    %v3730 = vrot.slane %v3444, 5
    %v3731 = vrot.slane %v3730, 4
    %v3732 = vrot.slane %v3445, 5
    %v3733 = vsel %vm1191, %v3731, %v3732
    %v3734 = vrot.slane %v3732, 4
    %v3735 = vrot.slane %v3576, 5
    %v3736 = vsel %vm1191, %v3734, %v3735
    %3737 = vrot.lane.b32.xlu0 %v3214, 20
    %v3738 = vpop.permute.xlu0 %3737
    %3739 = vrot.lane.b32.xlu0 %v3217, 20
    %v3740 = vpop.permute.xlu0 %3739
    %3741 = vrot.lane.b32.xlu0 %v3221, 20
    %v3742 = vpop.permute.xlu0 %3741
    %3743 = vrot.lane.b32.xlu0 %v3224, 20
    %v3744 = vpop.permute.xlu0 %3743
    %3745 = vrot.lane.b32.xlu0 %v3228, 20
    %v3746 = vpop.permute.xlu0 %3745
    %3747 = vrot.lane.b32.xlu0 %v3231, 20
    %v3748 = vpop.permute.xlu0 %3747
    %3749 = vrot.lane.b32.xlu0 %v3235, 20
    %v3750 = vpop.permute.xlu0 %3749
    %3751 = vrot.lane.b32.xlu0 %v3238, 20
    %v3752 = vpop.permute.xlu0 %3751
    %3753 = vrot.lane.b32.xlu0 %v3242, 20
    %v3754 = vpop.permute.xlu0 %3753
    %3755 = vrot.lane.b32.xlu0 %v3245, 20
    %v3756 = vpop.permute.xlu0 %3755
    %3757 = vrot.lane.b32.xlu0 %v3249, 20
    %v3758 = vpop.permute.xlu0 %3757
    %3759 = vrot.lane.b32.xlu0 %v3252, 20
    %v3760 = vpop.permute.xlu0 %3759
    %3761 = vrot.lane.b32.xlu0 %v3256, 20
    %v3762 = vpop.permute.xlu0 %3761
    %3763 = vrot.lane.b32.xlu0 %v3259, 20
    %v3764 = vpop.permute.xlu0 %3763
    %3765 = vrot.lane.b32.xlu0 %v3263, 20
    %v3766 = vpop.permute.xlu0 %3765
    %3767 = vrot.lane.b32.xlu0 %v3266, 20
    %v3768 = vpop.permute.xlu0 %3767
    %3769 = vrot.lane.b32.xlu0 %v3270, 20
    %v3770 = vpop.permute.xlu0 %3769
    %3771 = vrot.lane.b32.xlu0 %v3273, 20
    %v3772 = vpop.permute.xlu0 %3771
    %3773 = vrot.lane.b32.xlu0 %v3277, 20
    %v3774 = vpop.permute.xlu0 %3773
    %3775 = vrot.lane.b32.xlu0 %v3280, 20
    %v3776 = vpop.permute.xlu0 %3775
    %3777 = vrot.lane.b32.xlu0 %v3284, 20
    %v3778 = vpop.permute.xlu0 %3777
    %3779 = vrot.lane.b32.xlu0 %v3287, 20
    %v3780 = vpop.permute.xlu0 %3779
    %3781 = vrot.lane.b32.xlu0 %v3291, 20
    %v3782 = vpop.permute.xlu0 %3781
    %3783 = vrot.lane.b32.xlu0 %v3294, 20
    %v3784 = vpop.permute.xlu0 %3783
    %3785 = vrot.lane.b32.xlu0 %v3298, 20
    %v3786 = vpop.permute.xlu0 %3785
    %3787 = vrot.lane.b32.xlu0 %v3301, 20
    %v3788 = vpop.permute.xlu0 %3787
    %3789 = vrot.lane.b32.xlu0 %v3305, 20
    %v3790 = vpop.permute.xlu0 %3789
    %3791 = vrot.lane.b32.xlu0 %v3308, 20
    %v3792 = vpop.permute.xlu0 %3791
    %3793 = vrot.lane.b32.xlu0 %v3312, 20
    %v3794 = vpop.permute.xlu0 %3793
    %3795 = vrot.lane.b32.xlu0 %v3315, 20
    %v3796 = vpop.permute.xlu0 %3795
    %3797 = vrot.lane.b32.xlu0 %v3733, 20
    %v3798 = vpop.permute.xlu0 %3797
    %3799 = vrot.lane.b32.xlu0 %v3736, 20
    %v3800 = vpop.permute.xlu0 %3799
    %3833 = vst.msk [vmem:[#allocation3] sm:$0xf] %vm1824, %v3738
    %3834 = vst.msk [vmem:[#allocation3 + $0x4] sm:$0xf] %vm1824, %v3740
    %3835 = vst.msk [vmem:[#allocation3 + $0x8] sm:$0xf] %vm1824, %v3742
    %3836 = vst.msk [vmem:[#allocation3 + $0xc] sm:$0xf] %vm1824, %v3744
    %3837 = vst.msk [vmem:[#allocation3 + $0x10] sm:$0xf] %vm1824, %v3746
    %3838 = vst.msk [vmem:[#allocation3 + $0x14] sm:$0xf] %vm1824, %v3748
    %3839 = vst.msk [vmem:[#allocation3 + $0x18] sm:$0xf] %vm1824, %v3750
    %3840 = vst.msk [vmem:[#allocation3 + $0x1c] sm:$0xf] %vm1824, %v3752
    %3841 = vst.msk [vmem:[#allocation3 + $0x20] sm:$0xf] %vm1824, %v3754
    %3842 = vst.msk [vmem:[#allocation3 + $0x24] sm:$0xf] %vm1824, %v3756
    %3843 = vst.msk [vmem:[#allocation3 + $0x28] sm:$0xf] %vm1824, %v3758
    %3844 = vst.msk [vmem:[#allocation3 + $0x2c] sm:$0xf] %vm1824, %v3760
    %3845 = vst.msk [vmem:[#allocation3 + $0x30] sm:$0xf] %vm1824, %v3762
    %3846 = vst.msk [vmem:[#allocation3 + $0x34] sm:$0xf] %vm1824, %v3764
    %3847 = vst.msk [vmem:[#allocation3 + $0x38] sm:$0xf] %vm1824, %v3766
    %3848 = vst.msk [vmem:[#allocation3 + $0x3c] sm:$0xf] %vm1824, %v3768
    %3849 = vst.msk [vmem:[#allocation3 + $0x40] sm:$0xf] %vm1824, %v3770
    %3850 = vst.msk [vmem:[#allocation3 + $0x44] sm:$0xf] %vm1824, %v3772
    %3851 = vst.msk [vmem:[#allocation3 + $0x48] sm:$0xf] %vm1824, %v3774
    %3852 = vst.msk [vmem:[#allocation3 + $0x4c] sm:$0xf] %vm1824, %v3776
    %3853 = vst.msk [vmem:[#allocation3 + $0x50] sm:$0xf] %vm1824, %v3778
    %3854 = vst.msk [vmem:[#allocation3 + $0x54] sm:$0xf] %vm1824, %v3780
    %3855 = vst.msk [vmem:[#allocation3 + $0x58] sm:$0xf] %vm1824, %v3782
    %3856 = vst.msk [vmem:[#allocation3 + $0x5c] sm:$0xf] %vm1824, %v3784
    %3857 = vst.msk [vmem:[#allocation3 + $0x60] sm:$0xf] %vm1824, %v3786
    %3858 = vst.msk [vmem:[#allocation3 + $0x64] sm:$0xf] %vm1824, %v3788
    %3859 = vst.msk [vmem:[#allocation3 + $0x68] sm:$0xf] %vm1824, %v3790
    %3860 = vst.msk [vmem:[#allocation3 + $0x6c] sm:$0xf] %vm1824, %v3792
    %3861 = vst.msk [vmem:[#allocation3 + $0x70] sm:$0xf] %vm1824, %v3794
    %3862 = vst.msk [vmem:[#allocation3 + $0x74] sm:$0xf] %vm1824, %v3796
    %3863 = vst.msk [vmem:[#allocation3 + $0x78] sm:$0xf] %vm1824, %v3798
    %3864 = vst.msk [vmem:[#allocation3 + $0x7c] sm:$0xf] %vm1824, %v3800
    %v3865 = vpack.c.bf16 %v2561, %v2561
    %v3866 = vpack.c.bf16 %v2562, %v2562
    %3869 = vrot.lane.b32.xlu0 %v2568, 24
    %v3870 = vpop.permute.xlu0 %3869
    %3871 = vrot.lane.b32.xlu0 %v2569, 24
    %v3872 = vpop.permute.xlu0 %3871
    %3873 = vrot.lane.b32.xlu0 %v2570, 24
    %v3874 = vpop.permute.xlu0 %3873
    %3875 = vrot.lane.b32.xlu0 %v2571, 24
    %v3876 = vpop.permute.xlu0 %3875
    %3877 = vrot.lane.b32.xlu0 %v2572, 24
    %v3878 = vpop.permute.xlu0 %3877
    %3879 = vrot.lane.b32.xlu0 %v2573, 24
    %v3880 = vpop.permute.xlu0 %3879
    %3881 = vrot.lane.b32.xlu0 %v2574, 24
    %v3882 = vpop.permute.xlu0 %3881
    %3883 = vrot.lane.b32.xlu0 %v2575, 24
    %v3884 = vpop.permute.xlu0 %3883
    %3885 = vrot.lane.b32.xlu0 %v2576, 24
    %v3886 = vpop.permute.xlu0 %3885
    %3887 = vrot.lane.b32.xlu0 %v2577, 24
    %v3888 = vpop.permute.xlu0 %3887
    %3889 = vrot.lane.b32.xlu0 %v2578, 24
    %v3890 = vpop.permute.xlu0 %3889
    %3891 = vrot.lane.b32.xlu0 %v2579, 24
    %v3892 = vpop.permute.xlu0 %3891
    %3893 = vrot.lane.b32.xlu0 %v2580, 24
    %v3894 = vpop.permute.xlu0 %3893
    %3895 = vrot.lane.b32.xlu0 %v2581, 24
    %v3896 = vpop.permute.xlu0 %3895
    %3897 = vrot.lane.b32.xlu0 %v2582, 24
    %v3898 = vpop.permute.xlu0 %3897
    %3899 = vrot.lane.b32.xlu0 %v2583, 24
    %v3900 = vpop.permute.xlu0 %3899
    %3901 = vrot.lane.b32.xlu0 %v2584, 24
    %v3902 = vpop.permute.xlu0 %3901
    %3903 = vrot.lane.b32.xlu0 %v2585, 24
    %v3904 = vpop.permute.xlu0 %3903
    %3905 = vrot.lane.b32.xlu0 %v2586, 24
    %v3906 = vpop.permute.xlu0 %3905
    %3907 = vrot.lane.b32.xlu0 %v2587, 24
    %v3908 = vpop.permute.xlu0 %3907
    %3909 = vrot.lane.b32.xlu0 %v2588, 24
    %v3910 = vpop.permute.xlu0 %3909
    %3911 = vrot.lane.b32.xlu0 %v2589, 24
    %v3912 = vpop.permute.xlu0 %3911
    %3913 = vrot.lane.b32.xlu0 %v2590, 24
    %v3914 = vpop.permute.xlu0 %3913
    %3915 = vrot.lane.b32.xlu0 %v2591, 24
    %v3916 = vpop.permute.xlu0 %3915
    %3917 = vrot.lane.b32.xlu0 %v2592, 24
    %v3918 = vpop.permute.xlu0 %3917
    %3919 = vrot.lane.b32.xlu0 %v2593, 24
    %v3920 = vpop.permute.xlu0 %3919
    %3921 = vrot.lane.b32.xlu0 %v2594, 24
    %v3922 = vpop.permute.xlu0 %3921
    %3923 = vrot.lane.b32.xlu0 %v2595, 24
    %v3924 = vpop.permute.xlu0 %3923
    %3925 = vrot.lane.b32.xlu0 %v3444, 24
    %v3926 = vpop.permute.xlu0 %3925
    %3927 = vrot.lane.b32.xlu0 %v3445, 24
    %v3928 = vpop.permute.xlu0 %3927
    %3929 = vrot.lane.b32.xlu0 %v3865, 24
    %v3930 = vpop.permute.xlu0 %3929
    %3931 = vrot.lane.b32.xlu0 %v3866, 24
    %v3932 = vpop.permute.xlu0 %3931
    %3965 = vst.msk [vmem:[#allocation3] sm:$0xf] %vm1957, %v3870
    %3966 = vst.msk [vmem:[#allocation3 + $0x4] sm:$0xf] %vm1957, %v3872
    %3967 = vst.msk [vmem:[#allocation3 + $0x8] sm:$0xf] %vm1957, %v3874
    %3968 = vst.msk [vmem:[#allocation3 + $0xc] sm:$0xf] %vm1957, %v3876
    %3969 = vst.msk [vmem:[#allocation3 + $0x10] sm:$0xf] %vm1957, %v3878
    %3970 = vst.msk [vmem:[#allocation3 + $0x14] sm:$0xf] %vm1957, %v3880
    %3971 = vst.msk [vmem:[#allocation3 + $0x18] sm:$0xf] %vm1957, %v3882
    %3972 = vst.msk [vmem:[#allocation3 + $0x1c] sm:$0xf] %vm1957, %v3884
    %3973 = vst.msk [vmem:[#allocation3 + $0x20] sm:$0xf] %vm1957, %v3886
    %3974 = vst.msk [vmem:[#allocation3 + $0x24] sm:$0xf] %vm1957, %v3888
    %3975 = vst.msk [vmem:[#allocation3 + $0x28] sm:$0xf] %vm1957, %v3890
    %3976 = vst.msk [vmem:[#allocation3 + $0x2c] sm:$0xf] %vm1957, %v3892
    %3977 = vst.msk [vmem:[#allocation3 + $0x30] sm:$0xf] %vm1957, %v3894
    %3978 = vst.msk [vmem:[#allocation3 + $0x34] sm:$0xf] %vm1957, %v3896
    %3979 = vst.msk [vmem:[#allocation3 + $0x38] sm:$0xf] %vm1957, %v3898
    %3980 = vst.msk [vmem:[#allocation3 + $0x3c] sm:$0xf] %vm1957, %v3900
    %3981 = vst.msk [vmem:[#allocation3 + $0x40] sm:$0xf] %vm1957, %v3902
    %3982 = vst.msk [vmem:[#allocation3 + $0x44] sm:$0xf] %vm1957, %v3904
    %3983 = vst.msk [vmem:[#allocation3 + $0x48] sm:$0xf] %vm1957, %v3906
    %3984 = vst.msk [vmem:[#allocation3 + $0x4c] sm:$0xf] %vm1957, %v3908
    %3985 = vst.msk [vmem:[#allocation3 + $0x50] sm:$0xf] %vm1957, %v3910
    %3986 = vst.msk [vmem:[#allocation3 + $0x54] sm:$0xf] %vm1957, %v3912
    %3987 = vst.msk [vmem:[#allocation3 + $0x58] sm:$0xf] %vm1957, %v3914
    %3988 = vst.msk [vmem:[#allocation3 + $0x5c] sm:$0xf] %vm1957, %v3916
    %3989 = vst.msk [vmem:[#allocation3 + $0x60] sm:$0xf] %vm1957, %v3918
    %3990 = vst.msk [vmem:[#allocation3 + $0x64] sm:$0xf] %vm1957, %v3920
    %3991 = vst.msk [vmem:[#allocation3 + $0x68] sm:$0xf] %vm1957, %v3922
    %3992 = vst.msk [vmem:[#allocation3 + $0x6c] sm:$0xf] %vm1957, %v3924
    %3993 = vst.msk [vmem:[#allocation3 + $0x70] sm:$0xf] %vm1957, %v3926
    %3994 = vst.msk [vmem:[#allocation3 + $0x74] sm:$0xf] %vm1957, %v3928
    %3995 = vst.msk [vmem:[#allocation3 + $0x78] sm:$0xf] %vm1957, %v3930
    %3996 = vst.msk [vmem:[#allocation3 + $0x7c] sm:$0xf] %vm1957, %v3932
    %v3997 = vpack.c.bf16 %v2563, %v2563
    %v3999 = vshrl.u32 %v3865, 16
    %v4001 = vrot.slane %v3999, 4
    %v4002 = vshll.u32 %v3865, 16
    %v4004 = vrot.slane %v4002, 5
    %v4005 = vor.u32 %v4001, %v4004
    %v4006 = vrot.slane %v4005, 4
    %v4008 = vshll.u32 %v3866, 16
    %v4010 = vrot.slane %v4008, 5
    %v4011 = vsel %vm627, %v4006, %v4010
    %v4012 = vshrl.u32 %v3866, 16
    %v4014 = vrot.slane %v4012, 4
    %v4015 = vor.u32 %v4014, %v4010
    %v4016 = vrot.slane %v4015, 4
    %v4018 = vshll.u32 %v3997, 16
    %v4020 = vrot.slane %v4018, 5
    %v4021 = vsel %vm627, %v4016, %v4020
    %4022 = vrot.lane.b32.xlu0 %v2705, 28
    %v4023 = vpop.permute.xlu0 %4022
    %4024 = vrot.lane.b32.xlu0 %v2715, 28
    %v4025 = vpop.permute.xlu0 %4024
    %4026 = vrot.lane.b32.xlu0 %v2729, 28
    %v4027 = vpop.permute.xlu0 %4026
    %4028 = vrot.lane.b32.xlu0 %v2739, 28
    %v4029 = vpop.permute.xlu0 %4028
    %4030 = vrot.lane.b32.xlu0 %v2753, 28
    %v4031 = vpop.permute.xlu0 %4030
    %4032 = vrot.lane.b32.xlu0 %v2763, 28
    %v4033 = vpop.permute.xlu0 %4032
    %4034 = vrot.lane.b32.xlu0 %v2777, 28
    %v4035 = vpop.permute.xlu0 %4034
    %4036 = vrot.lane.b32.xlu0 %v2787, 28
    %v4037 = vpop.permute.xlu0 %4036
    %4038 = vrot.lane.b32.xlu0 %v2801, 28
    %v4039 = vpop.permute.xlu0 %4038
    %4040 = vrot.lane.b32.xlu0 %v2811, 28
    %v4041 = vpop.permute.xlu0 %4040
    %4042 = vrot.lane.b32.xlu0 %v2825, 28
    %v4043 = vpop.permute.xlu0 %4042
    %4044 = vrot.lane.b32.xlu0 %v2835, 28
    %v4045 = vpop.permute.xlu0 %4044
    %4046 = vrot.lane.b32.xlu0 %v2849, 28
    %v4047 = vpop.permute.xlu0 %4046
    %4048 = vrot.lane.b32.xlu0 %v2859, 28
    %v4049 = vpop.permute.xlu0 %4048
    %4050 = vrot.lane.b32.xlu0 %v2873, 28
    %v4051 = vpop.permute.xlu0 %4050
    %4052 = vrot.lane.b32.xlu0 %v2883, 28
    %v4053 = vpop.permute.xlu0 %4052
    %4054 = vrot.lane.b32.xlu0 %v2897, 28
    %v4055 = vpop.permute.xlu0 %4054
    %4056 = vrot.lane.b32.xlu0 %v2907, 28
    %v4057 = vpop.permute.xlu0 %4056
    %4058 = vrot.lane.b32.xlu0 %v2921, 28
    %v4059 = vpop.permute.xlu0 %4058
    %4060 = vrot.lane.b32.xlu0 %v2931, 28
    %v4061 = vpop.permute.xlu0 %4060
    %4062 = vrot.lane.b32.xlu0 %v2945, 28
    %v4063 = vpop.permute.xlu0 %4062
    %4064 = vrot.lane.b32.xlu0 %v2955, 28
    %v4065 = vpop.permute.xlu0 %4064
    %4066 = vrot.lane.b32.xlu0 %v2969, 28
    %v4067 = vpop.permute.xlu0 %4066
    %4068 = vrot.lane.b32.xlu0 %v2979, 28
    %v4069 = vpop.permute.xlu0 %4068
    %4070 = vrot.lane.b32.xlu0 %v2993, 28
    %v4071 = vpop.permute.xlu0 %4070
    %4072 = vrot.lane.b32.xlu0 %v3003, 28
    %v4073 = vpop.permute.xlu0 %4072
    %4074 = vrot.lane.b32.xlu0 %v3017, 28
    %v4075 = vpop.permute.xlu0 %4074
    %4076 = vrot.lane.b32.xlu0 %v3027, 28
    %v4077 = vpop.permute.xlu0 %4076
    %4078 = vrot.lane.b32.xlu0 %v3590, 28
    %v4079 = vpop.permute.xlu0 %4078
    %4080 = vrot.lane.b32.xlu0 %v3600, 28
    %v4081 = vpop.permute.xlu0 %4080
    %4082 = vrot.lane.b32.xlu0 %v4011, 28
    %v4083 = vpop.permute.xlu0 %4082
    %4084 = vrot.lane.b32.xlu0 %v4021, 28
    %v4085 = vpop.permute.xlu0 %4084
    %4118 = vst.msk [vmem:[#allocation3] sm:$0xf] %vm2111, %v4023
    %4119 = vst.msk [vmem:[#allocation3 + $0x4] sm:$0xf] %vm2111, %v4025
    %4120 = vst.msk [vmem:[#allocation3 + $0x8] sm:$0xf] %vm2111, %v4027
    %4121 = vst.msk [vmem:[#allocation3 + $0xc] sm:$0xf] %vm2111, %v4029
    %4122 = vst.msk [vmem:[#allocation3 + $0x10] sm:$0xf] %vm2111, %v4031
    %4123 = vst.msk [vmem:[#allocation3 + $0x14] sm:$0xf] %vm2111, %v4033
    %4124 = vst.msk [vmem:[#allocation3 + $0x18] sm:$0xf] %vm2111, %v4035
    %4125 = vst.msk [vmem:[#allocation3 + $0x1c] sm:$0xf] %vm2111, %v4037
    %4126 = vst.msk [vmem:[#allocation3 + $0x20] sm:$0xf] %vm2111, %v4039
    %4127 = vst.msk [vmem:[#allocation3 + $0x24] sm:$0xf] %vm2111, %v4041
    %4128 = vst.msk [vmem:[#allocation3 + $0x28] sm:$0xf] %vm2111, %v4043
    %4129 = vst.msk [vmem:[#allocation3 + $0x2c] sm:$0xf] %vm2111, %v4045
    %4130 = vst.msk [vmem:[#allocation3 + $0x30] sm:$0xf] %vm2111, %v4047
    %4131 = vst.msk [vmem:[#allocation3 + $0x34] sm:$0xf] %vm2111, %v4049
    %4132 = vst.msk [vmem:[#allocation3 + $0x38] sm:$0xf] %vm2111, %v4051
    %4133 = vst.msk [vmem:[#allocation3 + $0x3c] sm:$0xf] %vm2111, %v4053
    %4134 = vst.msk [vmem:[#allocation3 + $0x40] sm:$0xf] %vm2111, %v4055
    %4135 = vst.msk [vmem:[#allocation3 + $0x44] sm:$0xf] %vm2111, %v4057
    %4136 = vst.msk [vmem:[#allocation3 + $0x48] sm:$0xf] %vm2111, %v4059
    %4137 = vst.msk [vmem:[#allocation3 + $0x4c] sm:$0xf] %vm2111, %v4061
    %4138 = vst.msk [vmem:[#allocation3 + $0x50] sm:$0xf] %vm2111, %v4063
    %4139 = vst.msk [vmem:[#allocation3 + $0x54] sm:$0xf] %vm2111, %v4065
    %4140 = vst.msk [vmem:[#allocation3 + $0x58] sm:$0xf] %vm2111, %v4067
    %4141 = vst.msk [vmem:[#allocation3 + $0x5c] sm:$0xf] %vm2111, %v4069
    %4142 = vst.msk [vmem:[#allocation3 + $0x60] sm:$0xf] %vm2111, %v4071
    %4143 = vst.msk [vmem:[#allocation3 + $0x64] sm:$0xf] %vm2111, %v4073
    %4144 = vst.msk [vmem:[#allocation3 + $0x68] sm:$0xf] %vm2111, %v4075
    %4145 = vst.msk [vmem:[#allocation3 + $0x6c] sm:$0xf] %vm2111, %v4077
    %4146 = vst.msk [vmem:[#allocation3 + $0x70] sm:$0xf] %vm2111, %v4079
    %4147 = vst.msk [vmem:[#allocation3 + $0x74] sm:$0xf] %vm2111, %v4081
    %4148 = vst.msk [vmem:[#allocation3 + $0x78] sm:$0xf] %vm2111, %v4083
    %4149 = vst.msk [vmem:[#allocation3 + $0x7c] sm:$0xf] %vm2111, %v4085
    %v4151 = vrot.slane %v3865, 5
    %v4152 = vrot.slane %v4151, 4
    %v4153 = vrot.slane %v3866, 5
    %v4154 = vsel %vm1191, %v4152, %v4153
    %v4155 = vrot.slane %v4153, 4
    %v4156 = vrot.slane %v3997, 5
    %v4157 = vsel %vm1191, %v4155, %v4156
    %4158 = vrot.lane.b32.xlu0 %v3221, 32
    %v4159 = vpop.permute.xlu0 %4158
    %4160 = vrot.lane.b32.xlu0 %v3224, 32
    %v4161 = vpop.permute.xlu0 %4160
    %4162 = vrot.lane.b32.xlu0 %v3228, 32
    %v4163 = vpop.permute.xlu0 %4162
    %4164 = vrot.lane.b32.xlu0 %v3231, 32
    %v4165 = vpop.permute.xlu0 %4164
    %4166 = vrot.lane.b32.xlu0 %v3235, 32
    %v4167 = vpop.permute.xlu0 %4166
    %4168 = vrot.lane.b32.xlu0 %v3238, 32
    %v4169 = vpop.permute.xlu0 %4168
    %4170 = vrot.lane.b32.xlu0 %v3242, 32
    %v4171 = vpop.permute.xlu0 %4170
    %4172 = vrot.lane.b32.xlu0 %v3245, 32
    %v4173 = vpop.permute.xlu0 %4172
    %4174 = vrot.lane.b32.xlu0 %v3249, 32
    %v4175 = vpop.permute.xlu0 %4174
    %4176 = vrot.lane.b32.xlu0 %v3252, 32
    %v4177 = vpop.permute.xlu0 %4176
    %4178 = vrot.lane.b32.xlu0 %v3256, 32
    %v4179 = vpop.permute.xlu0 %4178
    %4180 = vrot.lane.b32.xlu0 %v3259, 32
    %v4181 = vpop.permute.xlu0 %4180
    %4182 = vrot.lane.b32.xlu0 %v3263, 32
    %v4183 = vpop.permute.xlu0 %4182
    %4184 = vrot.lane.b32.xlu0 %v3266, 32
    %v4185 = vpop.permute.xlu0 %4184
    %4186 = vrot.lane.b32.xlu0 %v3270, 32
    %v4187 = vpop.permute.xlu0 %4186
    %4188 = vrot.lane.b32.xlu0 %v3273, 32
    %v4189 = vpop.permute.xlu0 %4188
    %4190 = vrot.lane.b32.xlu0 %v3277, 32
    %v4191 = vpop.permute.xlu0 %4190
    %4192 = vrot.lane.b32.xlu0 %v3280, 32
    %v4193 = vpop.permute.xlu0 %4192
    %4194 = vrot.lane.b32.xlu0 %v3284, 32
    %v4195 = vpop.permute.xlu0 %4194
    %4196 = vrot.lane.b32.xlu0 %v3287, 32
    %v4197 = vpop.permute.xlu0 %4196
    %4198 = vrot.lane.b32.xlu0 %v3291, 32
    %v4199 = vpop.permute.xlu0 %4198
    %4200 = vrot.lane.b32.xlu0 %v3294, 32
    %v4201 = vpop.permute.xlu0 %4200
    %4202 = vrot.lane.b32.xlu0 %v3298, 32
    %v4203 = vpop.permute.xlu0 %4202
    %4204 = vrot.lane.b32.xlu0 %v3301, 32
    %v4205 = vpop.permute.xlu0 %4204
    %4206 = vrot.lane.b32.xlu0 %v3305, 32
    %v4207 = vpop.permute.xlu0 %4206
    %4208 = vrot.lane.b32.xlu0 %v3308, 32
    %v4209 = vpop.permute.xlu0 %4208
    %4210 = vrot.lane.b32.xlu0 %v3312, 32
    %v4211 = vpop.permute.xlu0 %4210
    %4212 = vrot.lane.b32.xlu0 %v3315, 32
    %v4213 = vpop.permute.xlu0 %4212
    %4214 = vrot.lane.b32.xlu0 %v3733, 32
    %v4215 = vpop.permute.xlu0 %4214
    %4216 = vrot.lane.b32.xlu0 %v3736, 32
    %v4217 = vpop.permute.xlu0 %4216
    %4218 = vrot.lane.b32.xlu0 %v4154, 32
    %v4219 = vpop.permute.xlu0 %4218
    %4220 = vrot.lane.b32.xlu0 %v4157, 32
    %v4221 = vpop.permute.xlu0 %4220
    %4254 = vst.msk [vmem:[#allocation3] sm:$0xf] %vm2248, %v4159
    %4255 = vst.msk [vmem:[#allocation3 + $0x4] sm:$0xf] %vm2248, %v4161
    %4256 = vst.msk [vmem:[#allocation3 + $0x8] sm:$0xf] %vm2248, %v4163
    %4257 = vst.msk [vmem:[#allocation3 + $0xc] sm:$0xf] %vm2248, %v4165
    %4258 = vst.msk [vmem:[#allocation3 + $0x10] sm:$0xf] %vm2248, %v4167
    %4259 = vst.msk [vmem:[#allocation3 + $0x14] sm:$0xf] %vm2248, %v4169
    %4260 = vst.msk [vmem:[#allocation3 + $0x18] sm:$0xf] %vm2248, %v4171
    %4261 = vst.msk [vmem:[#allocation3 + $0x1c] sm:$0xf] %vm2248, %v4173
    %4262 = vst.msk [vmem:[#allocation3 + $0x20] sm:$0xf] %vm2248, %v4175
    %4263 = vst.msk [vmem:[#allocation3 + $0x24] sm:$0xf] %vm2248, %v4177
    %4264 = vst.msk [vmem:[#allocation3 + $0x28] sm:$0xf] %vm2248, %v4179
    %4265 = vst.msk [vmem:[#allocation3 + $0x2c] sm:$0xf] %vm2248, %v4181
    %4266 = vst.msk [vmem:[#allocation3 + $0x30] sm:$0xf] %vm2248, %v4183
    %4267 = vst.msk [vmem:[#allocation3 + $0x34] sm:$0xf] %vm2248, %v4185
    %4268 = vst.msk [vmem:[#allocation3 + $0x38] sm:$0xf] %vm2248, %v4187
    %4269 = vst.msk [vmem:[#allocation3 + $0x3c] sm:$0xf] %vm2248, %v4189
    %4270 = vst.msk [vmem:[#allocation3 + $0x40] sm:$0xf] %vm2248, %v4191
    %4271 = vst.msk [vmem:[#allocation3 + $0x44] sm:$0xf] %vm2248, %v4193
    %4272 = vst.msk [vmem:[#allocation3 + $0x48] sm:$0xf] %vm2248, %v4195
    %4273 = vst.msk [vmem:[#allocation3 + $0x4c] sm:$0xf] %vm2248, %v4197
    %4274 = vst.msk [vmem:[#allocation3 + $0x50] sm:$0xf] %vm2248, %v4199
    %4275 = vst.msk [vmem:[#allocation3 + $0x54] sm:$0xf] %vm2248, %v4201
    %4276 = vst.msk [vmem:[#allocation3 + $0x58] sm:$0xf] %vm2248, %v4203
    %4277 = vst.msk [vmem:[#allocation3 + $0x5c] sm:$0xf] %vm2248, %v4205
    %4278 = vst.msk [vmem:[#allocation3 + $0x60] sm:$0xf] %vm2248, %v4207
    %4279 = vst.msk [vmem:[#allocation3 + $0x64] sm:$0xf] %vm2248, %v4209
    %4280 = vst.msk [vmem:[#allocation3 + $0x68] sm:$0xf] %vm2248, %v4211
    %4281 = vst.msk [vmem:[#allocation3 + $0x6c] sm:$0xf] %vm2248, %v4213
    %4282 = vst.msk [vmem:[#allocation3 + $0x70] sm:$0xf] %vm2248, %v4215
    %4283 = vst.msk [vmem:[#allocation3 + $0x74] sm:$0xf] %vm2248, %v4217
    %4284 = vst.msk [vmem:[#allocation3 + $0x78] sm:$0xf] %vm2248, %v4219
    %4285 = vst.msk [vmem:[#allocation3 + $0x7c] sm:$0xf] %vm2248, %v4221
    %v4286 = vld [vmem:[#allocation3] sm:$0xf]
    %v4287 = vld [vmem:[#allocation3 + $0x4] sm:$0xf]
    %v4288 = vld [vmem:[#allocation3 + $0x8] sm:$0xf]
    %v4289 = vld [vmem:[#allocation3 + $0xc] sm:$0xf]
    %v4290 = vld [vmem:[#allocation3 + $0x10] sm:$0xf]
    %v4291 = vld [vmem:[#allocation3 + $0x14] sm:$0xf]
    %v4292 = vld [vmem:[#allocation3 + $0x18] sm:$0xf]
    %v4293 = vld [vmem:[#allocation3 + $0x1c] sm:$0xf]
    %v4294 = vld [vmem:[#allocation3 + $0x20] sm:$0xf]
    %v4295 = vld [vmem:[#allocation3 + $0x24] sm:$0xf]
    %v4296 = vld [vmem:[#allocation3 + $0x28] sm:$0xf]
    %v4297 = vld [vmem:[#allocation3 + $0x2c] sm:$0xf]
    %v4298 = vld [vmem:[#allocation3 + $0x30] sm:$0xf]
    %v4299 = vld [vmem:[#allocation3 + $0x34] sm:$0xf]
    %v4300 = vld [vmem:[#allocation3 + $0x38] sm:$0xf]
    %v4301 = vld [vmem:[#allocation3 + $0x3c] sm:$0xf]
    %v4302 = vld [vmem:[#allocation3 + $0x40] sm:$0xf]
    %v4303 = vld [vmem:[#allocation3 + $0x44] sm:$0xf]
    %v4304 = vld [vmem:[#allocation3 + $0x48] sm:$0xf]
    %v4305 = vld [vmem:[#allocation3 + $0x4c] sm:$0xf]
    %v4306 = vld [vmem:[#allocation3 + $0x50] sm:$0xf]
    %v4307 = vld [vmem:[#allocation3 + $0x54] sm:$0xf]
    %v4308 = vld [vmem:[#allocation3 + $0x58] sm:$0xf]
    %v4309 = vld [vmem:[#allocation3 + $0x5c] sm:$0xf]
    %v4310 = vld [vmem:[#allocation3 + $0x60] sm:$0xf]
    %v4311 = vld [vmem:[#allocation3 + $0x64] sm:$0xf]
    %v4312 = vld [vmem:[#allocation3 + $0x68] sm:$0xf]
    %v4313 = vld [vmem:[#allocation3 + $0x6c] sm:$0xf]
    %v4314 = vld [vmem:[#allocation3 + $0x70] sm:$0xf]
    %v4315 = vld [vmem:[#allocation3 + $0x74] sm:$0xf]
    %v4316 = vld [vmem:[#allocation3 + $0x78] sm:$0xf]
    %v4317 = vld [vmem:[#allocation3 + $0x7c] sm:$0xf]
    %4318 = vset.pattern.permute.xlu0 1
    %4319 = vperm.xlu0 %4318, %v415
    %v4320 = vpop.permute.xlu0 %4319
    %v4354 = vunpack.c.l.b16 %v4286
    %v4355 = vunpack.c.l.b16 %v4287
    %v4356 = vunpack.c.l.b16 %v4288
    %v4357 = vunpack.c.l.b16 %v4289
    %v4358 = vunpack.c.l.b16 %v4290
    %v4359 = vunpack.c.l.b16 %v4291
    %v4360 = vunpack.c.l.b16 %v4292
    %v4361 = vunpack.c.l.b16 %v4293
    %v4362 = vunpack.c.l.b16 %v4294
    %v4363 = vunpack.c.l.b16 %v4295
    %v4364 = vunpack.c.l.b16 %v4296
    %v4365 = vunpack.c.l.b16 %v4297
    %v4366 = vunpack.c.l.b16 %v4298
    %v4367 = vunpack.c.l.b16 %v4299
    %v4368 = vunpack.c.l.b16 %v4300
    %v4369 = vunpack.c.l.b16 %v4301
    %v4370 = vunpack.c.l.b16 %v4302
    %v4371 = vunpack.c.l.b16 %v4303
    %v4372 = vunpack.c.l.b16 %v4304
    %v4373 = vunpack.c.l.b16 %v4305
    %v4374 = vunpack.c.l.b16 %v4306
    %v4375 = vunpack.c.l.b16 %v4307
    %v4376 = vunpack.c.l.b16 %v4308
    %v4377 = vunpack.c.l.b16 %v4309
    %v4378 = vunpack.c.l.b16 %v4310
    %v4379 = vunpack.c.l.b16 %v4311
    %v4380 = vunpack.c.l.b16 %v4312
    %v4381 = vunpack.c.l.b16 %v4313
    %v4382 = vunpack.c.l.b16 %v4314
    %v4383 = vunpack.c.l.b16 %v4315
    %v4384 = vunpack.c.l.b16 %v4316
    %v4385 = vunpack.c.l.b16 %v4317
    %v4386 = vpack.c.b16 %v4355, %v4354
    %v4387 = vpack.c.b16 %v4357, %v4356
    %v4388 = vpack.c.b16 %v4359, %v4358
    %v4389 = vpack.c.b16 %v4361, %v4360
    %v4390 = vpack.c.b16 %v4363, %v4362
    %v4391 = vpack.c.b16 %v4365, %v4364
    %v4392 = vpack.c.b16 %v4367, %v4366
    %v4393 = vpack.c.b16 %v4369, %v4368
    %v4394 = vpack.c.b16 %v4371, %v4370
    %v4395 = vpack.c.b16 %v4373, %v4372
    %v4396 = vpack.c.b16 %v4375, %v4374
    %v4397 = vpack.c.b16 %v4377, %v4376
    %v4398 = vpack.c.b16 %v4379, %v4378
    %v4399 = vpack.c.b16 %v4381, %v4380
    %v4400 = vpack.c.b16 %v4383, %v4382
    %v4401 = vpack.c.b16 %v4385, %v4384
    %v4403 = vsel %vm2398, %v390, 0
    %v4406 = vsel %vm2398, %v4386, 0
    %v4409 = vsel %vm2398, %v4387, 0
    %v4412 = vsel %vm2398, %v4388, 0
    %v4415 = vsel %vm2398, %v4389, 0
    %v4418 = vsel %vm2398, %v4390, 0
    %v4421 = vsel %vm2398, %v4391, 0
    %v4424 = vsel %vm2398, %v4392, 0
    %v4427 = vsel %vm2398, %v4393, 0
    %v4430 = vsel %vm2398, %v4394, 0
    %v4433 = vsel %vm2398, %v4395, 0
    %v4436 = vsel %vm2398, %v4396, 0
    %v4439 = vsel %vm2398, %v4397, 0
    %v4442 = vsel %vm2398, %v4398, 0
    %v4445 = vsel %vm2398, %v4399, 0
    %v4448 = vsel %vm2398, %v4400, 0
    %v4451 = vsel %vm2398, %v4401, 0
    %4453 = vmatpush.bf16.xpose.msra.mxu0 %v4427
    %4454 = vmatpush.bf16.xpose.msra.mxu0 %v4424
    %4455 = vmatpush.bf16.xpose.msra.mxu0 %v4421
    %4456 = vmatpush.bf16.xpose.msra.mxu0 %v4418
    %4457 = vmatpush.bf16.xpose.msra.mxu0 %v4415
    %4458 = vmatpush.bf16.xpose.msra.mxu0 %v4412
    %4459 = vmatpush.bf16.xpose.msra.mxu0 %v4409
    %4460 = vmatpush.bf16.xpose.msra.mxu0 %v4406
    %4461 = vmatmul.bf16.gmra.mxu0 %v4403
    %v4462 = vpop.f32.mrf.mxu0
    %v4463 = vadd.f32 %v4320, %v4462
    %v4464 = vpop.f32.mrf.mxu0
    %4465 = vdwg.mxu0
    %4466 = vmatpush.bf16.xpose.msra.mxu0 %v4451
    %4467 = vmatpush.bf16.xpose.msra.mxu0 %v4448
    %4468 = vmatpush.bf16.xpose.msra.mxu0 %v4445
    %4469 = vmatpush.bf16.xpose.msra.mxu0 %v4442
    %4470 = vmatpush.bf16.xpose.msra.mxu0 %v4439
    %4471 = vmatpush.bf16.xpose.msra.mxu0 %v4436
    %4472 = vmatpush.bf16.xpose.msra.mxu0 %v4433
    %4473 = vmatpush.bf16.xpose.msra.mxu0 %v4430
    %4474 = vmatmul.bf16.gmra.mxu0 %v4403
    %v4475 = vpop.f32.mrf.mxu0
    %v4476 = vadd.f32 %v4320, %v4475
    %v4477 = vpop.f32.mrf.mxu0
    %4478 = vdwg.mxu0
    %s4479 = scalar_lea.vmem [#allocation4], 16
    %4480 = vst [vmem:[%s4479] sm:$0xff] %v4463
    %4481 = vst [vmem:[%s4479 + $0x8] sm:$0xff] %v4476
    // Predicated region
    $region30: #{tpu_custom_call.1} parent=1 // pred_check
      _
    $region31: #{tpu_custom_call.1} parent=1 // pred_check_branch
      %4483 = sbr.rel (0) target = $region33
    $region32: #{tpu_custom_call.1} parent=1 // pred_region
      %4485 = vsyncadd [#allocation5], 0
      %s4486 = sshll.u32 [#allocation4], 4
      %s4487 = int_to_ptr.vmem [resolvable:$true] %s4486
      %s4488 = sshll.u32 %s7, 4
      %s4489 = int_to_ptr.hbm [resolvable:$true] %s4488
      %4494 = dma.vmem_to_hbm [thread:$0]  %s4487, 512, %s4489, [#allocation5], 256, 256, 16
    $region33: #{tpu_custom_call.1} parent=1 // pred_fallthru
      _
    // Predicated region
    $region34: #{tpu_custom_call.1} parent=1 // pred_check
      _
    $region35: #{tpu_custom_call.1} parent=1 // pred_check_branch
      %4496 = sbr.rel (0) target = $region37
    $region36: #{tpu_custom_call.1} parent=1 // pred_region
      %4498 = dma.done [#allocation5], 512
    $region37: #{tpu_custom_call.1} parent=1 // pred_fallthru
      _
    %4499 = vsyncpa [#allocation5], 1

</llo_original>
